<compile_context>
chip_gen: v7x
topology: tpu7x:2x2x1
jax: 0.10.0
libtpu: 0.0.40
codegen_flags: <defaults>
</compile_context>

<pallas_src>
import math
import jax
import jax.numpy as jnp
from jax.experimental import pallas as pl
from jax.experimental.pallas import tpu as pltpu

NEG = -1.0e30        # additive mask value for padded keys
LN_EPS = 1e-5
BN_EPS = 1e-5


def _round_up(x, m):
    return (x + m - 1) // m * m


def _row_tile(m):
    # Big row tiles reduce how many times the weight matrix is re-streamed.
    if m >= 256:
        return 256
    if m >= 128:
        return 128
    return m


def _col_tile(n):
    for c in (512, 256, 128):
        if n % c == 0:
            return c
    return n


def _cparams(*sem):
    return pltpu.CompilerParams(dimension_semantics=sem,
                                vmem_limit_bytes=32 * 1024 * 1024)


# ----------------------------------------------------------------------------
# Fused linear kernel:
#   [LayerNorm ->] x @ W + b [* sigmoid(x @ Wg + bg)]
#   [relu|silu|log_softmax] [residual + scale * y] [-> post LayerNorm]
# ----------------------------------------------------------------------------
def _linear_kernel(activation, has_ln, has_gate, has_res, has_post, res_scale):
    def kernel(*refs):
        it = iter(refs)
        x_ref = next(it)
        w_ref = next(it)
        b_ref = next(it)
        if has_ln:
            g_ref = next(it)
            be_ref = next(it)
        if has_gate:
            gw_ref = next(it)
            gb_ref = next(it)
        if has_res:
            r_ref = next(it)
        if has_post:
            pg_ref = next(it)
            pb_ref = next(it)
        o_ref = next(it)

        x = x_ref[...]
        if has_ln:
            mean = jnp.mean(x, axis=-1, keepdims=True)
            var = jnp.mean((x - mean) ** 2, axis=-1, keepdims=True)
            x = (x - mean) * jax.lax.rsqrt(var + LN_EPS) * g_ref[...] + be_ref[...]

        xb = x.astype(jnp.bfloat16)                      # bf16 MXU operands
        y = jnp.dot(xb, w_ref[...], preferred_element_type=jnp.float32) + b_ref[...]
        if has_gate:                                     # GLU: a * sigmoid(g)
            g = jnp.dot(xb, gw_ref[...], preferred_element_type=jnp.float32) + gb_ref[...]
            y = y * jax.nn.sigmoid(g)

        if activation == "relu":
            y = jnp.maximum(y, 0.0)
        elif activation == "silu":
            y = y * jax.nn.sigmoid(y)
        elif activation == "log_softmax":
            m = jnp.max(y, axis=-1, keepdims=True)
            y = y - m
            y = y - jnp.log(jnp.sum(jnp.exp(y), axis=-1, keepdims=True))

        if has_res:
            y = r_ref[...] + res_scale * y

        if has_post:                                     # fused final LayerNorm
            mean = jnp.mean(y, axis=-1, keepdims=True)
            var = jnp.mean((y - mean) ** 2, axis=-1, keepdims=True)
            y = (y - mean) * jax.lax.rsqrt(var + LN_EPS) * pg_ref[...] + pb_ref[...]

        o_ref[...] = y
    return kernel


def linear(x, w, b, *, activation=None, ln=None, gate=None,
           residual=None, res_scale=1.0, post_ln=None):
    """x:(M,K) f32, w:(K,N).  Weights fed to the MXU as bf16, f32 accumulation."""
    M, K = x.shape
    N = w.shape[1]
    TM = _row_tile(M)
    full_row = (activation == "log_softmax") or (post_ln is not None)
    TN = N if full_row else _col_tile(N)
    grid = (pl.cdiv(M, TM), N // TN)

    has_ln = ln is not None
    has_gate = gate is not None
    has_res = residual is not None
    has_post = post_ln is not None

    inputs = [x, w.astype(jnp.bfloat16), b.reshape(1, N).astype(jnp.float32)]
    in_specs = [
        pl.BlockSpec((TM, K), lambda i, j: (i, 0)),
        pl.BlockSpec((K, TN), lambda i, j: (0, j)),
        pl.BlockSpec((1, TN), lambda i, j: (0, j)),
    ]
    if has_ln:
        g, be = ln
        inputs += [g.reshape(1, K), be.reshape(1, K)]
        in_specs += [pl.BlockSpec((1, K), lambda i, j: (0, 0)),
                     pl.BlockSpec((1, K), lambda i, j: (0, 0))]
    if has_gate:
        gw, gb = gate
        inputs += [gw.astype(jnp.bfloat16), gb.reshape(1, N).astype(jnp.float32)]
        in_specs += [pl.BlockSpec((K, TN), lambda i, j: (0, j)),
                     pl.BlockSpec((1, TN), lambda i, j: (0, j))]
    if has_res:
        inputs += [residual]
        in_specs += [pl.BlockSpec((TM, TN), lambda i, j: (i, j))]
    if has_post:
        pg, pb = post_ln
        inputs += [pg.reshape(1, N), pb.reshape(1, N)]
        in_specs += [pl.BlockSpec((1, N), lambda i, j: (0, 0)),
                     pl.BlockSpec((1, N), lambda i, j: (0, 0))]

    return pl.pallas_call(
        _linear_kernel(activation, has_ln, has_gate, has_res, has_post, res_scale),
        out_shape=jax.ShapeDtypeStruct((M, N), jnp.float32),
        grid=grid,
        in_specs=in_specs,
        out_specs=pl.BlockSpec((TM, TN), lambda i, j: (i, j)),
        compiler_params=_cparams("parallel", "parallel"),
    )(*inputs)


# ----------------------------------------------------------------------------
# Depthwise conv1d (time) + eval BatchNorm + SiLU, time-tiled with compact halo
# ----------------------------------------------------------------------------
def depthwise_conv_bn_silu(x, w, b, bn_scale, bn_shift, pad):
    """x:(B,T,D), w:(K,D) (w[k,d] == torch dw_weight[d,0,k]), b:(D,)."""
    B, T, D = x.shape
    K = w.shape[0]
    halo = 2 * pad                                      # K - 1 taps of look-ahead
    TT = min(256, _round_up(T, 8))
    TT = max(TT, _round_up(max(halo, 8), 8))            # halo rows must fit in one tile
    nt = pl.cdiv(T, TT)
    total = (nt + 1) * TT
    xp = jnp.pad(x, ((0, 0), (pad, total - T - pad), (0, 0)))   # (B, (nt+1)*TT, D)

    b2 = b.reshape(1, D)
    sc2 = bn_scale.reshape(1, D)
    sh2 = bn_shift.reshape(1, D)

    if halo > 0:
        halo_r = _round_up(halo, 8)
        # Only the first halo_r rows of the NEXT tile are needed; pack them into a
        # small side array so the kernel does not DMA a full extra tile per step.
        xh = (xp[:, TT:, :]
              .reshape(B, nt, TT, D)[:, :, :halo_r, :]
              .reshape(B, nt * halo_r, D))

        def kernel(xa_ref, xh_ref, w_ref, b_ref, sc_ref, sh_ref, o_ref):
            xa = xa_ref[0]                              # (TT, D) current tile
            win = jnp.concatenate([xa, xh_ref[0][:halo]], axis=0)   # (TT+halo, D)
            acc = jnp.zeros((TT, D), jnp.float32)
            for k in range(K):                          # static unrolled taps
                acc = acc + win[k:k + TT, :] * w_ref[k]
            y = (acc + b_ref[...]) * sc_ref[...] + sh_ref[...]
            o_ref[0] = y * jax.nn.sigmoid(y)

        in_specs = [
            pl.BlockSpec((1, TT, D), lambda bi, t: (bi, t, 0)),
            pl.BlockSpec((1, halo_r, D), lambda bi, t: (bi, t, 0)),
            pl.BlockSpec((K, D), lambda bi, t: (0, 0)),
            pl.BlockSpec((1, D), lambda bi, t: (0, 0)),
            pl.BlockSpec((1, D), lambda bi, t: (0, 0)),
            pl.BlockSpec((1, D), lambda bi, t: (0, 0)),
        ]
        inputs = (xp, xh, w, b2, sc2, sh2)
    else:                                               # K == 1: pointwise
        def kernel(xa_ref, w_ref, b_ref, sc_ref, sh_ref, o_ref):
            y = (xa_ref[0] * w_ref[0] + b_ref[...]) * sc_ref[...] + sh_ref[...]
            o_ref[0] = y * jax.nn.sigmoid(y)

        in_specs = [
            pl.BlockSpec((1, TT, D), lambda bi, t: (bi, t, 0)),
            pl.BlockSpec((K, D), lambda bi, t: (0, 0)),
            pl.BlockSpec((1, D), lambda bi, t: (0, 0)),
            pl.BlockSpec((1, D), lambda bi, t: (0, 0)),
            pl.BlockSpec((1, D), lambda bi, t: (0, 0)),
        ]
        inputs = (xp, w, b2, sc2, sh2)

    return pl.pallas_call(
        kernel,
        out_shape=jax.ShapeDtypeStruct((B, T, D), jnp.float32),
        grid=(B, nt),
        in_specs=in_specs,
        out_specs=pl.BlockSpec((1, TT, D), lambda bi, t: (bi, t, 0)),
        compiler_params=_cparams("parallel", "parallel"),
    )(*inputs)


# ----------------------------------------------------------------------------
# Flash-style MHSA: all heads of one batch item per step, key-block tiling,
# online softmax with in-kernel key masking.
# ----------------------------------------------------------------------------
def _mhsa_kernel(scale, TKV, T, nk):
    def kernel(q_ref, k_ref, v_ref, bias_ref, o_ref, m_sc, l_sc, acc_sc):
        ki = pl.program_id(2)

        @pl.when(ki == 0)
        def _():
            m_sc[...] = jnp.full(m_sc.shape, -jnp.inf, m_sc.dtype)
            l_sc[...] = jnp.zeros(l_sc.shape, l_sc.dtype)
            acc_sc[...] = jnp.zeros(acc_sc.shape, acc_sc.dtype)

        # Fold the 1/sqrt(dh) scale into q (much smaller than the score block).
        q = (q_ref[0] * scale).astype(jnp.bfloat16)     # (H, TQ, dh)
        k = k_ref[0].astype(jnp.bfloat16)               # (H, TKV, dh)
        v = v_ref[0]                                    # (H, TKV, dh)

        s = jnp.einsum("hqd,hkd->hqk", q, k, preferred_element_type=jnp.float32)
        key_pos = ki * TKV + jax.lax.broadcasted_iota(jnp.int32, (1, 1, TKV), 2)
        s = jnp.where(key_pos < T, s + bias_ref[...], NEG)      # pad + ragged keys

        m_prev = m_sc[...]
        m_new = jnp.maximum(m_prev, jnp.max(s, axis=-1, keepdims=True))
        alpha = jnp.exp(m_prev - m_new)
        p = jnp.exp(s - m_new)                                   # (H, TQ, TKV)

        vmask = (ki * TKV
                 + jax.lax.broadcasted_iota(jnp.int32, (1, TKV, 1), 1)) < T
        v = jnp.where(vmask, v, 0.0)                             # zero ragged keys

        l_sc[...] = alpha * l_sc[...] + jnp.sum(p, axis=-1, keepdims=True)
        acc_sc[...] = alpha * acc_sc[...] + jnp.einsum(
            "hqk,hkd->hqd", p.astype(jnp.bfloat16), v.astype(jnp.bfloat16),
            preferred_element_type=jnp.float32)
        m_sc[...] = m_new

        @pl.when(ki == nk - 1)
        def _():
            o_ref[0] = acc_sc[...] * pl.reciprocal(l_sc[...], approx=True)
    return kernel


def mhsa(q, k, v, bias, scale):
    """q/k/v:(B,H,T,dh) f32, bias:(B,1,T) additive key mask."""
    B, H, T, dh = q.shape
    TQ = 128 if T >= 128 else T
    TKV = 128 if T >= 128 else T
    nq = pl.cdiv(T, TQ)
    nk = pl.cdiv(T, TKV)

    q_map = lambda b, qi, ki: (b, 0, qi, 0)
    kv_map = lambda b, qi, ki: (b, 0, ki, 0)
    bias_map = lambda b, qi, ki: (b, 0, ki)

    return pl.pallas_call(
        _mhsa_kernel(scale, TKV, T, nk),
        out_shape=jax.ShapeDtypeStruct((B, H, T, dh), jnp.float32),
        grid=(B, nq, nk),
        in_specs=[
            pl.BlockSpec((1, H, TQ, dh), q_map),
            pl.BlockSpec((1, H, TKV, dh), kv_map),
            pl.BlockSpec((1, H, TKV, dh), kv_map),
            pl.BlockSpec((1, 1, TKV), bias_map),
        ],
        out_specs=pl.BlockSpec((1, H, TQ, dh), q_map),
        scratch_shapes=[
            pltpu.VMEM((H, TQ, 1), jnp.float32),   # running max
            pltpu.VMEM((H, TQ, 1), jnp.float32),   # running denom
            pltpu.VMEM((H, TQ, dh), jnp.float32),  # running numerator
        ],
        compiler_params=_cparams("parallel", "parallel", "arbitrary"),
    )(q, k, v, bias)


# ----------------------------------------------------------------------------
# Conv subsampling (im2col -> fused matmul kernel)
# ----------------------------------------------------------------------------
def conv2d_s2_relu(x, w, b):
    """NCHW Conv2d, stride 2, padding K//2, fused ReLU.  x:(B,Cin,H,W), w:(Cout,Cin,K,K)."""
    B, Cin, Hh, Ww = x.shape
    Cout, _, K, _ = w.shape
    pad = K // 2
    Ho = (Hh + 2 * pad - K) // 2 + 1
    Wo = (Ww + 2 * pad - K) // 2 + 1
    xp = jnp.pad(x, ((0, 0), (0, 0), (pad, pad), (pad, pad)))
    patches = []
    for kh in range(K):
        for kw in range(K):
            patches.append(xp[:, :, kh:kh + 2 * Ho:2, kw:kw + 2 * Wo:2])   # (B,Cin,Ho,Wo)
    pat = jnp.stack(patches, axis=2).reshape(B, Cin * K * K, Ho, Wo)       # (ci,kh,kw) order
    pat = jnp.transpose(pat, (0, 2, 3, 1)).reshape(B * Ho * Wo, Cin * K * K)
    wm = w.reshape(Cout, Cin * K * K).T
    y = linear(pat, wm, b, activation="relu")                              # Pallas matmul
    return jnp.transpose(y.reshape(B, Ho, Wo, Cout), (0, 3, 1, 2))         # back to NCHW


def conv_subsample(x, lengths, p, ks):
    B, T, F = x.shape
    y = conv2d_s2_relu(x[:, None, :, :], p["conv1_w"], p["conv1_b"])
    y = conv2d_s2_relu(y, p["conv2_w"], p["conv2_b"])
    Bc, C, T2, F2 = y.shape
    feat = jnp.transpose(y, (0, 2, 1, 3)).reshape(B, T2, C * F2)           # (B,C,T,F)->(B,T,C*F)
    out = linear(feat.reshape(B * T2, C * F2), p["proj_w"], p["proj_b"]).reshape(B, T2, -1)
    pad = ks // 2
    new_len = lengths
    for _ in range(2):
        new_len = (new_len + 2 * pad - ks) // 2 + 1
    return out, new_len


# ----------------------------------------------------------------------------
# Conformer layer / full model
# ----------------------------------------------------------------------------
def conformer_layer(x, bias, p, num_heads, k_dw):
    B, T, D = x.shape
    M = B * T
    H = num_heads
    dh = D // H
    x2 = x.reshape(M, D)

    # FFN 1 (half-step residual); pre-LN fused into the first matmul.
    f1 = p["ffn1"]
    h = linear(x2, f1["w1"], f1["b1"], activation="silu", ln=(f1["ln_g"], f1["ln_b"]))
    x2 = linear(h, f1["w2"], f1["b2"], residual=x2, res_scale=0.5)

    # Multi-head self-attention (pre-LN fused into in_proj; flash-style core).
    qkv = linear(x2, p["in_proj_w"], p["in_proj_b"], ln=(p["attn_ln_g"], p["attn_ln_b"]))
    q, k, v = jnp.split(qkv, 3, axis=-1)

    def heads(t):
        return t.reshape(B, T, H, dh).transpose(0, 2, 1, 3)                # (B,H,T,dh)

    o = mhsa(heads(q), heads(k), heads(v), bias, 1.0 / math.sqrt(dh))
    o = o.transpose(0, 2, 1, 3).reshape(M, D)
    x2 = linear(o, p["out_w"], p["out_b"], residual=x2, res_scale=1.0)

    # Convolution module: LN + pointwise-conv(2D) + GLU fused in one matmul kernel.
    h = linear(x2, p["pw1_w"][:, :D], p["pw1_b"][:D],
               gate=(p["pw1_w"][:, D:], p["pw1_b"][D:]),
               ln=(p["conv_ln_g"], p["conv_ln_b"]))
    bn_scale = p["bn_g"] * jax.lax.rsqrt(p["bn_var"] + BN_EPS)
    bn_shift = p["bn_b"] - p["bn_mean"] * bn_scale
    h = depthwise_conv_bn_silu(h.reshape(B, T, D), p["dw_w"], p["dw_b"],
                               bn_scale, bn_shift, (k_dw - 1) // 2)
    x2 = linear(h.reshape(M, D), p["pw2_w"], p["pw2_b"], residual=x2, res_scale=1.0)

    # FFN 2 with the layer-final LayerNorm fused into its second matmul.
    f2 = p["ffn2"]
    h = linear(x2, f2["w1"], f2["b1"], activation="silu", ln=(f2["ln_g"], f2["ln_b"]))
    x2 = linear(h, f2["w2"], f2["b2"], residual=x2, res_scale=0.5,
                post_ln=(p["final_ln_g"], p["final_ln_b"]))
    return x2.reshape(B, T, D)


def conformer_forward(params, x, lengths, cfg):
    x, lengths = conv_subsample(x, lengths, params, cfg["subsampling_kernel_size"])
    B, T, D = x.shape
    pad_mask = jnp.arange(T)[None, :] >= lengths[:, None]                  # True = padded key
    bias = jnp.where(pad_mask, NEG, 0.0).astype(jnp.float32).reshape(B, 1, T)
    for lp in params["layers"]:
        x = conformer_layer(x, bias, lp, cfg["num_heads"],
                            cfg["depthwise_conv_kernel_size"])
    # lm_head matmul with fused row log_softmax.
    logprobs = linear(x.reshape(B * T, D), params["lm_w"], params["lm_b"],
                      activation="log_softmax").reshape(B, T, -1)
    return logprobs, lengths


# ----------------------------------------------------------------------------
# Deterministic parameter init (synthetic, no checkpoint)
# ----------------------------------------------------------------------------
def init_params(key, cfg):
    d_in, D = cfg["d_input"], cfg["d_hidden"]
    L, Kdw = cfg["num_layers"], cfg["depthwise_conv_kernel_size"]
    C, Ks = cfg["subsampling_num_filter"], cfg["subsampling_kernel_size"]
    V = cfg["vocab_size"]
    keys = iter(jax.random.split(key, 512))

    def w(shape, scale=0.05):
        return scale * jax.random.normal(next(keys), shape, jnp.float32)

    zeros = lambda s: jnp.zeros(s, jnp.float32)
    ones = lambda s: jnp.ones(s, jnp.float32)

    pad = Ks // 2
    F1 = (d_in + 2 * pad - Ks) // 2 + 1
    F2 = (F1 + 2 * pad - Ks) // 2 + 1

    def ffn_params():
        return {"ln_g": ones((D,)), "ln_b": zeros((D,)),
                "w1": w((D, 4 * D)), "b1": zeros((4 * D,)),
                "w2": w((4 * D, D)), "b2": zeros((D,))}

    params = {
        "conv1_w": w((C, 1, Ks, Ks)), "conv1_b": zeros((C,)),
        "conv2_w": w((C, C, Ks, Ks)), "conv2_b": zeros((C,)),
        "proj_w": w((C * F2, D)), "proj_b": zeros((D,)),
        "lm_w": w((D, V)), "lm_b": zeros((V,)),
        "layers": [],
    }
    for _ in range(L):
        params["layers"].append({
            "ffn1": ffn_params(),
            "attn_ln_g": ones((D,)), "attn_ln_b": zeros((D,)),
            "in_proj_w": w((D, 3 * D)), "in_proj_b": zeros((3 * D,)),
            "out_w": w((D, D)), "out_b": zeros((D,)),
            "conv_ln_g": ones((D,)), "conv_ln_b": zeros((D,)),
            "pw1_w": w((D, 2 * D)), "pw1_b": zeros((2 * D,)),
            "dw_w": w((Kdw, D)), "dw_b": zeros((D,)),
            "bn_g": ones((D,)), "bn_b": zeros((D,)),
            "bn_mean": zeros((D,)), "bn_var": ones((D,)),
            "pw2_w": w((D, D)), "pw2_b": zeros((D,)),
            "ffn2": ffn_params(),
            "final_ln_g": ones((D,)), "final_ln_b": zeros((D,)),
        })
    return params


# ----------------------------------------------------------------------------
if __name__ == "__main__":
    cfg = dict(d_input=16, d_hidden=32, num_heads=4, num_layers=2,
               depthwise_conv_kernel_size=7, subsampling_num_filter=8,
               subsampling_kernel_size=3, vocab_size=16)

    key = jax.random.PRNGKey(0)
    pkey, xkey = jax.random.split(key)
    params = init_params(pkey, cfg)

    B, T = 2, 32
    x = jax.random.normal(xkey, (B, T, cfg["d_input"]), jnp.float32)       # (B, num_frames, d_input)
    lengths = jnp.array([32, 23], jnp.int32)

    fwd = jax.jit(lambda p, xx, ll: conformer_forward(p, xx, ll, cfg))
    logprobs, out_lengths = fwd(params, x, lengths)
    jax.block_until_ready((logprobs, out_lengths))

    assert logprobs.shape == (B, 8, cfg["vocab_size"])
    assert out_lengths.shape == (B,)
    assert bool(jnp.all(jnp.isfinite(logprobs)))
    print("KERNEL_OK")
</pallas_src>

<mosaic_0001>
module attributes {stable_mosaic.version = 11 : i64} {
  func.func @kernel(%arg0: i32, %arg1: i32, %arg2: memref<256x9xf32, #tpu.memory_space<vmem>>, %arg3: memref<9x8xbf16, #tpu.memory_space<vmem>>, %arg4: memref<1x8xf32, #tpu.memory_space<vmem>>, %arg5: memref<256x8xf32, #tpu.memory_space<vmem>>) attributes {dimension_semantics = [#tpu.dimension_semantics<parallel>, #tpu.dimension_semantics<parallel>], iteration_bounds = array<i64: 1, 1>, scalar_prefetch = 0 : i64, scratch_operands = 0 : i64, tpu.core_type = #tpu.core_type<tc>, window_params = [{transform_indices = @transform_0, window_bounds = array<i64: 256, 9>}, {transform_indices = @transform_1, window_bounds = array<i64: 9, 8>}, {transform_indices = @transform_2, window_bounds = array<i64: 1, 8>}, {transform_indices = @transform_3, window_bounds = array<i64: 256, 8>}]} {
    %c0 = arith.constant 0 : index
    %c0_0 = arith.constant 0 : index
    %0 = vector.load %arg2[%c0, %c0_0] : memref<256x9xf32, #tpu.memory_space<vmem>>, vector<256x9xf32>
    %1 = arith.truncf %0 : vector<256x9xf32> to vector<256x9xbf16>
    %c0_1 = arith.constant 0 : index
    %c0_2 = arith.constant 0 : index
    %2 = vector.load %arg3[%c0_1, %c0_2] : memref<9x8xbf16, #tpu.memory_space<vmem>>, vector<9x8xbf16>
    %cst = arith.constant dense<0.000000e+00> : vector<256x8xf32>
    %3 = tpu.matmul %1, %2, %cst {dimension_numbers = #tpu.dot_dimension_numbers<[1], [0], [0], [1], [0, 0, 1, 1], [], []>} : vector<256x9xbf16>, vector<9x8xbf16>, vector<256x8xf32> -> vector<256x8xf32>
    %c0_3 = arith.constant 0 : index
    %c0_4 = arith.constant 0 : index
    %4 = vector.load %arg4[%c0_3, %c0_4] : memref<1x8xf32, #tpu.memory_space<vmem>>, vector<1x8xf32>
    %5 = vector.broadcast %4 : vector<1x8xf32> to vector<256x8xf32>
    %6 = arith.addf %3, %5 : vector<256x8xf32>
    %cst_5 = arith.constant 0.000000e+00 : f32
    %7 = vector.broadcast %cst_5 : f32 to vector<256x8xf32>
    %8 = arith.maximumf %6, %7 : vector<256x8xf32>
    %c0_6 = arith.constant 0 : index
    %c0_7 = arith.constant 0 : index
    %9 = vector.load %arg5[%c0_6, %c0_7] : memref<256x8xf32, #tpu.memory_space<vmem>>, vector<256x8xf32>
    tpu.vector_store %arg5[%c0_6, %c0_7], %8 {strides = array<i32>} : memref<256x8xf32, #tpu.memory_space<vmem>>, vector<256x8xf32>,
    return
  }
  func.func @transform_0(%arg0: i32, %arg1: i32) -> (i32, i32) {
    %c0_i32 = arith.constant 0 : i32
    %c0_i32_0 = arith.constant 0 : i32
    return %arg0, %c0_i32 : i32, i32
  }
  func.func @transform_1(%arg0: i32, %arg1: i32) -> (i32, i32) {
    %c0_i32 = arith.constant 0 : i32
    %c0_i32_0 = arith.constant 0 : i32
    return %c0_i32, %arg1 : i32, i32
  }
  func.func @transform_2(%arg0: i32, %arg1: i32) -> (i32, i32) {
    %c0_i32 = arith.constant 0 : i32
    %c0_i32_0 = arith.constant 0 : i32
    return %c0_i32, %arg1 : i32, i32
  }
  func.func @transform_3(%arg0: i32, %arg1: i32) -> (i32, i32) {
    %c0_i32 = arith.constant 0 : i32
    return %arg0, %arg1 : i32, i32
  }
}

module attributes {stable_mosaic.version = 11 : i64} {
  func.func @kernel(%arg0: i32, %arg1: i32, %arg2: memref<64x72xf32, #tpu.memory_space<vmem>>, %arg3: memref<72x8xbf16, #tpu.memory_space<vmem>>, %arg4: memref<1x8xf32, #tpu.memory_space<vmem>>, %arg5: memref<64x8xf32, #tpu.memory_space<vmem>>) attributes {dimension_semantics = [#tpu.dimension_semantics<parallel>, #tpu.dimension_semantics<parallel>], iteration_bounds = array<i64: 1, 1>, scalar_prefetch = 0 : i64, scratch_operands = 0 : i64, tpu.core_type = #tpu.core_type<tc>, window_params = [{transform_indices = @transform_0, window_bounds = array<i64: 64, 72>}, {transform_indices = @transform_1, window_bounds = array<i64: 72, 8>}, {transform_indices = @transform_2, window_bounds = array<i64: 1, 8>}, {transform_indices = @transform_3, window_bounds = array<i64: 64, 8>}]} {
    %c0 = arith.constant 0 : index
    %c0_0 = arith.constant 0 : index
    %0 = vector.load %arg2[%c0, %c0_0] : memref<64x72xf32, #tpu.memory_space<vmem>>, vector<64x72xf32>
    %1 = arith.truncf %0 : vector<64x72xf32> to vector<64x72xbf16>
    %c0_1 = arith.constant 0 : index
    %c0_2 = arith.constant 0 : index
    %2 = vector.load %arg3[%c0_1, %c0_2] : memref<72x8xbf16, #tpu.memory_space<vmem>>, vector<72x8xbf16>
    %cst = arith.constant dense<0.000000e+00> : vector<64x8xf32>
    %3 = tpu.matmul %1, %2, %cst {dimension_numbers = #tpu.dot_dimension_numbers<[1], [0], [0], [1], [0, 0, 1, 1], [], []>} : vector<64x72xbf16>, vector<72x8xbf16>, vector<64x8xf32> -> vector<64x8xf32>
    %c0_3 = arith.constant 0 : index
    %c0_4 = arith.constant 0 : index
    %4 = vector.load %arg4[%c0_3, %c0_4] : memref<1x8xf32, #tpu.memory_space<vmem>>, vector<1x8xf32>
    %5 = vector.broadcast %4 : vector<1x8xf32> to vector<64x8xf32>
    %6 = arith.addf %3, %5 : vector<64x8xf32>
    %cst_5 = arith.constant 0.000000e+00 : f32
    %7 = vector.broadcast %cst_5 : f32 to vector<64x8xf32>
    %8 = arith.maximumf %6, %7 : vector<64x8xf32>
    %c0_6 = arith.constant 0 : index
    %c0_7 = arith.constant 0 : index
    %9 = vector.load %arg5[%c0_6, %c0_7] : memref<64x8xf32, #tpu.memory_space<vmem>>, vector<64x8xf32>
    tpu.vector_store %arg5[%c0_6, %c0_7], %8 {strides = array<i32>} : memref<64x8xf32, #tpu.memory_space<vmem>>, vector<64x8xf32>,
    return
  }
  func.func @transform_0(%arg0: i32, %arg1: i32) -> (i32, i32) {
    %c0_i32 = arith.constant 0 : i32
    %c0_i32_0 = arith.constant 0 : i32
    return %arg0, %c0_i32 : i32, i32
  }
  func.func @transform_1(%arg0: i32, %arg1: i32) -> (i32, i32) {
    %c0_i32 = arith.constant 0 : i32
    %c0_i32_0 = arith.constant 0 : i32
    return %c0_i32, %arg1 : i32, i32
  }
  func.func @transform_2(%arg0: i32, %arg1: i32) -> (i32, i32) {
    %c0_i32 = arith.constant 0 : i32
    %c0_i32_0 = arith.constant 0 : i32
    return %c0_i32, %arg1 : i32, i32
  }
  func.func @transform_3(%arg0: i32, %arg1: i32) -> (i32, i32) {
    %c0_i32 = arith.constant 0 : i32
    return %arg0, %arg1 : i32, i32
  }
}

module attributes {stable_mosaic.version = 11 : i64} {
  func.func @kernel(%arg0: i32, %arg1: i32, %arg2: memref<16x32xf32, #tpu.memory_space<vmem>>, %arg3: memref<32x32xbf16, #tpu.memory_space<vmem>>, %arg4: memref<1x32xf32, #tpu.memory_space<vmem>>, %arg5: memref<16x32xf32, #tpu.memory_space<vmem>>) attributes {dimension_semantics = [#tpu.dimension_semantics<parallel>, #tpu.dimension_semantics<parallel>], iteration_bounds = array<i64: 1, 1>, scalar_prefetch = 0 : i64, scratch_operands = 0 : i64, tpu.core_type = #tpu.core_type<tc>, window_params = [{transform_indices = @transform_0, window_bounds = array<i64: 16, 32>}, {transform_indices = @transform_1, window_bounds = array<i64: 32, 32>}, {transform_indices = @transform_2, window_bounds = array<i64: 1, 32>}, {transform_indices = @transform_3, window_bounds = array<i64: 16, 32>}]} {
    %c0 = arith.constant 0 : index
    %c0_0 = arith.constant 0 : index
    %0 = vector.load %arg2[%c0, %c0_0] : memref<16x32xf32, #tpu.memory_space<vmem>>, vector<16x32xf32>
    %1 = arith.truncf %0 : vector<16x32xf32> to vector<16x32xbf16>
    %c0_1 = arith.constant 0 : index
    %c0_2 = arith.constant 0 : index
    %2 = vector.load %arg3[%c0_1, %c0_2] : memref<32x32xbf16, #tpu.memory_space<vmem>>, vector<32x32xbf16>
    %cst = arith.constant dense<0.000000e+00> : vector<16x32xf32>
    %3 = tpu.matmul %1, %2, %cst {dimension_numbers = #tpu.dot_dimension_numbers<[1], [0], [0], [1], [0, 0, 1, 1], [], []>} : vector<16x32xbf16>, vector<32x32xbf16>, vector<16x32xf32> -> vector<16x32xf32>
    %c0_3 = arith.constant 0 : index
    %c0_4 = arith.constant 0 : index
    %4 = vector.load %arg4[%c0_3, %c0_4] : memref<1x32xf32, #tpu.memory_space<vmem>>, vector<1x32xf32>
    %5 = vector.broadcast %4 : vector<1x32xf32> to vector<16x32xf32>
    %6 = arith.addf %3, %5 : vector<16x32xf32>
    %c0_5 = arith.constant 0 : index
    %c0_6 = arith.constant 0 : index
    %7 = vector.load %arg5[%c0_5, %c0_6] : memref<16x32xf32, #tpu.memory_space<vmem>>, vector<16x32xf32>
    tpu.vector_store %arg5[%c0_5, %c0_6], %6 {strides = array<i32>} : memref<16x32xf32, #tpu.memory_space<vmem>>, vector<16x32xf32>,
    return
  }
  func.func @transform_0(%arg0: i32, %arg1: i32) -> (i32, i32) {
    %c0_i32 = arith.constant 0 : i32
    %c0_i32_0 = arith.constant 0 : i32
    return %arg0, %c0_i32 : i32, i32
  }
  func.func @transform_1(%arg0: i32, %arg1: i32) -> (i32, i32) {
    %c0_i32 = arith.constant 0 : i32
    %c0_i32_0 = arith.constant 0 : i32
    return %c0_i32, %arg1 : i32, i32
  }
  func.func @transform_2(%arg0: i32, %arg1: i32) -> (i32, i32) {
    %c0_i32 = arith.constant 0 : i32
    %c0_i32_0 = arith.constant 0 : i32
    return %c0_i32, %arg1 : i32, i32
  }
  func.func @transform_3(%arg0: i32, %arg1: i32) -> (i32, i32) {
    %c0_i32 = arith.constant 0 : i32
    return %arg0, %arg1 : i32, i32
  }
}

module attributes {stable_mosaic.version = 11 : i64} {
  func.func @kernel(%arg0: i32, %arg1: i32, %arg2: memref<16x32xf32, #tpu.memory_space<vmem>>, %arg3: memref<32x128xbf16, #tpu.memory_space<vmem>>, %arg4: memref<1x128xf32, #tpu.memory_space<vmem>>, %arg5: memref<1x32xf32, #tpu.memory_space<vmem>>, %arg6: memref<1x32xf32, #tpu.memory_space<vmem>>, %arg7: memref<16x128xf32, #tpu.memory_space<vmem>>) attributes {dimension_semantics = [#tpu.dimension_semantics<parallel>, #tpu.dimension_semantics<parallel>], iteration_bounds = array<i64: 1, 1>, scalar_prefetch = 0 : i64, scratch_operands = 0 : i64, tpu.core_type = #tpu.core_type<tc>, window_params = [{transform_indices = @transform_0, window_bounds = array<i64: 16, 32>}, {transform_indices = @transform_1, window_bounds = array<i64: 32, 128>}, {transform_indices = @transform_2, window_bounds = array<i64: 1, 128>}, {pipeline_mode = #tpu.pipeline_mode<synchronous>, transform_indices = @transform_3, window_bounds = array<i64: 1, 32>}, {pipeline_mode = #tpu.pipeline_mode<synchronous>, transform_indices = @transform_4, window_bounds = array<i64: 1, 32>}, {transform_indices = @transform_5, window_bounds = array<i64: 16, 128>}]} {
    %c0 = arith.constant 0 : index
    %c0_0 = arith.constant 0 : index
    %0 = vector.load %arg2[%c0, %c0_0] : memref<16x32xf32, #tpu.memory_space<vmem>>, vector<16x32xf32>
    %cst = arith.constant dense<0.000000e+00> : vector<16xf32>
    %1 = vector.multi_reduction <add>, %0, %cst [1] : vector<16x32xf32> to vector<16xf32>
    %2 = vector.shape_cast %1 : vector<16xf32> to vector<16x1xf32>
    %cst_1 = arith.constant 3.200000e+01 : f32
    %3 = vector.broadcast %cst_1 : f32 to vector<16x1xf32>
    %4 = arith.divf %2, %3 : vector<16x1xf32>
    %5 = vector.broadcast %4 : vector<16x1xf32> to vector<16x32xf32>
    %6 = arith.subf %0, %5 : vector<16x32xf32>
    %7 = arith.mulf %6, %6 : vector<16x32xf32>
    %cst_2 = arith.constant dense<0.000000e+00> : vector<16xf32>
    %8 = vector.multi_reduction <add>, %7, %cst_2 [1] : vector<16x32xf32> to vector<16xf32>
    %9 = vector.shape_cast %8 : vector<16xf32> to vector<16x1xf32>
    %cst_3 = arith.constant 3.200000e+01 : f32
    %10 = vector.broadcast %cst_3 : f32 to vector<16x1xf32>
    %11 = arith.divf %9, %10 : vector<16x1xf32>
    %12 = vector.broadcast %4 : vector<16x1xf32> to vector<16x32xf32>
    %13 = arith.subf %0, %12 : vector<16x32xf32>
    %cst_4 = arith.constant 9.99999974E-6 : f32
    %14 = vector.broadcast %cst_4 : f32 to vector<16x1xf32>
    %15 = arith.addf %11, %14 : vector<16x1xf32>
    %16 = math.rsqrt %15 : vector<16x1xf32>
    %17 = vector.broadcast %16 : vector<16x1xf32> to vector<16x32xf32>
    %18 = arith.mulf %13, %17 : vector<16x32xf32>
    %c0_5 = arith.constant 0 : index
    %c0_6 = arith.constant 0 : index
    %19 = vector.load %arg5[%c0_5, %c0_6] : memref<1x32xf32, #tpu.memory_space<vmem>>, vector<1x32xf32>
    %20 = vector.broadcast %19 : vector<1x32xf32> to vector<16x32xf32>
    %21 = arith.mulf %18, %20 : vector<16x32xf32>
    %c0_7 = arith.constant 0 : index
    %c0_8 = arith.constant 0 : index
    %22 = vector.load %arg6[%c0_7, %c0_8] : memref<1x32xf32, #tpu.memory_space<vmem>>, vector<1x32xf32>
    %23 = vector.broadcast %22 : vector<1x32xf32> to vector<16x32xf32>
    %24 = arith.addf %21, %23 : vector<16x32xf32>
    %25 = arith.truncf %24 : vector<16x32xf32> to vector<16x32xbf16>
    %c0_9 = arith.constant 0 : index
    %c0_10 = arith.constant 0 : index
    %26 = vector.load %arg3[%c0_9, %c0_10] : memref<32x128xbf16, #tpu.memory_space<vmem>>, vector<32x128xbf16>
    %cst_11 = arith.constant dense<0.000000e+00> : vector<16x128xf32>
    %27 = tpu.matmul %25, %26, %cst_11 {dimension_numbers = #tpu.dot_dimension_numbers<[1], [0], [0], [1], [0, 0, 1, 1], [], []>} : vector<16x32xbf16>, vector<32x128xbf16>, vector<16x128xf32> -> vector<16x128xf32>
    %c0_12 = arith.constant 0 : index
    %c0_13 = arith.constant 0 : index
    %28 = vector.load %arg4[%c0_12, %c0_13] : memref<1x128xf32, #tpu.memory_space<vmem>>, vector<1x128xf32>
    %29 = vector.broadcast %28 : vector<1x128xf32> to vector<16x128xf32>
    %30 = arith.addf %27, %29 : vector<16x128xf32>
    %31 = arith.negf %30 : vector<16x128xf32>
    %32 = math.exp %31 : vector<16x128xf32>
    %cst_14 = arith.constant 1.000000e+00 : f32
    %33 = vector.broadcast %cst_14 : f32 to vector<16x128xf32>
    %34 = arith.addf %33, %32 : vector<16x128xf32>
    %35 = arith.divf %33, %34 : vector<16x128xf32>
    %36 = arith.mulf %30, %35 : vector<16x128xf32>
    %c0_15 = arith.constant 0 : index
    %c0_16 = arith.constant 0 : index
    %37 = vector.load %arg7[%c0_15, %c0_16] : memref<16x128xf32, #tpu.memory_space<vmem>>, vector<16x128xf32>
    tpu.vector_store %arg7[%c0_15, %c0_16], %36 {strides = array<i32>} : memref<16x128xf32, #tpu.memory_space<vmem>>, vector<16x128xf32>,
    return
  }
  func.func @transform_0(%arg0: i32, %arg1: i32) -> (i32, i32) {
    %c0_i32 = arith.constant 0 : i32
    %c0_i32_0 = arith.constant 0 : i32
    return %arg0, %c0_i32 : i32, i32
  }
  func.func @transform_1(%arg0: i32, %arg1: i32) -> (i32, i32) {
    %c0_i32 = arith.constant 0 : i32
    %c0_i32_0 = arith.constant 0 : i32
    return %c0_i32, %arg1 : i32, i32
  }
  func.func @transform_2(%arg0: i32, %arg1: i32) -> (i32, i32) {
    %c0_i32 = arith.constant 0 : i32
    %c0_i32_0 = arith.constant 0 : i32
    return %c0_i32, %arg1 : i32, i32
  }
  func.func @transform_3(%arg0: i32, %arg1: i32) -> (i32, i32) {
    %c0_i32 = arith.constant 0 : i32
    %c0_i32_0 = arith.constant 0 : i32
    %c0_i32_1 = arith.constant 0 : i32
    return %c0_i32, %c0_i32_0 : i32, i32
  }
  func.func @transform_4(%arg0: i32, %arg1: i32) -> (i32, i32) {
    %c0_i32 = arith.constant 0 : i32
    %c0_i32_0 = arith.constant 0 : i32
    %c0_i32_1 = arith.constant 0 : i32
    return %c0_i32, %c0_i32_0 : i32, i32
  }
  func.func @transform_5(%arg0: i32, %arg1: i32) -> (i32, i32) {
    %c0_i32 = arith.constant 0 : i32
    return %arg0, %arg1 : i32, i32
  }
}

module attributes {stable_mosaic.version = 11 : i64} {
  func.func @kernel(%arg0: i32, %arg1: i32, %arg2: memref<16x128xf32, #tpu.memory_space<vmem>>, %arg3: memref<128x32xbf16, #tpu.memory_space<vmem>>, %arg4: memref<1x32xf32, #tpu.memory_space<vmem>>, %arg5: memref<16x32xf32, #tpu.memory_space<vmem>>, %arg6: memref<16x32xf32, #tpu.memory_space<vmem>>) attributes {dimension_semantics = [#tpu.dimension_semantics<parallel>, #tpu.dimension_semantics<parallel>], iteration_bounds = array<i64: 1, 1>, scalar_prefetch = 0 : i64, scratch_operands = 0 : i64, tpu.core_type = #tpu.core_type<tc>, window_params = [{transform_indices = @transform_0, window_bounds = array<i64: 16, 128>}, {transform_indices = @transform_1, window_bounds = array<i64: 128, 32>}, {transform_indices = @transform_2, window_bounds = array<i64: 1, 32>}, {transform_indices = @transform_3, window_bounds = array<i64: 16, 32>}, {transform_indices = @transform_4, window_bounds = array<i64: 16, 32>}]} {
    %c0 = arith.constant 0 : index
    %c0_0 = arith.constant 0 : index
    %0 = vector.load %arg2[%c0, %c0_0] : memref<16x128xf32, #tpu.memory_space<vmem>>, vector<16x128xf32>
    %1 = arith.truncf %0 : vector<16x128xf32> to vector<16x128xbf16>
    %c0_1 = arith.constant 0 : index
    %c0_2 = arith.constant 0 : index
    %2 = vector.load %arg3[%c0_1, %c0_2] : memref<128x32xbf16, #tpu.memory_space<vmem>>, vector<128x32xbf16>
    %cst = arith.constant dense<0.000000e+00> : vector<16x32xf32>
    %3 = tpu.matmul %1, %2, %cst {dimension_numbers = #tpu.dot_dimension_numbers<[1], [0], [0], [1], [0, 0, 1, 1], [], []>} : vector<16x128xbf16>, vector<128x32xbf16>, vector<16x32xf32> -> vector<16x32xf32>
    %c0_3 = arith.constant 0 : index
    %c0_4 = arith.constant 0 : index
    %4 = vector.load %arg4[%c0_3, %c0_4] : memref<1x32xf32, #tpu.memory_space<vmem>>, vector<1x32xf32>
    %5 = vector.broadcast %4 : vector<1x32xf32> to vector<16x32xf32>
    %6 = arith.addf %3, %5 : vector<16x32xf32>
    %c0_5 = arith.constant 0 : index
    %c0_6 = arith.constant 0 : index
    %7 = vector.load %arg5[%c0_5, %c0_6] : memref<16x32xf32, #tpu.memory_space<vmem>>, vector<16x32xf32>
    %cst_7 = arith.constant 5.000000e-01 : f32
    %8 = vector.broadcast %cst_7 : f32 to vector<16x32xf32>
    %9 = arith.mulf %8, %6 : vector<16x32xf32>
    %10 = arith.addf %7, %9 : vector<16x32xf32>
    %c0_8 = arith.constant 0 : index
    %c0_9 = arith.constant 0 : index
    %11 = vector.load %arg6[%c0_8, %c0_9] : memref<16x32xf32, #tpu.memory_space<vmem>>, vector<16x32xf32>
    tpu.vector_store %arg6[%c0_8, %c0_9], %10 {strides = array<i32>} : memref<16x32xf32, #tpu.memory_space<vmem>>, vector<16x32xf32>,
    return
  }
  func.func @transform_0(%arg0: i32, %arg1: i32) -> (i32, i32) {
    %c0_i32 = arith.constant 0 : i32
    %c0_i32_0 = arith.constant 0 : i32
    return %arg0, %c0_i32 : i32, i32
  }
  func.func @transform_1(%arg0: i32, %arg1: i32) -> (i32, i32) {
    %c0_i32 = arith.constant 0 : i32
    %c0_i32_0 = arith.constant 0 : i32
    return %c0_i32, %arg1 : i32, i32
  }
  func.func @transform_2(%arg0: i32, %arg1: i32) -> (i32, i32) {
    %c0_i32 = arith.constant 0 : i32
    %c0_i32_0 = arith.constant 0 : i32
    return %c0_i32, %arg1 : i32, i32
  }
  func.func @transform_3(%arg0: i32, %arg1: i32) -> (i32, i32) {
    %c0_i32 = arith.constant 0 : i32
    return %arg0, %arg1 : i32, i32
  }
  func.func @transform_4(%arg0: i32, %arg1: i32) -> (i32, i32) {
    %c0_i32 = arith.constant 0 : i32
    return %arg0, %arg1 : i32, i32
  }
}

module attributes {stable_mosaic.version = 11 : i64} {
  func.func @kernel(%arg0: i32, %arg1: i32, %arg2: memref<16x32xf32, #tpu.memory_space<vmem>>, %arg3: memref<32x96xbf16, #tpu.memory_space<vmem>>, %arg4: memref<1x96xf32, #tpu.memory_space<vmem>>, %arg5: memref<1x32xf32, #tpu.memory_space<vmem>>, %arg6: memref<1x32xf32, #tpu.memory_space<vmem>>, %arg7: memref<16x96xf32, #tpu.memory_space<vmem>>) attributes {dimension_semantics = [#tpu.dimension_semantics<parallel>, #tpu.dimension_semantics<parallel>], iteration_bounds = array<i64: 1, 1>, scalar_prefetch = 0 : i64, scratch_operands = 0 : i64, tpu.core_type = #tpu.core_type<tc>, window_params = [{transform_indices = @transform_0, window_bounds = array<i64: 16, 32>}, {transform_indices = @transform_1, window_bounds = array<i64: 32, 96>}, {transform_indices = @transform_2, window_bounds = array<i64: 1, 96>}, {pipeline_mode = #tpu.pipeline_mode<synchronous>, transform_indices = @transform_3, window_bounds = array<i64: 1, 32>}, {pipeline_mode = #tpu.pipeline_mode<synchronous>, transform_indices = @transform_4, window_bounds = array<i64: 1, 32>}, {transform_indices = @transform_5, window_bounds = array<i64: 16, 96>}]} {
    %c0 = arith.constant 0 : index
    %c0_0 = arith.constant 0 : index
    %0 = vector.load %arg2[%c0, %c0_0] : memref<16x32xf32, #tpu.memory_space<vmem>>, vector<16x32xf32>
    %cst = arith.constant dense<0.000000e+00> : vector<16xf32>
    %1 = vector.multi_reduction <add>, %0, %cst [1] : vector<16x32xf32> to vector<16xf32>
    %2 = vector.shape_cast %1 : vector<16xf32> to vector<16x1xf32>
    %cst_1 = arith.constant 3.200000e+01 : f32
    %3 = vector.broadcast %cst_1 : f32 to vector<16x1xf32>
    %4 = arith.divf %2, %3 : vector<16x1xf32>
    %5 = vector.broadcast %4 : vector<16x1xf32> to vector<16x32xf32>
    %6 = arith.subf %0, %5 : vector<16x32xf32>
    %7 = arith.mulf %6, %6 : vector<16x32xf32>
    %cst_2 = arith.constant dense<0.000000e+00> : vector<16xf32>
    %8 = vector.multi_reduction <add>, %7, %cst_2 [1] : vector<16x32xf32> to vector<16xf32>
    %9 = vector.shape_cast %8 : vector<16xf32> to vector<16x1xf32>
    %cst_3 = arith.constant 3.200000e+01 : f32
    %10 = vector.broadcast %cst_3 : f32 to vector<16x1xf32>
    %11 = arith.divf %9, %10 : vector<16x1xf32>
    %12 = vector.broadcast %4 : vector<16x1xf32> to vector<16x32xf32>
    %13 = arith.subf %0, %12 : vector<16x32xf32>
    %cst_4 = arith.constant 9.99999974E-6 : f32
    %14 = vector.broadcast %cst_4 : f32 to vector<16x1xf32>
    %15 = arith.addf %11, %14 : vector<16x1xf32>
    %16 = math.rsqrt %15 : vector<16x1xf32>
    %17 = vector.broadcast %16 : vector<16x1xf32> to vector<16x32xf32>
    %18 = arith.mulf %13, %17 : vector<16x32xf32>
    %c0_5 = arith.constant 0 : index
    %c0_6 = arith.constant 0 : index
    %19 = vector.load %arg5[%c0_5, %c0_6] : memref<1x32xf32, #tpu.memory_space<vmem>>, vector<1x32xf32>
    %20 = vector.broadcast %19 : vector<1x32xf32> to vector<16x32xf32>
    %21 = arith.mulf %18, %20 : vector<16x32xf32>
    %c0_7 = arith.constant 0 : index
    %c0_8 = arith.constant 0 : index
    %22 = vector.load %arg6[%c0_7, %c0_8] : memref<1x32xf32, #tpu.memory_space<vmem>>, vector<1x32xf32>
    %23 = vector.broadcast %22 : vector<1x32xf32> to vector<16x32xf32>
    %24 = arith.addf %21, %23 : vector<16x32xf32>
    %25 = arith.truncf %24 : vector<16x32xf32> to vector<16x32xbf16>
    %c0_9 = arith.constant 0 : index
    %c0_10 = arith.constant 0 : index
    %26 = vector.load %arg3[%c0_9, %c0_10] : memref<32x96xbf16, #tpu.memory_space<vmem>>, vector<32x96xbf16>
    %cst_11 = arith.constant dense<0.000000e+00> : vector<16x96xf32>
    %27 = tpu.matmul %25, %26, %cst_11 {dimension_numbers = #tpu.dot_dimension_numbers<[1], [0], [0], [1], [0, 0, 1, 1], [], []>} : vector<16x32xbf16>, vector<32x96xbf16>, vector<16x96xf32> -> vector<16x96xf32>
    %c0_12 = arith.constant 0 : index
    %c0_13 = arith.constant 0 : index
    %28 = vector.load %arg4[%c0_12, %c0_13] : memref<1x96xf32, #tpu.memory_space<vmem>>, vector<1x96xf32>
    %29 = vector.broadcast %28 : vector<1x96xf32> to vector<16x96xf32>
    %30 = arith.addf %27, %29 : vector<16x96xf32>
    %c0_14 = arith.constant 0 : index
    %c0_15 = arith.constant 0 : index
    %31 = vector.load %arg7[%c0_14, %c0_15] : memref<16x96xf32, #tpu.memory_space<vmem>>, vector<16x96xf32>
    tpu.vector_store %arg7[%c0_14, %c0_15], %30 {strides = array<i32>} : memref<16x96xf32, #tpu.memory_space<vmem>>, vector<16x96xf32>,
    return
  }
  func.func @transform_0(%arg0: i32, %arg1: i32) -> (i32, i32) {
    %c0_i32 = arith.constant 0 : i32
    %c0_i32_0 = arith.constant 0 : i32
    return %arg0, %c0_i32 : i32, i32
  }
  func.func @transform_1(%arg0: i32, %arg1: i32) -> (i32, i32) {
    %c0_i32 = arith.constant 0 : i32
    %c0_i32_0 = arith.constant 0 : i32
    return %c0_i32, %arg1 : i32, i32
  }
  func.func @transform_2(%arg0: i32, %arg1: i32) -> (i32, i32) {
    %c0_i32 = arith.constant 0 : i32
    %c0_i32_0 = arith.constant 0 : i32
    return %c0_i32, %arg1 : i32, i32
  }
  func.func @transform_3(%arg0: i32, %arg1: i32) -> (i32, i32) {
    %c0_i32 = arith.constant 0 : i32
    %c0_i32_0 = arith.constant 0 : i32
    %c0_i32_1 = arith.constant 0 : i32
    return %c0_i32, %c0_i32_0 : i32, i32
  }
  func.func @transform_4(%arg0: i32, %arg1: i32) -> (i32, i32) {
    %c0_i32 = arith.constant 0 : i32
    %c0_i32_0 = arith.constant 0 : i32
    %c0_i32_1 = arith.constant 0 : i32
    return %c0_i32, %c0_i32_0 : i32, i32
  }
  func.func @transform_5(%arg0: i32, %arg1: i32) -> (i32, i32) {
    %c0_i32 = arith.constant 0 : i32
    return %arg0, %arg1 : i32, i32
  }
}

module attributes {stable_mosaic.version = 11 : i64} {
  func.func @kernel(%arg0: i32, %arg1: i32, %arg2: i32, %arg3: memref<1x4x8x8xf32, #tpu.memory_space<vmem>>, %arg4: memref<1x4x8x8xf32, #tpu.memory_space<vmem>>, %arg5: memref<1x4x8x8xf32, #tpu.memory_space<vmem>>, %arg6: memref<1x1x8xf32, #tpu.memory_space<vmem>>, %arg7: memref<1x4x8x8xf32, #tpu.memory_space<vmem>>, %arg8: memref<4x8x1xf32, #tpu.memory_space<vmem>>, %arg9: memref<4x8x1xf32, #tpu.memory_space<vmem>>, %arg10: memref<4x8x8xf32, #tpu.memory_space<vmem>>) attributes {dimension_semantics = [#tpu.dimension_semantics<parallel>, #tpu.dimension_semantics<parallel>, #tpu.dimension_semantics<arbitrary>], iteration_bounds = array<i64: 2, 1, 1>, scalar_prefetch = 0 : i64, scratch_operands = 3 : i64, tpu.core_type = #tpu.core_type<tc>, window_params = [{transform_indices = @transform_0, window_bounds = array<i64: 1, 4, 8, 8>}, {transform_indices = @transform_1, window_bounds = array<i64: 1, 4, 8, 8>}, {transform_indices = @transform_2, window_bounds = array<i64: 1, 4, 8, 8>}, {transform_indices = @transform_3, window_bounds = array<i64: 1, 1, 8>}, {transform_indices = @transform_4, window_bounds = array<i64: 1, 4, 8, 8>}]} {
    %c0_i32 = arith.constant 0 : i32
    %0 = arith.cmpi eq, %arg2, %c0_i32 : i32
    %1 = arith.extui %0 : i1 to i32
    %c0_i32_0 = arith.constant 0 : i32
    %2 = arith.cmpi ne, %1, %c0_i32_0 : i32
    scf.if %2 {
      %cst_44 = arith.constant 0xFF800000 : f32
      %64 = vector.broadcast %cst_44 : f32 to vector<4x8x1xf32>
      %c0_45 = arith.constant 0 : index
      %c0_46 = arith.constant 0 : index
      %c0_47 = arith.constant 0 : index
      %65 = vector.load %arg8[%c0_45, %c0_46, %c0_47] : memref<4x8x1xf32, #tpu.memory_space<vmem>>, vector<4x8x1xf32>
      tpu.vector_store %arg8[%c0_45, %c0_46, %c0_47], %64 {strides = array<i32>} : memref<4x8x1xf32, #tpu.memory_space<vmem>>, vector<4x8x1xf32>,
      %cst_48 = arith.constant 0.000000e+00 : f32
      %66 = vector.broadcast %cst_48 : f32 to vector<4x8x1xf32>
      %c0_49 = arith.constant 0 : index
      %c0_50 = arith.constant 0 : index
      %c0_51 = arith.constant 0 : index
      %67 = vector.load %arg9[%c0_49, %c0_50, %c0_51] : memref<4x8x1xf32, #tpu.memory_space<vmem>>, vector<4x8x1xf32>
      tpu.vector_store %arg9[%c0_49, %c0_50, %c0_51], %66 {strides = array<i32>} : memref<4x8x1xf32, #tpu.memory_space<vmem>>, vector<4x8x1xf32>,
      %cst_52 = arith.constant 0.000000e+00 : f32
      %68 = vector.broadcast %cst_52 : f32 to vector<4x8x8xf32>
      %c0_53 = arith.constant 0 : index
      %c0_54 = arith.constant 0 : index
      %c0_55 = arith.constant 0 : index
      %69 = vector.load %arg10[%c0_53, %c0_54, %c0_55] : memref<4x8x8xf32, #tpu.memory_space<vmem>>, vector<4x8x8xf32>
      tpu.vector_store %arg10[%c0_53, %c0_54, %c0_55], %68 {strides = array<i32>} : memref<4x8x8xf32, #tpu.memory_space<vmem>>, vector<4x8x8xf32>,
    } else {
    }
    %c0 = arith.constant 0 : index
    %c0_1 = arith.constant 0 : index
    %c0_2 = arith.constant 0 : index
    %c0_3 = arith.constant 0 : index
    %3 = vector.load %arg3[%c0, %c0_1, %c0_2, %c0_3] : memref<1x4x8x8xf32, #tpu.memory_space<vmem>>, vector<1x4x8x8xf32>
    %4 = vector.shape_cast %3 : vector<1x4x8x8xf32> to vector<4x8x8xf32>
    %cst = arith.constant 0.353553385 : f32
    %5 = vector.broadcast %cst : f32 to vector<4x8x8xf32>
    %6 = arith.mulf %4, %5 : vector<4x8x8xf32>
    %7 = arith.truncf %6 : vector<4x8x8xf32> to vector<4x8x8xbf16>
    %c0_4 = arith.constant 0 : index
    %c0_5 = arith.constant 0 : index
    %c0_6 = arith.constant 0 : index
    %c0_7 = arith.constant 0 : index
    %8 = vector.load %arg4[%c0_4, %c0_5, %c0_6, %c0_7] : memref<1x4x8x8xf32, #tpu.memory_space<vmem>>, vector<1x4x8x8xf32>
    %9 = vector.shape_cast %8 : vector<1x4x8x8xf32> to vector<4x8x8xf32>
    %10 = arith.truncf %9 : vector<4x8x8xf32> to vector<4x8x8xbf16>
    %c0_8 = arith.constant 0 : index
    %c0_9 = arith.constant 0 : index
    %c0_10 = arith.constant 0 : index
    %c0_11 = arith.constant 0 : index
    %11 = vector.load %arg5[%c0_8, %c0_9, %c0_10, %c0_11] : memref<1x4x8x8xf32, #tpu.memory_space<vmem>>, vector<1x4x8x8xf32>
    %12 = vector.shape_cast %11 : vector<1x4x8x8xf32> to vector<4x8x8xf32>
    "tpu.trace_start"() <{level = 10 : i32, message = "hqd,hkd->hqk"}> : () -> ()
    %cst_12 = arith.constant dense<0.000000e+00> : vector<4x8x8xf32>
    %13 = tpu.matmul %7, %10, %cst_12 {dimension_numbers = #tpu.dot_dimension_numbers<[2], [2], [1], [1], [0, 0, 0, 1, 1, 1], [0], [0]>} : vector<4x8x8xbf16>, vector<4x8x8xbf16>, vector<4x8x8xf32> -> vector<4x8x8xf32>
    "tpu.trace_stop"() : () -> ()
    %c8_i32 = arith.constant 8 : i32
    %14 = arith.muli %arg2, %c8_i32 : i32
    %15 = tpu.iota {dimensions = array<i32: 2>} : vector<1x1x8xi32>
    %16 = vector.broadcast %14 : i32 to vector<1x1x8xi32>
    %17 = arith.addi %16, %15 : vector<1x1x8xi32>
    %c8_i32_13 = arith.constant 8 : i32
    %18 = vector.broadcast %c8_i32_13 : i32 to vector<1x1x8xi32>
    %19 = arith.cmpi slt, %17, %18 : vector<1x1x8xi32>
    %c0_14 = arith.constant 0 : index
    %c0_15 = arith.constant 0 : index
    %c0_16 = arith.constant 0 : index
    %20 = vector.load %arg6[%c0_14, %c0_15, %c0_16] : memref<1x1x8xf32, #tpu.memory_space<vmem>>, vector<1x1x8xf32>
    %21 = vector.broadcast %20 : vector<1x1x8xf32> to vector<4x8x8xf32>
    %22 = arith.addf %13, %21 : vector<4x8x8xf32>
    %cst_17 = arith.constant -1.000000e+30 : f32
    %23 = vector.shape_cast %19 : vector<1x1x8xi1> to vector<1x1x8xi1>
    %24 = vector.broadcast %23 : vector<1x1x8xi1> to vector<4x8x8xi1>
    %25 = vector.broadcast %cst_17 : f32 to vector<4x8x8xf32>
    %26 = arith.select %24, %22, %25 : vector<4x8x8xi1>, vector<4x8x8xf32>
    %c0_18 = arith.constant 0 : index
    %c0_19 = arith.constant 0 : index
    %c0_20 = arith.constant 0 : index
    %27 = vector.load %arg8[%c0_18, %c0_19, %c0_20] : memref<4x8x1xf32, #tpu.memory_space<vmem>>, vector<4x8x1xf32>
    %cst_21 = arith.constant dense<0xFF800000> : vector<4x8xf32>
    %28 = vector.multi_reduction <maximumf>, %26, %cst_21 [2] : vector<4x8x8xf32> to vector<4x8xf32>
    %29 = vector.shape_cast %28 : vector<4x8xf32> to vector<4x8x1xf32>
    %30 = arith.maximumf %27, %29 : vector<4x8x1xf32>
    %31 = arith.subf %27, %30 : vector<4x8x1xf32>
    %32 = math.exp %31 : vector<4x8x1xf32>
    %33 = vector.broadcast %30 : vector<4x8x1xf32> to vector<4x8x8xf32>
    %34 = arith.subf %26, %33 : vector<4x8x8xf32>
    %35 = math.exp %34 : vector<4x8x8xf32>
    %c8_i32_22 = arith.constant 8 : i32
    %36 = arith.muli %arg2, %c8_i32_22 : i32
    %37 = tpu.iota {dimensions = array<i32: 1>} : vector<1x8x1xi32>
    %38 = vector.broadcast %36 : i32 to vector<1x8x1xi32>
    %39 = arith.addi %38, %37 : vector<1x8x1xi32>
    %c8_i32_23 = arith.constant 8 : i32
    %40 = vector.broadcast %c8_i32_23 : i32 to vector<1x8x1xi32>
    %41 = arith.cmpi slt, %39, %40 : vector<1x8x1xi32>
    %cst_24 = arith.constant 0.000000e+00 : f32
    %42 = vector.shape_cast %41 : vector<1x8x1xi1> to vector<1x8x1xi1>
    %43 = vector.broadcast %42 : vector<1x8x1xi1> to vector<4x8x8xi1>
    %44 = vector.broadcast %cst_24 : f32 to vector<4x8x8xf32>
    %45 = arith.select %43, %12, %44 : vector<4x8x8xi1>, vector<4x8x8xf32>
    %c0_25 = arith.constant 0 : index
    %c0_26 = arith.constant 0 : index
    %c0_27 = arith.constant 0 : index
    %46 = vector.load %arg9[%c0_25, %c0_26, %c0_27] : memref<4x8x1xf32, #tpu.memory_space<vmem>>, vector<4x8x1xf32>
    %47 = arith.mulf %32, %46 : vector<4x8x1xf32>
    %cst_28 = arith.constant dense<0.000000e+00> : vector<4x8xf32>
    %48 = vector.multi_reduction <add>, %35, %cst_28 [2] : vector<4x8x8xf32> to vector<4x8xf32>
    %49 = vector.shape_cast %48 : vector<4x8xf32> to vector<4x8x1xf32>
    %50 = arith.addf %47, %49 : vector<4x8x1xf32>
    %c0_29 = arith.constant 0 : index
    %c0_30 = arith.constant 0 : index
    %c0_31 = arith.constant 0 : index
    %51 = vector.load %arg9[%c0_29, %c0_30, %c0_31] : memref<4x8x1xf32, #tpu.memory_space<vmem>>, vector<4x8x1xf32>
    tpu.vector_store %arg9[%c0_29, %c0_30, %c0_31], %50 {strides = array<i32>} : memref<4x8x1xf32, #tpu.memory_space<vmem>>, vector<4x8x1xf32>,
    %c0_32 = arith.constant 0 : index
    %c0_33 = arith.constant 0 : index
    %c0_34 = arith.constant 0 : index
    %52 = vector.load %arg10[%c0_32, %c0_33, %c0_34] : memref<4x8x8xf32, #tpu.memory_space<vmem>>, vector<4x8x8xf32>
    %53 = vector.broadcast %32 : vector<4x8x1xf32> to vector<4x8x8xf32>
    %54 = arith.mulf %53, %52 : vector<4x8x8xf32>
    %55 = arith.truncf %35 : vector<4x8x8xf32> to vector<4x8x8xbf16>
    %56 = arith.truncf %45 : vector<4x8x8xf32> to vector<4x8x8xbf16>
    "tpu.trace_start"() <{level = 10 : i32, message = "hqk,hkd->hqd"}> : () -> ()
    %cst_35 = arith.constant dense<0.000000e+00> : vector<4x8x8xf32>
    %57 = tpu.matmul %55, %56, %cst_35 {dimension_numbers = #tpu.dot_dimension_numbers<[2], [1], [1], [2], [0, 0, 0, 1, 1, 2], [0], [0]>} : vector<4x8x8xbf16>, vector<4x8x8xbf16>, vector<4x8x8xf32> -> vector<4x8x8xf32>
    "tpu.trace_stop"() : () -> ()
    %58 = arith.addf %54, %57 : vector<4x8x8xf32>
    %c0_36 = arith.constant 0 : index
    %c0_37 = arith.constant 0 : index
    %c0_38 = arith.constant 0 : index
    %59 = vector.load %arg10[%c0_36, %c0_37, %c0_38] : memref<4x8x8xf32, #tpu.memory_space<vmem>>, vector<4x8x8xf32>
    tpu.vector_store %arg10[%c0_36, %c0_37, %c0_38], %58 {strides = array<i32>} : memref<4x8x8xf32, #tpu.memory_space<vmem>>, vector<4x8x8xf32>,
    %c0_39 = arith.constant 0 : index
    %c0_40 = arith.constant 0 : index
    %c0_41 = arith.constant 0 : index
    %60 = vector.load %arg8[%c0_39, %c0_40, %c0_41] : memref<4x8x1xf32, #tpu.memory_space<vmem>>, vector<4x8x1xf32>
    tpu.vector_store %arg8[%c0_39, %c0_40, %c0_41], %30 {strides = array<i32>} : memref<4x8x1xf32, #tpu.memory_space<vmem>>, vector<4x8x1xf32>,
    %c0_i32_42 = arith.constant 0 : i32
    %61 = arith.cmpi eq, %arg2, %c0_i32_42 : i32
    %62 = arith.extui %61 : i1 to i32
    %c0_i32_43 = arith.constant 0 : i32
    %63 = arith.cmpi ne, %62, %c0_i32_43 : i32
    scf.if %63 {
      %c0_44 = arith.constant 0 : index
      %c0_45 = arith.constant 0 : index
      %c0_46 = arith.constant 0 : index
      %64 = vector.load %arg10[%c0_44, %c0_45, %c0_46] : memref<4x8x8xf32, #tpu.memory_space<vmem>>, vector<4x8x8xf32>
      %c0_47 = arith.constant 0 : index
      %c0_48 = arith.constant 0 : index
      %c0_49 = arith.constant 0 : index
      %65 = vector.load %arg9[%c0_47, %c0_48, %c0_49] : memref<4x8x1xf32, #tpu.memory_space<vmem>>, vector<4x8x1xf32>
      %66 = tpu.reciprocal %65 {approx = true} : vector<4x8x1xf32> -> vector<4x8x1xf32>
      %67 = vector.broadcast %66 : vector<4x8x1xf32> to vector<4x8x8xf32>
      %68 = arith.mulf %64, %67 : vector<4x8x8xf32>
      %c0_50 = arith.constant 0 : index
      %c0_51 = arith.constant 0 : index
      %c0_52 = arith.constant 0 : index
      %c0_53 = arith.constant 0 : index
      %69 = vector.load %arg7[%c0_50, %c0_51, %c0_52, %c0_53] : memref<1x4x8x8xf32, #tpu.memory_space<vmem>>, vector<1x4x8x8xf32>
      %70 = vector.shape_cast %69 : vector<1x4x8x8xf32> to vector<4x8x8xf32>
      %71 = vector.shape_cast %68 : vector<4x8x8xf32> to vector<1x4x8x8xf32>
      tpu.vector_store %arg7[%c0_50, %c0_51, %c0_52, %c0_53], %71 {strides = array<i32>} : memref<1x4x8x8xf32, #tpu.memory_space<vmem>>, vector<1x4x8x8xf32>,
    } else {
    }
    return
  }
  func.func @transform_0(%arg0: i32, %arg1: i32, %arg2: i32) -> (i32, i32, i32, i32) {
    %c0_i32 = arith.constant 0 : i32
    %c0_i32_0 = arith.constant 0 : i32
    %c0_i32_1 = arith.constant 0 : i32
    return %arg0, %c0_i32, %arg1, %c0_i32_0 : i32, i32, i32, i32
  }
  func.func @transform_1(%arg0: i32, %arg1: i32, %arg2: i32) -> (i32, i32, i32, i32) {
    %c0_i32 = arith.constant 0 : i32
    %c0_i32_0 = arith.constant 0 : i32
    %c0_i32_1 = arith.constant 0 : i32
    return %arg0, %c0_i32, %arg2, %c0_i32_0 : i32, i32, i32, i32
  }
  func.func @transform_2(%arg0: i32, %arg1: i32, %arg2: i32) -> (i32, i32, i32, i32) {
    %c0_i32 = arith.constant 0 : i32
    %c0_i32_0 = arith.constant 0 : i32
    %c0_i32_1 = arith.constant 0 : i32
    return %arg0, %c0_i32, %arg2, %c0_i32_0 : i32, i32, i32, i32
  }
  func.func @transform_3(%arg0: i32, %arg1: i32, %arg2: i32) -> (i32, i32, i32) {
    %c0_i32 = arith.constant 0 : i32
    %c0_i32_0 = arith.constant 0 : i32
    return %arg0, %c0_i32, %arg2 : i32, i32, i32
  }
  func.func @transform_4(%arg0: i32, %arg1: i32, %arg2: i32) -> (i32, i32, i32, i32) {
    %c0_i32 = arith.constant 0 : i32
    %c0_i32_0 = arith.constant 0 : i32
    %c0_i32_1 = arith.constant 0 : i32
    return %arg0, %c0_i32, %arg1, %c0_i32_0 : i32, i32, i32, i32
  }
}

module attributes {stable_mosaic.version = 11 : i64} {
  func.func @kernel(%arg0: i32, %arg1: i32, %arg2: memref<16x32xf32, #tpu.memory_space<vmem>>, %arg3: memref<32x32xbf16, #tpu.memory_space<vmem>>, %arg4: memref<1x32xf32, #tpu.memory_space<vmem>>, %arg5: memref<16x32xf32, #tpu.memory_space<vmem>>, %arg6: memref<16x32xf32, #tpu.memory_space<vmem>>) attributes {dimension_semantics = [#tpu.dimension_semantics<parallel>, #tpu.dimension_semantics<parallel>], iteration_bounds = array<i64: 1, 1>, scalar_prefetch = 0 : i64, scratch_operands = 0 : i64, tpu.core_type = #tpu.core_type<tc>, window_params = [{transform_indices = @transform_0, window_bounds = array<i64: 16, 32>}, {transform_indices = @transform_1, window_bounds = array<i64: 32, 32>}, {transform_indices = @transform_2, window_bounds = array<i64: 1, 32>}, {transform_indices = @transform_3, window_bounds = array<i64: 16, 32>}, {transform_indices = @transform_4, window_bounds = array<i64: 16, 32>}]} {
    %c0 = arith.constant 0 : index
    %c0_0 = arith.constant 0 : index
    %0 = vector.load %arg2[%c0, %c0_0] : memref<16x32xf32, #tpu.memory_space<vmem>>, vector<16x32xf32>
    %1 = arith.truncf %0 : vector<16x32xf32> to vector<16x32xbf16>
    %c0_1 = arith.constant 0 : index
    %c0_2 = arith.constant 0 : index
    %2 = vector.load %arg3[%c0_1, %c0_2] : memref<32x32xbf16, #tpu.memory_space<vmem>>, vector<32x32xbf16>
    %cst = arith.constant dense<0.000000e+00> : vector<16x32xf32>
    %3 = tpu.matmul %1, %2, %cst {dimension_numbers = #tpu.dot_dimension_numbers<[1], [0], [0], [1], [0, 0, 1, 1], [], []>} : vector<16x32xbf16>, vector<32x32xbf16>, vector<16x32xf32> -> vector<16x32xf32>
    %c0_3 = arith.constant 0 : index
    %c0_4 = arith.constant 0 : index
    %4 = vector.load %arg4[%c0_3, %c0_4] : memref<1x32xf32, #tpu.memory_space<vmem>>, vector<1x32xf32>
    %5 = vector.broadcast %4 : vector<1x32xf32> to vector<16x32xf32>
    %6 = arith.addf %3, %5 : vector<16x32xf32>
    %c0_5 = arith.constant 0 : index
    %c0_6 = arith.constant 0 : index
    %7 = vector.load %arg5[%c0_5, %c0_6] : memref<16x32xf32, #tpu.memory_space<vmem>>, vector<16x32xf32>
    %cst_7 = arith.constant 1.000000e+00 : f32
    %8 = vector.broadcast %cst_7 : f32 to vector<16x32xf32>
    %9 = arith.mulf %8, %6 : vector<16x32xf32>
    %10 = arith.addf %7, %9 : vector<16x32xf32>
    %c0_8 = arith.constant 0 : index
    %c0_9 = arith.constant 0 : index
    %11 = vector.load %arg6[%c0_8, %c0_9] : memref<16x32xf32, #tpu.memory_space<vmem>>, vector<16x32xf32>
    tpu.vector_store %arg6[%c0_8, %c0_9], %10 {strides = array<i32>} : memref<16x32xf32, #tpu.memory_space<vmem>>, vector<16x32xf32>,
    return
  }
  func.func @transform_0(%arg0: i32, %arg1: i32) -> (i32, i32) {
    %c0_i32 = arith.constant 0 : i32
    %c0_i32_0 = arith.constant 0 : i32
    return %arg0, %c0_i32 : i32, i32
  }
  func.func @transform_1(%arg0: i32, %arg1: i32) -> (i32, i32) {
    %c0_i32 = arith.constant 0 : i32
    %c0_i32_0 = arith.constant 0 : i32
    return %c0_i32, %arg1 : i32, i32
  }
  func.func @transform_2(%arg0: i32, %arg1: i32) -> (i32, i32) {
    %c0_i32 = arith.constant 0 : i32
    %c0_i32_0 = arith.constant 0 : i32
    return %c0_i32, %arg1 : i32, i32
  }
  func.func @transform_3(%arg0: i32, %arg1: i32) -> (i32, i32) {
    %c0_i32 = arith.constant 0 : i32
    return %arg0, %arg1 : i32, i32
  }
  func.func @transform_4(%arg0: i32, %arg1: i32) -> (i32, i32) {
    %c0_i32 = arith.constant 0 : i32
    return %arg0, %arg1 : i32, i32
  }
}

module attributes {stable_mosaic.version = 11 : i64} {
  func.func @kernel(%arg0: i32, %arg1: i32, %arg2: memref<1x8x32xf32, #tpu.memory_space<vmem>>, %arg3: memref<1x8x32xf32, #tpu.memory_space<vmem>>, %arg4: memref<7x32xf32, #tpu.memory_space<vmem>>, %arg5: memref<1x32xf32, #tpu.memory_space<vmem>>, %arg6: memref<1x32xf32, #tpu.memory_space<vmem>>, %arg7: memref<1x32xf32, #tpu.memory_space<vmem>>, %arg8: memref<1x8x32xf32, #tpu.memory_space<vmem>>) attributes {dimension_semantics = [#tpu.dimension_semantics<parallel>, #tpu.dimension_semantics<parallel>], iteration_bounds = array<i64: 2, 1>, scalar_prefetch = 0 : i64, scratch_operands = 0 : i64, tpu.core_type = #tpu.core_type<tc>, window_params = [{transform_indices = @transform_0, window_bounds = array<i64: 1, 8, 32>}, {transform_indices = @transform_1, window_bounds = array<i64: 1, 8, 32>}, {pipeline_mode = #tpu.pipeline_mode<synchronous>, transform_indices = @transform_2, window_bounds = array<i64: 7, 32>}, {pipeline_mode = #tpu.pipeline_mode<synchronous>, transform_indices = @transform_3, window_bounds = array<i64: 1, 32>}, {pipeline_mode = #tpu.pipeline_mode<synchronous>, transform_indices = @transform_4, window_bounds = array<i64: 1, 32>}, {pipeline_mode = #tpu.pipeline_mode<synchronous>, transform_indices = @transform_5, window_bounds = array<i64: 1, 32>}, {transform_indices = @transform_6, window_bounds = array<i64: 1, 8, 32>}]} {
    %c0 = arith.constant 0 : index
    %c0_0 = arith.constant 0 : index
    %c0_1 = arith.constant 0 : index
    %0 = vector.load %arg2[%c0, %c0_0, %c0_1] : memref<1x8x32xf32, #tpu.memory_space<vmem>>, vector<1x8x32xf32>
    %1 = vector.shape_cast %0 : vector<1x8x32xf32> to vector<8x32xf32>
    %c0_2 = arith.constant 0 : index
    %c0_3 = arith.constant 0 : index
    %c0_4 = arith.constant 0 : index
    %2 = vector.load %arg3[%c0_2, %c0_3, %c0_4] : memref<1x8x32xf32, #tpu.memory_space<vmem>>, vector<1x8x32xf32>
    %3 = vector.shape_cast %2 : vector<1x8x32xf32> to vector<8x32xf32>
    %4 = vector.extract_strided_slice %3 {offsets = [0, 0], sizes = [6, 32], strides = [1, 1]} : vector<8x32xf32> to vector<6x32xf32>
    %5 = tpu.concatenate %1, %4 in 0 : vector<8x32xf32>, vector<6x32xf32> -> vector<14x32xf32>
    %cst = arith.constant 0.000000e+00 : f32
    %6 = vector.broadcast %cst : f32 to vector<8x32xf32>
    %7 = vector.extract_strided_slice %5 {offsets = [0, 0], sizes = [8, 32], strides = [1, 1]} : vector<14x32xf32> to vector<8x32xf32>
    %c0_5 = arith.constant 0 : index
    %c0_6 = arith.constant 0 : index
    %8 = vector.load %arg4[%c0_5, %c0_6] : memref<7x32xf32, #tpu.memory_space<vmem>>, vector<1x32xf32>
    %9 = vector.shape_cast %8 : vector<1x32xf32> to vector<32xf32>
    %10 = vector.shape_cast %9 : vector<32xf32> to vector<1x32xf32>
    %11 = vector.broadcast %10 : vector<1x32xf32> to vector<8x32xf32>
    %12 = arith.mulf %7, %11 : vector<8x32xf32>
    %13 = arith.addf %6, %12 : vector<8x32xf32>
    %14 = vector.extract_strided_slice %5 {offsets = [1, 0], sizes = [8, 32], strides = [1, 1]} : vector<14x32xf32> to vector<8x32xf32>
    %c1 = arith.constant 1 : index
    %c0_7 = arith.constant 0 : index
    %15 = vector.load %arg4[%c1, %c0_7] : memref<7x32xf32, #tpu.memory_space<vmem>>, vector<1x32xf32>
    %16 = vector.shape_cast %15 : vector<1x32xf32> to vector<32xf32>
    %17 = vector.shape_cast %16 : vector<32xf32> to vector<1x32xf32>
    %18 = vector.broadcast %17 : vector<1x32xf32> to vector<8x32xf32>
    %19 = arith.mulf %14, %18 : vector<8x32xf32>
    %20 = arith.addf %13, %19 : vector<8x32xf32>
    %21 = vector.extract_strided_slice %5 {offsets = [2, 0], sizes = [8, 32], strides = [1, 1]} : vector<14x32xf32> to vector<8x32xf32>
    %c2 = arith.constant 2 : index
    %c0_8 = arith.constant 0 : index
    %22 = vector.load %arg4[%c2, %c0_8] : memref<7x32xf32, #tpu.memory_space<vmem>>, vector<1x32xf32>
    %23 = vector.shape_cast %22 : vector<1x32xf32> to vector<32xf32>
    %24 = vector.shape_cast %23 : vector<32xf32> to vector<1x32xf32>
    %25 = vector.broadcast %24 : vector<1x32xf32> to vector<8x32xf32>
    %26 = arith.mulf %21, %25 : vector<8x32xf32>
    %27 = arith.addf %20, %26 : vector<8x32xf32>
    %28 = vector.extract_strided_slice %5 {offsets = [3, 0], sizes = [8, 32], strides = [1, 1]} : vector<14x32xf32> to vector<8x32xf32>
    %c3 = arith.constant 3 : index
    %c0_9 = arith.constant 0 : index
    %29 = vector.load %arg4[%c3, %c0_9] : memref<7x32xf32, #tpu.memory_space<vmem>>, vector<1x32xf32>
    %30 = vector.shape_cast %29 : vector<1x32xf32> to vector<32xf32>
    %31 = vector.shape_cast %30 : vector<32xf32> to vector<1x32xf32>
    %32 = vector.broadcast %31 : vector<1x32xf32> to vector<8x32xf32>
    %33 = arith.mulf %28, %32 : vector<8x32xf32>
    %34 = arith.addf %27, %33 : vector<8x32xf32>
    %35 = vector.extract_strided_slice %5 {offsets = [4, 0], sizes = [8, 32], strides = [1, 1]} : vector<14x32xf32> to vector<8x32xf32>
    %c4 = arith.constant 4 : index
    %c0_10 = arith.constant 0 : index
    %36 = vector.load %arg4[%c4, %c0_10] : memref<7x32xf32, #tpu.memory_space<vmem>>, vector<1x32xf32>
    %37 = vector.shape_cast %36 : vector<1x32xf32> to vector<32xf32>
    %38 = vector.shape_cast %37 : vector<32xf32> to vector<1x32xf32>
    %39 = vector.broadcast %38 : vector<1x32xf32> to vector<8x32xf32>
    %40 = arith.mulf %35, %39 : vector<8x32xf32>
    %41 = arith.addf %34, %40 : vector<8x32xf32>
    %42 = vector.extract_strided_slice %5 {offsets = [5, 0], sizes = [8, 32], strides = [1, 1]} : vector<14x32xf32> to vector<8x32xf32>
    %c5 = arith.constant 5 : index
    %c0_11 = arith.constant 0 : index
    %43 = vector.load %arg4[%c5, %c0_11] : memref<7x32xf32, #tpu.memory_space<vmem>>, vector<1x32xf32>
    %44 = vector.shape_cast %43 : vector<1x32xf32> to vector<32xf32>
    %45 = vector.shape_cast %44 : vector<32xf32> to vector<1x32xf32>
    %46 = vector.broadcast %45 : vector<1x32xf32> to vector<8x32xf32>
    %47 = arith.mulf %42, %46 : vector<8x32xf32>
    %48 = arith.addf %41, %47 : vector<8x32xf32>
    %49 = vector.extract_strided_slice %5 {offsets = [6, 0], sizes = [8, 32], strides = [1, 1]} : vector<14x32xf32> to vector<8x32xf32>
    %c6 = arith.constant 6 : index
    %c0_12 = arith.constant 0 : index
    %50 = vector.load %arg4[%c6, %c0_12] : memref<7x32xf32, #tpu.memory_space<vmem>>, vector<1x32xf32>
    %51 = vector.shape_cast %50 : vector<1x32xf32> to vector<32xf32>
    %52 = vector.shape_cast %51 : vector<32xf32> to vector<1x32xf32>
    %53 = vector.broadcast %52 : vector<1x32xf32> to vector<8x32xf32>
    %54 = arith.mulf %49, %53 : vector<8x32xf32>
    %55 = arith.addf %48, %54 : vector<8x32xf32>
    %c0_13 = arith.constant 0 : index
    %c0_14 = arith.constant 0 : index
    %56 = vector.load %arg5[%c0_13, %c0_14] : memref<1x32xf32, #tpu.memory_space<vmem>>, vector<1x32xf32>
    %57 = vector.broadcast %56 : vector<1x32xf32> to vector<8x32xf32>
    %58 = arith.addf %55, %57 : vector<8x32xf32>
    %c0_15 = arith.constant 0 : index
    %c0_16 = arith.constant 0 : index
    %59 = vector.load %arg6[%c0_15, %c0_16] : memref<1x32xf32, #tpu.memory_space<vmem>>, vector<1x32xf32>
    %60 = vector.broadcast %59 : vector<1x32xf32> to vector<8x32xf32>
    %61 = arith.mulf %58, %60 : vector<8x32xf32>
    %c0_17 = arith.constant 0 : index
    %c0_18 = arith.constant 0 : index
    %62 = vector.load %arg7[%c0_17, %c0_18] : memref<1x32xf32, #tpu.memory_space<vmem>>, vector<1x32xf32>
    %63 = vector.broadcast %62 : vector<1x32xf32> to vector<8x32xf32>
    %64 = arith.addf %61, %63 : vector<8x32xf32>
    %65 = arith.negf %64 : vector<8x32xf32>
    %66 = math.exp %65 : vector<8x32xf32>
    %cst_19 = arith.constant 1.000000e+00 : f32
    %67 = vector.broadcast %cst_19 : f32 to vector<8x32xf32>
    %68 = arith.addf %67, %66 : vector<8x32xf32>
    %69 = arith.divf %67, %68 : vector<8x32xf32>
    %70 = arith.mulf %64, %69 : vector<8x32xf32>
    %c0_20 = arith.constant 0 : index
    %c0_21 = arith.constant 0 : index
    %c0_22 = arith.constant 0 : index
    %71 = vector.load %arg8[%c0_20, %c0_21, %c0_22] : memref<1x8x32xf32, #tpu.memory_space<vmem>>, vector<1x8x32xf32>
    %72 = vector.shape_cast %71 : vector<1x8x32xf32> to vector<8x32xf32>
    %73 = vector.shape_cast %70 : vector<8x32xf32> to vector<1x8x32xf32>
    tpu.vector_store %arg8[%c0_20, %c0_21, %c0_22], %73 {strides = array<i32>} : memref<1x8x32xf32, #tpu.memory_space<vmem>>, vector<1x8x32xf32>,
    return
  }
  func.func @transform_0(%arg0: i32, %arg1: i32) -> (i32, i32, i32) {
    %c0_i32 = arith.constant 0 : i32
    %c0_i32_0 = arith.constant 0 : i32
    return %arg0, %arg1, %c0_i32 : i32, i32, i32
  }
  func.func @transform_1(%arg0: i32, %arg1: i32) -> (i32, i32, i32) {
    %c0_i32 = arith.constant 0 : i32
    %c0_i32_0 = arith.constant 0 : i32
    return %arg0, %arg1, %c0_i32 : i32, i32, i32
  }
  func.func @transform_2(%arg0: i32, %arg1: i32) -> (i32, i32) {
    %c0_i32 = arith.constant 0 : i32
    %c0_i32_0 = arith.constant 0 : i32
    %c0_i32_1 = arith.constant 0 : i32
    return %c0_i32, %c0_i32_0 : i32, i32
  }
  func.func @transform_3(%arg0: i32, %arg1: i32) -> (i32, i32) {
    %c0_i32 = arith.constant 0 : i32
    %c0_i32_0 = arith.constant 0 : i32
    %c0_i32_1 = arith.constant 0 : i32
    return %c0_i32, %c0_i32_0 : i32, i32
  }
  func.func @transform_4(%arg0: i32, %arg1: i32) -> (i32, i32) {
    %c0_i32 = arith.constant 0 : i32
    %c0_i32_0 = arith.constant 0 : i32
    %c0_i32_1 = arith.constant 0 : i32
    return %c0_i32, %c0_i32_0 : i32, i32
  }
  func.func @transform_5(%arg0: i32, %arg1: i32) -> (i32, i32) {
    %c0_i32 = arith.constant 0 : i32
    %c0_i32_0 = arith.constant 0 : i32
    %c0_i32_1 = arith.constant 0 : i32
    return %c0_i32, %c0_i32_0 : i32, i32
  }
  func.func @transform_6(%arg0: i32, %arg1: i32) -> (i32, i32, i32) {
    %c0_i32 = arith.constant 0 : i32
    %c0_i32_0 = arith.constant 0 : i32
    return %arg0, %arg1, %c0_i32 : i32, i32, i32
  }
}

module attributes {stable_mosaic.version = 11 : i64} {
  func.func @kernel(%arg0: i32, %arg1: i32, %arg2: memref<16x32xf32, #tpu.memory_space<vmem>>, %arg3: memref<32x32xbf16, #tpu.memory_space<vmem>>, %arg4: memref<1x32xf32, #tpu.memory_space<vmem>>, %arg5: memref<1x32xf32, #tpu.memory_space<vmem>>, %arg6: memref<1x32xf32, #tpu.memory_space<vmem>>, %arg7: memref<32x32xbf16, #tpu.memory_space<vmem>>, %arg8: memref<1x32xf32, #tpu.memory_space<vmem>>, %arg9: memref<16x32xf32, #tpu.memory_space<vmem>>) attributes {dimension_semantics = [#tpu.dimension_semantics<parallel>, #tpu.dimension_semantics<parallel>], iteration_bounds = array<i64: 1, 1>, scalar_prefetch = 0 : i64, scratch_operands = 0 : i64, tpu.core_type = #tpu.core_type<tc>, window_params = [{transform_indices = @transform_0, window_bounds = array<i64: 16, 32>}, {transform_indices = @transform_1, window_bounds = array<i64: 32, 32>}, {transform_indices = @transform_2, window_bounds = array<i64: 1, 32>}, {pipeline_mode = #tpu.pipeline_mode<synchronous>, transform_indices = @transform_3, window_bounds = array<i64: 1, 32>}, {pipeline_mode = #tpu.pipeline_mode<synchronous>, transform_indices = @transform_4, window_bounds = array<i64: 1, 32>}, {transform_indices = @transform_5, window_bounds = array<i64: 32, 32>}, {transform_indices = @transform_6, window_bounds = array<i64: 1, 32>}, {transform_indices = @transform_7, window_bounds = array<i64: 16, 32>}]} {
    %c0 = arith.constant 0 : index
    %c0_0 = arith.constant 0 : index
    %0 = vector.load %arg2[%c0, %c0_0] : memref<16x32xf32, #tpu.memory_space<vmem>>, vector<16x32xf32>
    %cst = arith.constant dense<0.000000e+00> : vector<16xf32>
    %1 = vector.multi_reduction <add>, %0, %cst [1] : vector<16x32xf32> to vector<16xf32>
    %2 = vector.shape_cast %1 : vector<16xf32> to vector<16x1xf32>
    %cst_1 = arith.constant 3.200000e+01 : f32
    %3 = vector.broadcast %cst_1 : f32 to vector<16x1xf32>
    %4 = arith.divf %2, %3 : vector<16x1xf32>
    %5 = vector.broadcast %4 : vector<16x1xf32> to vector<16x32xf32>
    %6 = arith.subf %0, %5 : vector<16x32xf32>
    %7 = arith.mulf %6, %6 : vector<16x32xf32>
    %cst_2 = arith.constant dense<0.000000e+00> : vector<16xf32>
    %8 = vector.multi_reduction <add>, %7, %cst_2 [1] : vector<16x32xf32> to vector<16xf32>
    %9 = vector.shape_cast %8 : vector<16xf32> to vector<16x1xf32>
    %cst_3 = arith.constant 3.200000e+01 : f32
    %10 = vector.broadcast %cst_3 : f32 to vector<16x1xf32>
    %11 = arith.divf %9, %10 : vector<16x1xf32>
    %12 = vector.broadcast %4 : vector<16x1xf32> to vector<16x32xf32>
    %13 = arith.subf %0, %12 : vector<16x32xf32>
    %cst_4 = arith.constant 9.99999974E-6 : f32
    %14 = vector.broadcast %cst_4 : f32 to vector<16x1xf32>
    %15 = arith.addf %11, %14 : vector<16x1xf32>
    %16 = math.rsqrt %15 : vector<16x1xf32>
    %17 = vector.broadcast %16 : vector<16x1xf32> to vector<16x32xf32>
    %18 = arith.mulf %13, %17 : vector<16x32xf32>
    %c0_5 = arith.constant 0 : index
    %c0_6 = arith.constant 0 : index
    %19 = vector.load %arg5[%c0_5, %c0_6] : memref<1x32xf32, #tpu.memory_space<vmem>>, vector<1x32xf32>
    %20 = vector.broadcast %19 : vector<1x32xf32> to vector<16x32xf32>
    %21 = arith.mulf %18, %20 : vector<16x32xf32>
    %c0_7 = arith.constant 0 : index
    %c0_8 = arith.constant 0 : index
    %22 = vector.load %arg6[%c0_7, %c0_8] : memref<1x32xf32, #tpu.memory_space<vmem>>, vector<1x32xf32>
    %23 = vector.broadcast %22 : vector<1x32xf32> to vector<16x32xf32>
    %24 = arith.addf %21, %23 : vector<16x32xf32>
    %25 = arith.truncf %24 : vector<16x32xf32> to vector<16x32xbf16>
    %c0_9 = arith.constant 0 : index
    %c0_10 = arith.constant 0 : index
    %26 = vector.load %arg3[%c0_9, %c0_10] : memref<32x32xbf16, #tpu.memory_space<vmem>>, vector<32x32xbf16>
    %cst_11 = arith.constant dense<0.000000e+00> : vector<16x32xf32>
    %27 = tpu.matmul %25, %26, %cst_11 {dimension_numbers = #tpu.dot_dimension_numbers<[1], [0], [0], [1], [0, 0, 1, 1], [], []>} : vector<16x32xbf16>, vector<32x32xbf16>, vector<16x32xf32> -> vector<16x32xf32>
    %c0_12 = arith.constant 0 : index
    %c0_13 = arith.constant 0 : index
    %28 = vector.load %arg4[%c0_12, %c0_13] : memref<1x32xf32, #tpu.memory_space<vmem>>, vector<1x32xf32>
    %29 = vector.broadcast %28 : vector<1x32xf32> to vector<16x32xf32>
    %30 = arith.addf %27, %29 : vector<16x32xf32>
    %c0_14 = arith.constant 0 : index
    %c0_15 = arith.constant 0 : index
    %31 = vector.load %arg7[%c0_14, %c0_15] : memref<32x32xbf16, #tpu.memory_space<vmem>>, vector<32x32xbf16>
    %cst_16 = arith.constant dense<0.000000e+00> : vector<16x32xf32>
    %32 = tpu.matmul %25, %31, %cst_16 {dimension_numbers = #tpu.dot_dimension_numbers<[1], [0], [0], [1], [0, 0, 1, 1], [], []>} : vector<16x32xbf16>, vector<32x32xbf16>, vector<16x32xf32> -> vector<16x32xf32>
    %c0_17 = arith.constant 0 : index
    %c0_18 = arith.constant 0 : index
    %33 = vector.load %arg8[%c0_17, %c0_18] : memref<1x32xf32, #tpu.memory_space<vmem>>, vector<1x32xf32>
    %34 = vector.broadcast %33 : vector<1x32xf32> to vector<16x32xf32>
    %35 = arith.addf %32, %34 : vector<16x32xf32>
    %36 = arith.negf %35 : vector<16x32xf32>
    %37 = math.exp %36 : vector<16x32xf32>
    %cst_19 = arith.constant 1.000000e+00 : f32
    %38 = vector.broadcast %cst_19 : f32 to vector<16x32xf32>
    %39 = arith.addf %38, %37 : vector<16x32xf32>
    %40 = arith.divf %38, %39 : vector<16x32xf32>
    %41 = arith.mulf %30, %40 : vector<16x32xf32>
    %c0_20 = arith.constant 0 : index
    %c0_21 = arith.constant 0 : index
    %42 = vector.load %arg9[%c0_20, %c0_21] : memref<16x32xf32, #tpu.memory_space<vmem>>, vector<16x32xf32>
    tpu.vector_store %arg9[%c0_20, %c0_21], %41 {strides = array<i32>} : memref<16x32xf32, #tpu.memory_space<vmem>>, vector<16x32xf32>,
    return
  }
  func.func @transform_0(%arg0: i32, %arg1: i32) -> (i32, i32) {
    %c0_i32 = arith.constant 0 : i32
    %c0_i32_0 = arith.constant 0 : i32
    return %arg0, %c0_i32 : i32, i32
  }
  func.func @transform_1(%arg0: i32, %arg1: i32) -> (i32, i32) {
    %c0_i32 = arith.constant 0 : i32
    %c0_i32_0 = arith.constant 0 : i32
    return %c0_i32, %arg1 : i32, i32
  }
  func.func @transform_2(%arg0: i32, %arg1: i32) -> (i32, i32) {
    %c0_i32 = arith.constant 0 : i32
    %c0_i32_0 = arith.constant 0 : i32
    return %c0_i32, %arg1 : i32, i32
  }
  func.func @transform_3(%arg0: i32, %arg1: i32) -> (i32, i32) {
    %c0_i32 = arith.constant 0 : i32
    %c0_i32_0 = arith.constant 0 : i32
    %c0_i32_1 = arith.constant 0 : i32
    return %c0_i32, %c0_i32_0 : i32, i32
  }
  func.func @transform_4(%arg0: i32, %arg1: i32) -> (i32, i32) {
    %c0_i32 = arith.constant 0 : i32
    %c0_i32_0 = arith.constant 0 : i32
    %c0_i32_1 = arith.constant 0 : i32
    return %c0_i32, %c0_i32_0 : i32, i32
  }
  func.func @transform_5(%arg0: i32, %arg1: i32) -> (i32, i32) {
    %c0_i32 = arith.constant 0 : i32
    %c0_i32_0 = arith.constant 0 : i32
    return %c0_i32, %arg1 : i32, i32
  }
  func.func @transform_6(%arg0: i32, %arg1: i32) -> (i32, i32) {
    %c0_i32 = arith.constant 0 : i32
    %c0_i32_0 = arith.constant 0 : i32
    return %c0_i32, %arg1 : i32, i32
  }
  func.func @transform_7(%arg0: i32, %arg1: i32) -> (i32, i32) {
    %c0_i32 = arith.constant 0 : i32
    return %arg0, %arg1 : i32, i32
  }
}

module attributes {stable_mosaic.version = 11 : i64} {
  func.func @kernel(%arg0: i32, %arg1: i32, %arg2: memref<16x128xf32, #tpu.memory_space<vmem>>, %arg3: memref<128x32xbf16, #tpu.memory_space<vmem>>, %arg4: memref<1x32xf32, #tpu.memory_space<vmem>>, %arg5: memref<16x32xf32, #tpu.memory_space<vmem>>, %arg6: memref<1x32xf32, #tpu.memory_space<vmem>>, %arg7: memref<1x32xf32, #tpu.memory_space<vmem>>, %arg8: memref<16x32xf32, #tpu.memory_space<vmem>>) attributes {dimension_semantics = [#tpu.dimension_semantics<parallel>, #tpu.dimension_semantics<parallel>], iteration_bounds = array<i64: 1, 1>, scalar_prefetch = 0 : i64, scratch_operands = 0 : i64, tpu.core_type = #tpu.core_type<tc>, window_params = [{transform_indices = @transform_0, window_bounds = array<i64: 16, 128>}, {transform_indices = @transform_1, window_bounds = array<i64: 128, 32>}, {transform_indices = @transform_2, window_bounds = array<i64: 1, 32>}, {transform_indices = @transform_3, window_bounds = array<i64: 16, 32>}, {pipeline_mode = #tpu.pipeline_mode<synchronous>, transform_indices = @transform_4, window_bounds = array<i64: 1, 32>}, {pipeline_mode = #tpu.pipeline_mode<synchronous>, transform_indices = @transform_5, window_bounds = array<i64: 1, 32>}, {transform_indices = @transform_6, window_bounds = array<i64: 16, 32>}]} {
    %c0 = arith.constant 0 : index
    %c0_0 = arith.constant 0 : index
    %0 = vector.load %arg2[%c0, %c0_0] : memref<16x128xf32, #tpu.memory_space<vmem>>, vector<16x128xf32>
    %1 = arith.truncf %0 : vector<16x128xf32> to vector<16x128xbf16>
    %c0_1 = arith.constant 0 : index
    %c0_2 = arith.constant 0 : index
    %2 = vector.load %arg3[%c0_1, %c0_2] : memref<128x32xbf16, #tpu.memory_space<vmem>>, vector<128x32xbf16>
    %cst = arith.constant dense<0.000000e+00> : vector<16x32xf32>
    %3 = tpu.matmul %1, %2, %cst {dimension_numbers = #tpu.dot_dimension_numbers<[1], [0], [0], [1], [0, 0, 1, 1], [], []>} : vector<16x128xbf16>, vector<128x32xbf16>, vector<16x32xf32> -> vector<16x32xf32>
    %c0_3 = arith.constant 0 : index
    %c0_4 = arith.constant 0 : index
    %4 = vector.load %arg4[%c0_3, %c0_4] : memref<1x32xf32, #tpu.memory_space<vmem>>, vector<1x32xf32>
    %5 = vector.broadcast %4 : vector<1x32xf32> to vector<16x32xf32>
    %6 = arith.addf %3, %5 : vector<16x32xf32>
    %c0_5 = arith.constant 0 : index
    %c0_6 = arith.constant 0 : index
    %7 = vector.load %arg5[%c0_5, %c0_6] : memref<16x32xf32, #tpu.memory_space<vmem>>, vector<16x32xf32>
    %cst_7 = arith.constant 5.000000e-01 : f32
    %8 = vector.broadcast %cst_7 : f32 to vector<16x32xf32>
    %9 = arith.mulf %8, %6 : vector<16x32xf32>
    %10 = arith.addf %7, %9 : vector<16x32xf32>
    %cst_8 = arith.constant dense<0.000000e+00> : vector<16xf32>
    %11 = vector.multi_reduction <add>, %10, %cst_8 [1] : vector<16x32xf32> to vector<16xf32>
    %12 = vector.shape_cast %11 : vector<16xf32> to vector<16x1xf32>
    %cst_9 = arith.constant 3.200000e+01 : f32
    %13 = vector.broadcast %cst_9 : f32 to vector<16x1xf32>
    %14 = arith.divf %12, %13 : vector<16x1xf32>
    %15 = vector.broadcast %14 : vector<16x1xf32> to vector<16x32xf32>
    %16 = arith.subf %10, %15 : vector<16x32xf32>
    %17 = arith.mulf %16, %16 : vector<16x32xf32>
    %cst_10 = arith.constant dense<0.000000e+00> : vector<16xf32>
    %18 = vector.multi_reduction <add>, %17, %cst_10 [1] : vector<16x32xf32> to vector<16xf32>
    %19 = vector.shape_cast %18 : vector<16xf32> to vector<16x1xf32>
    %cst_11 = arith.constant 3.200000e+01 : f32
    %20 = vector.broadcast %cst_11 : f32 to vector<16x1xf32>
    %21 = arith.divf %19, %20 : vector<16x1xf32>
    %22 = vector.broadcast %14 : vector<16x1xf32> to vector<16x32xf32>
    %23 = arith.subf %10, %22 : vector<16x32xf32>
    %cst_12 = arith.constant 9.99999974E-6 : f32
    %24 = vector.broadcast %cst_12 : f32 to vector<16x1xf32>
    %25 = arith.addf %21, %24 : vector<16x1xf32>
    %26 = math.rsqrt %25 : vector<16x1xf32>
    %27 = vector.broadcast %26 : vector<16x1xf32> to vector<16x32xf32>
    %28 = arith.mulf %23, %27 : vector<16x32xf32>
    %c0_13 = arith.constant 0 : index
    %c0_14 = arith.constant 0 : index
    %29 = vector.load %arg6[%c0_13, %c0_14] : memref<1x32xf32, #tpu.memory_space<vmem>>, vector<1x32xf32>
    %30 = vector.broadcast %29 : vector<1x32xf32> to vector<16x32xf32>
    %31 = arith.mulf %28, %30 : vector<16x32xf32>
    %c0_15 = arith.constant 0 : index
    %c0_16 = arith.constant 0 : index
    %32 = vector.load %arg7[%c0_15, %c0_16] : memref<1x32xf32, #tpu.memory_space<vmem>>, vector<1x32xf32>
    %33 = vector.broadcast %32 : vector<1x32xf32> to vector<16x32xf32>
    %34 = arith.addf %31, %33 : vector<16x32xf32>
    %c0_17 = arith.constant 0 : index
    %c0_18 = arith.constant 0 : index
    %35 = vector.load %arg8[%c0_17, %c0_18] : memref<16x32xf32, #tpu.memory_space<vmem>>, vector<16x32xf32>
    tpu.vector_store %arg8[%c0_17, %c0_18], %34 {strides = array<i32>} : memref<16x32xf32, #tpu.memory_space<vmem>>, vector<16x32xf32>,
    return
  }
  func.func @transform_0(%arg0: i32, %arg1: i32) -> (i32, i32) {
    %c0_i32 = arith.constant 0 : i32
    %c0_i32_0 = arith.constant 0 : i32
    return %arg0, %c0_i32 : i32, i32
  }
  func.func @transform_1(%arg0: i32, %arg1: i32) -> (i32, i32) {
    %c0_i32 = arith.constant 0 : i32
    %c0_i32_0 = arith.constant 0 : i32
    return %c0_i32, %arg1 : i32, i32
  }
  func.func @transform_2(%arg0: i32, %arg1: i32) -> (i32, i32) {
    %c0_i32 = arith.constant 0 : i32
    %c0_i32_0 = arith.constant 0 : i32
    return %c0_i32, %arg1 : i32, i32
  }
  func.func @transform_3(%arg0: i32, %arg1: i32) -> (i32, i32) {
    %c0_i32 = arith.constant 0 : i32
    return %arg0, %arg1 : i32, i32
  }
  func.func @transform_4(%arg0: i32, %arg1: i32) -> (i32, i32) {
    %c0_i32 = arith.constant 0 : i32
    %c0_i32_0 = arith.constant 0 : i32
    %c0_i32_1 = arith.constant 0 : i32
    return %c0_i32, %c0_i32_0 : i32, i32
  }
  func.func @transform_5(%arg0: i32, %arg1: i32) -> (i32, i32) {
    %c0_i32 = arith.constant 0 : i32
    %c0_i32_0 = arith.constant 0 : i32
    %c0_i32_1 = arith.constant 0 : i32
    return %c0_i32, %c0_i32_0 : i32, i32
  }
  func.func @transform_6(%arg0: i32, %arg1: i32) -> (i32, i32) {
    %c0_i32 = arith.constant 0 : i32
    return %arg0, %arg1 : i32, i32
  }
}

module attributes {stable_mosaic.version = 11 : i64} {
  func.func @kernel(%arg0: i32, %arg1: i32, %arg2: memref<16x32xf32, #tpu.memory_space<vmem>>, %arg3: memref<32x16xbf16, #tpu.memory_space<vmem>>, %arg4: memref<1x16xf32, #tpu.memory_space<vmem>>, %arg5: memref<16x16xf32, #tpu.memory_space<vmem>>) attributes {dimension_semantics = [#tpu.dimension_semantics<parallel>, #tpu.dimension_semantics<parallel>], iteration_bounds = array<i64: 1, 1>, scalar_prefetch = 0 : i64, scratch_operands = 0 : i64, tpu.core_type = #tpu.core_type<tc>, window_params = [{transform_indices = @transform_0, window_bounds = array<i64: 16, 32>}, {transform_indices = @transform_1, window_bounds = array<i64: 32, 16>}, {transform_indices = @transform_2, window_bounds = array<i64: 1, 16>}, {transform_indices = @transform_3, window_bounds = array<i64: 16, 16>}]} {
    %c0 = arith.constant 0 : index
    %c0_0 = arith.constant 0 : index
    %0 = vector.load %arg2[%c0, %c0_0] : memref<16x32xf32, #tpu.memory_space<vmem>>, vector<16x32xf32>
    %1 = arith.truncf %0 : vector<16x32xf32> to vector<16x32xbf16>
    %c0_1 = arith.constant 0 : index
    %c0_2 = arith.constant 0 : index
    %2 = vector.load %arg3[%c0_1, %c0_2] : memref<32x16xbf16, #tpu.memory_space<vmem>>, vector<32x16xbf16>
    %cst = arith.constant dense<0.000000e+00> : vector<16x16xf32>
    %3 = tpu.matmul %1, %2, %cst {dimension_numbers = #tpu.dot_dimension_numbers<[1], [0], [0], [1], [0, 0, 1, 1], [], []>} : vector<16x32xbf16>, vector<32x16xbf16>, vector<16x16xf32> -> vector<16x16xf32>
    %c0_3 = arith.constant 0 : index
    %c0_4 = arith.constant 0 : index
    %4 = vector.load %arg4[%c0_3, %c0_4] : memref<1x16xf32, #tpu.memory_space<vmem>>, vector<1x16xf32>
    %5 = vector.broadcast %4 : vector<1x16xf32> to vector<16x16xf32>
    %6 = arith.addf %3, %5 : vector<16x16xf32>
    %cst_5 = arith.constant dense<0xFF800000> : vector<16xf32>
    %7 = vector.multi_reduction <maximumf>, %6, %cst_5 [1] : vector<16x16xf32> to vector<16xf32>
    %8 = vector.shape_cast %7 : vector<16xf32> to vector<16x1xf32>
    %9 = vector.broadcast %8 : vector<16x1xf32> to vector<16x16xf32>
    %10 = arith.subf %6, %9 : vector<16x16xf32>
    %11 = math.exp %10 : vector<16x16xf32>
    %cst_6 = arith.constant dense<0.000000e+00> : vector<16xf32>
    %12 = vector.multi_reduction <add>, %11, %cst_6 [1] : vector<16x16xf32> to vector<16xf32>
    %13 = vector.shape_cast %12 : vector<16xf32> to vector<16x1xf32>
    %14 = math.log %13 : vector<16x1xf32>
    %15 = vector.broadcast %14 : vector<16x1xf32> to vector<16x16xf32>
    %16 = arith.subf %10, %15 : vector<16x16xf32>
    %c0_7 = arith.constant 0 : index
    %c0_8 = arith.constant 0 : index
    %17 = vector.load %arg5[%c0_7, %c0_8] : memref<16x16xf32, #tpu.memory_space<vmem>>, vector<16x16xf32>
    tpu.vector_store %arg5[%c0_7, %c0_8], %16 {strides = array<i32>} : memref<16x16xf32, #tpu.memory_space<vmem>>, vector<16x16xf32>,
    return
  }
  func.func @transform_0(%arg0: i32, %arg1: i32) -> (i32, i32) {
    %c0_i32 = arith.constant 0 : i32
    %c0_i32_0 = arith.constant 0 : i32
    return %arg0, %c0_i32 : i32, i32
  }
  func.func @transform_1(%arg0: i32, %arg1: i32) -> (i32, i32) {
    %c0_i32 = arith.constant 0 : i32
    %c0_i32_0 = arith.constant 0 : i32
    return %c0_i32, %arg1 : i32, i32
  }
  func.func @transform_2(%arg0: i32, %arg1: i32) -> (i32, i32) {
    %c0_i32 = arith.constant 0 : i32
    %c0_i32_0 = arith.constant 0 : i32
    return %c0_i32, %arg1 : i32, i32
  }
  func.func @transform_3(%arg0: i32, %arg1: i32) -> (i32, i32) {
    %c0_i32 = arith.constant 0 : i32
    return %arg0, %arg1 : i32, i32
  }
}

</mosaic_0001>

<llo_original>
// kernel: _lambda_.24
$region0: #{_lambda_.24}
  #allocation0 [shape = 'u32[]', space=smem, size = 0x4, offset = 0x4, fixed_abs, tag = 'smem constant byte address 0x4 - core index']
  #allocation1 [shape = 'u32[144,128]{1,0:T(1,128)}', space=vmem, size = 0x12000, scoped, tag = 'internal scratch']
  %s0 = inlined_call_operand.vmem [shape: f32[256,9], index: 0, kind: input, shape index: {}]
  %s1 = inlined_call_operand.vmem [shape: bf16[9,8], index: 1, kind: input, shape index: {}]
  %s2 = inlined_call_operand.vmem [shape: f32[1,8], index: 2, kind: input, shape index: {}]
  %s3 = inlined_call_operand.vmem [shape: f32[256,8], index: 3, kind: output, shape index: {}]
  %s4 = sld [smem:[#allocation0]]
  $region22: #{_lambda_.24} parent=0
    _
  %s6 = ssub.s32 1, %s4
  %s7 = scalar_select 0, %s6, %s4
  // Predicated region
  $region2: #{_lambda_.24} parent=0 // pred_check
    _
  $region3: #{_lambda_.24} parent=0 // pred_check_branch
    %9 = sbr.rel (0) target = $region5
  $region4: #{_lambda_.24} parent=0 // pred_region
    _
  $region5: #{_lambda_.24} parent=0 // pred_fallthru
    _
  // Predicated region
  $region6: #{_lambda_.24} parent=0 // pred_check
    _
  $region7: #{_lambda_.24} parent=0 // pred_check_branch
    %11 = sbr.rel (0) target = $region9
  $region8: #{_lambda_.24} parent=0 // pred_region
    _
  $region9: #{_lambda_.24} parent=0 // pred_fallthru
    _
  // Predicated region
  $region10: #{_lambda_.24} parent=0 // pred_check
    _
  $region11: #{_lambda_.24} parent=0 // pred_check_branch
    %13 = sbr.rel (0) target = $region13
  $region12: #{_lambda_.24} parent=0 // pred_region
    _
  $region13: #{_lambda_.24} parent=0 // pred_fallthru
    _
  %v15 = vld [vmem:[%s0] sm:$0xff]
  %v16 = vld [vmem:[%s0 + $0x8] sm:$0xff]
  %v17 = vld [vmem:[%s0 + $0x10] sm:$0xff]
  %v18 = vld [vmem:[%s0 + $0x18] sm:$0xff]
  %v19 = vld [vmem:[%s0 + $0x20] sm:$0xff]
  %v20 = vld [vmem:[%s0 + $0x28] sm:$0xff]
  %v21 = vld [vmem:[%s0 + $0x30] sm:$0xff]
  %v22 = vld [vmem:[%s0 + $0x38] sm:$0xff]
  %v23 = vld [vmem:[%s0 + $0x40] sm:$0xff]
  %v24 = vld [vmem:[%s0 + $0x48] sm:$0xff]
  %v25 = vld [vmem:[%s0 + $0x50] sm:$0xff]
  %v26 = vld [vmem:[%s0 + $0x58] sm:$0xff]
  %v27 = vld [vmem:[%s0 + $0x60] sm:$0xff]
  %v28 = vld [vmem:[%s0 + $0x68] sm:$0xff]
  %v29 = vld [vmem:[%s0 + $0x70] sm:$0xff]
  %v30 = vld [vmem:[%s0 + $0x78] sm:$0xff]
  %v31 = vld [vmem:[%s0 + $0x80] sm:$0xff]
  %v32 = vld [vmem:[%s0 + $0x88] sm:$0xff]
  %v33 = vld [vmem:[%s0 + $0x90] sm:$0xff]
  %v34 = vld [vmem:[%s0 + $0x98] sm:$0xff]
  %v35 = vld [vmem:[%s0 + $0xa0] sm:$0xff]
  %v36 = vld [vmem:[%s0 + $0xa8] sm:$0xff]
  %v37 = vld [vmem:[%s0 + $0xb0] sm:$0xff]
  %v38 = vld [vmem:[%s0 + $0xb8] sm:$0xff]
  %v39 = vld [vmem:[%s0 + $0xc0] sm:$0xff]
  %v40 = vld [vmem:[%s0 + $0xc8] sm:$0xff]
  %v41 = vld [vmem:[%s0 + $0xd0] sm:$0xff]
  %v42 = vld [vmem:[%s0 + $0xd8] sm:$0xff]
  %v43 = vld [vmem:[%s0 + $0xe0] sm:$0xff]
  %v44 = vld [vmem:[%s0 + $0xe8] sm:$0xff]
  %v45 = vld [vmem:[%s0 + $0xf0] sm:$0xff]
  %v46 = vld [vmem:[%s0 + $0xf8] sm:$0xff]
  %v47 = vpack.c.bf16 %v16, %v15
  %v48 = vpack.c.bf16 %v18, %v17
  %v49 = vpack.c.bf16 %v20, %v19
  %v50 = vpack.c.bf16 %v22, %v21
  %v51 = vpack.c.bf16 %v24, %v23
  %v52 = vpack.c.bf16 %v26, %v25
  %v53 = vpack.c.bf16 %v28, %v27
  %v54 = vpack.c.bf16 %v30, %v29
  %v55 = vpack.c.bf16 %v32, %v31
  %v56 = vpack.c.bf16 %v34, %v33
  %v57 = vpack.c.bf16 %v36, %v35
  %v58 = vpack.c.bf16 %v38, %v37
  %v59 = vpack.c.bf16 %v40, %v39
  %v60 = vpack.c.bf16 %v42, %v41
  %v61 = vpack.c.bf16 %v44, %v43
  %v62 = vpack.c.bf16 %v46, %v45
  %v63 = vld [vmem:[%s1] sm:$0xf]
  %v64 = vld [vmem:[%s1 + $0x4] sm:$0x1]
  %v65 = vld [vmem:[%s2] sm:$0x1]
  %v67 = vlaneseq
  %v68 = vshrl.u32 %v67, 7
  %v69 = vsub.s32 0, %v68
  %v70 = vrot.slane %v65, %v69
  %v74 = vunpack.c.l.b16 %v63
  %v75 = vunpack.c.l.b16 %v64
  %v76 = vpack.c.b16 %v75, %v74
  %vm77 = vcmask 72704
  %v79 = vsel %vm77, %v47, 0
  %v82 = vsel %vm77, %v48, 0
  %v85 = vsel %vm77, %v49, 0
  %v88 = vsel %vm77, %v50, 0
  %v91 = vsel %vm77, %v51, 0
  %v94 = vsel %vm77, %v52, 0
  %v97 = vsel %vm77, %v53, 0
  %v100 = vsel %vm77, %v54, 0
  %v103 = vsel %vm77, %v55, 0
  %v106 = vsel %vm77, %v56, 0
  %v109 = vsel %vm77, %v57, 0
  %v112 = vsel %vm77, %v58, 0
  %v115 = vsel %vm77, %v59, 0
  %v118 = vsel %vm77, %v60, 0
  %v121 = vsel %vm77, %v61, 0
  %v124 = vsel %vm77, %v62, 0
  %vm126 = vcmask 1043456
  %vm127 = vcmask 1044480
  %v128 = vsel %vm126, 4294967295, 65535
  %v129 = vsel %vm127, %v128, 0
  %v131 = vand.u32 %v76, %v129
  %133 = vmatprep.subr.bf16.mxu0 0
  %134 = vmatpush1.bf16.msra.mxu0 %v131
  %135 = vmatprep.subr.bf16.mxu0 0
  %136 = vmatpush1.bf16.msra.mxu0 0
  %137 = vmatprep.subr.bf16.mxu0 0
  %138 = vmatpush1.bf16.msra.mxu0 0
  %139 = vmatprep.subr.bf16.mxu0 0
  %140 = vmatpush1.bf16.msra.mxu0 0
  %141 = vmatprep.subr.bf16.mxu0 0
  %142 = vmatpush1.bf16.msra.mxu0 0
  %143 = vmatprep.subr.bf16.mxu0 0
  %144 = vmatpush1.bf16.msra.mxu0 0
  %145 = vmatprep.subr.bf16.mxu0 0
  %146 = vmatpush1.bf16.msra.mxu0 0
  %147 = vmatprep.subr.bf16.mxu0 0
  %148 = vmatpush1.bf16.msra.mxu0 0
  %149 = vmatprep.subr.bf16.mxu0 0
  %150 = vmatpush1.bf16.msra.mxu0 0
  %151 = vmatprep.subr.bf16.mxu0 0
  %152 = vmatpush1.bf16.msra.mxu0 0
  %153 = vmatprep.subr.bf16.mxu0 0
  %154 = vmatpush1.bf16.msra.mxu0 0
  %155 = vmatprep.subr.bf16.mxu0 0
  %156 = vmatpush1.bf16.msra.mxu0 0
  %157 = vmatprep.subr.bf16.mxu0 0
  %158 = vmatpush1.bf16.msra.mxu0 0
  %159 = vmatprep.subr.bf16.mxu0 0
  %160 = vmatpush1.bf16.msra.mxu0 0
  %161 = vmatprep.subr.bf16.mxu0 0
  %162 = vmatpush1.bf16.msra.mxu0 0
  %163 = vmatprep.subr.bf16.mxu0 0
  %164 = vmatpush1.bf16.msra.mxu0 0
  %165 = vmatprep.mubr.bf16.mxu0 0
  %166 = vmatmul.mubr.bf16.gmra.mrb[0].mxu0 %v79
  %v167 = vpop.f32.mrb[0].mxu0
  %v168 = vadd.f32 %v70, %v167
  %v169 = vpop.f32.mrb[0].mxu0
  %v170 = vpop.f32.mrb[0].mxu0
  %v171 = vadd.f32 %v70, %v170
  %v172 = vpop.f32.mrb[0].mxu0
  %173 = vmatprep.mubr.bf16.mxu0 0
  %174 = vmatmul.mubr.bf16.gmra.mrb[0].mxu0 %v82
  %v175 = vpop.f32.mrb[0].mxu0
  %v176 = vadd.f32 %v70, %v175
  %v177 = vpop.f32.mrb[0].mxu0
  %v178 = vpop.f32.mrb[0].mxu0
  %v179 = vadd.f32 %v70, %v178
  %v180 = vpop.f32.mrb[0].mxu0
  %181 = vmatprep.mubr.bf16.mxu0 0
  %182 = vmatmul.mubr.bf16.gmra.mrb[0].mxu0 %v85
  %v183 = vpop.f32.mrb[0].mxu0
  %v184 = vadd.f32 %v70, %v183
  %v185 = vpop.f32.mrb[0].mxu0
  %v186 = vpop.f32.mrb[0].mxu0
  %v187 = vadd.f32 %v70, %v186
  %v188 = vpop.f32.mrb[0].mxu0
  %189 = vmatprep.mubr.bf16.mxu0 0
  %190 = vmatmul.mubr.bf16.gmra.mrb[0].mxu0 %v88
  %v191 = vpop.f32.mrb[0].mxu0
  %v192 = vadd.f32 %v70, %v191
  %v193 = vpop.f32.mrb[0].mxu0
  %v194 = vpop.f32.mrb[0].mxu0
  %v195 = vadd.f32 %v70, %v194
  %v196 = vpop.f32.mrb[0].mxu0
  %197 = vmatprep.mubr.bf16.mxu0 0
  %198 = vmatmul.mubr.bf16.gmra.mrb[0].mxu0 %v91
  %v199 = vpop.f32.mrb[0].mxu0
  %v200 = vadd.f32 %v70, %v199
  %v201 = vpop.f32.mrb[0].mxu0
  %v202 = vpop.f32.mrb[0].mxu0
  %v203 = vadd.f32 %v70, %v202
  %v204 = vpop.f32.mrb[0].mxu0
  %205 = vmatprep.mubr.bf16.mxu0 0
  %206 = vmatmul.mubr.bf16.gmra.mrb[0].mxu0 %v94
  %v207 = vpop.f32.mrb[0].mxu0
  %v208 = vadd.f32 %v70, %v207
  %v209 = vpop.f32.mrb[0].mxu0
  %v210 = vpop.f32.mrb[0].mxu0
  %v211 = vadd.f32 %v70, %v210
  %v212 = vpop.f32.mrb[0].mxu0
  %213 = vmatprep.mubr.bf16.mxu0 0
  %214 = vmatmul.mubr.bf16.gmra.mrb[0].mxu0 %v97
  %v215 = vpop.f32.mrb[0].mxu0
  %v216 = vadd.f32 %v70, %v215
  %v217 = vpop.f32.mrb[0].mxu0
  %v218 = vpop.f32.mrb[0].mxu0
  %v219 = vadd.f32 %v70, %v218
  %v220 = vpop.f32.mrb[0].mxu0
  %221 = vmatprep.mubr.bf16.mxu0 0
  %222 = vmatmul.mubr.bf16.gmra.mrb[0].mxu0 %v100
  %v223 = vpop.f32.mrb[0].mxu0
  %v224 = vadd.f32 %v70, %v223
  %v225 = vpop.f32.mrb[0].mxu0
  %v226 = vpop.f32.mrb[0].mxu0
  %v227 = vadd.f32 %v70, %v226
  %v228 = vpop.f32.mrb[0].mxu0
  %229 = vmatprep.mubr.bf16.mxu0 0
  %230 = vmatmul.mubr.bf16.gmra.mrb[0].mxu0 %v103
  %v231 = vpop.f32.mrb[0].mxu0
  %v232 = vadd.f32 %v70, %v231
  %v233 = vpop.f32.mrb[0].mxu0
  %v234 = vpop.f32.mrb[0].mxu0
  %v235 = vadd.f32 %v70, %v234
  %v236 = vpop.f32.mrb[0].mxu0
  %237 = vmatprep.mubr.bf16.mxu0 0
  %238 = vmatmul.mubr.bf16.gmra.mrb[0].mxu0 %v106
  %v239 = vpop.f32.mrb[0].mxu0
  %v240 = vadd.f32 %v70, %v239
  %v241 = vpop.f32.mrb[0].mxu0
  %v242 = vpop.f32.mrb[0].mxu0
  %v243 = vadd.f32 %v70, %v242
  %v244 = vpop.f32.mrb[0].mxu0
  %245 = vmatprep.mubr.bf16.mxu0 0
  %246 = vmatmul.mubr.bf16.gmra.mrb[0].mxu0 %v109
  %v247 = vpop.f32.mrb[0].mxu0
  %v248 = vadd.f32 %v70, %v247
  %v249 = vpop.f32.mrb[0].mxu0
  %v250 = vpop.f32.mrb[0].mxu0
  %v251 = vadd.f32 %v70, %v250
  %v252 = vpop.f32.mrb[0].mxu0
  %253 = vmatprep.mubr.bf16.mxu0 0
  %254 = vmatmul.mubr.bf16.gmra.mrb[0].mxu0 %v112
  %v255 = vpop.f32.mrb[0].mxu0
  %v256 = vadd.f32 %v70, %v255
  %v257 = vpop.f32.mrb[0].mxu0
  %v258 = vpop.f32.mrb[0].mxu0
  %v259 = vadd.f32 %v70, %v258
  %v260 = vpop.f32.mrb[0].mxu0
  %261 = vmatprep.mubr.bf16.mxu0 0
  %262 = vmatmul.mubr.bf16.gmra.mrb[0].mxu0 %v115
  %v263 = vpop.f32.mrb[0].mxu0
  %v264 = vadd.f32 %v70, %v263
  %v265 = vpop.f32.mrb[0].mxu0
  %v266 = vpop.f32.mrb[0].mxu0
  %v267 = vadd.f32 %v70, %v266
  %v268 = vpop.f32.mrb[0].mxu0
  %269 = vmatprep.mubr.bf16.mxu0 0
  %270 = vmatmul.mubr.bf16.gmra.mrb[0].mxu0 %v118
  %v271 = vpop.f32.mrb[0].mxu0
  %v272 = vadd.f32 %v70, %v271
  %v273 = vpop.f32.mrb[0].mxu0
  %v274 = vpop.f32.mrb[0].mxu0
  %v275 = vadd.f32 %v70, %v274
  %v276 = vpop.f32.mrb[0].mxu0
  %277 = vmatprep.mubr.bf16.mxu0 0
  %278 = vmatmul.mubr.bf16.gmra.mrb[0].mxu0 %v121
  %v279 = vpop.f32.mrb[0].mxu0
  %v280 = vadd.f32 %v70, %v279
  %v281 = vpop.f32.mrb[0].mxu0
  %v282 = vpop.f32.mrb[0].mxu0
  %v283 = vadd.f32 %v70, %v282
  %v284 = vpop.f32.mrb[0].mxu0
  %285 = vmatprep.mubr.bf16.mxu0 0
  %286 = vmatmul.mubr.bf16.gmra.mrb[0].mxu0 %v124
  %v287 = vpop.f32.mrb[0].mxu0
  %v288 = vadd.f32 %v70, %v287
  %v289 = vpop.f32.mrb[0].mxu0
  %v290 = vpop.f32.mrb[0].mxu0
  %v291 = vadd.f32 %v70, %v290
  %v292 = vpop.f32.mrb[0].mxu0
  %293 = vdwg.mxu0
  %v294 = vmax.f32 %v168, 0.0
  %v295 = vmax.f32 %v171, 0.0
  %v296 = vmax.f32 %v176, 0.0
  %v297 = vmax.f32 %v179, 0.0
  %v298 = vmax.f32 %v184, 0.0
  %v299 = vmax.f32 %v187, 0.0
  %v300 = vmax.f32 %v192, 0.0
  %v301 = vmax.f32 %v195, 0.0
  %v302 = vmax.f32 %v200, 0.0
  %v303 = vmax.f32 %v203, 0.0
  %v304 = vmax.f32 %v208, 0.0
  %v305 = vmax.f32 %v211, 0.0
  %v306 = vmax.f32 %v216, 0.0
  %v307 = vmax.f32 %v219, 0.0
  %v308 = vmax.f32 %v224, 0.0
  %v309 = vmax.f32 %v227, 0.0
  %v310 = vmax.f32 %v232, 0.0
  %v311 = vmax.f32 %v235, 0.0
  %v312 = vmax.f32 %v240, 0.0
  %v313 = vmax.f32 %v243, 0.0
  %v314 = vmax.f32 %v248, 0.0
  %v315 = vmax.f32 %v251, 0.0
  %v316 = vmax.f32 %v256, 0.0
  %v317 = vmax.f32 %v259, 0.0
  %v318 = vmax.f32 %v264, 0.0
  %v319 = vmax.f32 %v267, 0.0
  %v320 = vmax.f32 %v272, 0.0
  %v321 = vmax.f32 %v275, 0.0
  %v322 = vmax.f32 %v280, 0.0
  %v323 = vmax.f32 %v283, 0.0
  %v324 = vmax.f32 %v288, 0.0
  %v325 = vmax.f32 %v291, 0.0
  %vm326 = vcmask 64512
  %327 = vst.msk [vmem:[%s3] sm:$0xff] %vm326, %v294
  %328 = vst.msk [vmem:[%s3 + $0x8] sm:$0xff] %vm326, %v295
  %329 = vst.msk [vmem:[%s3 + $0x10] sm:$0xff] %vm326, %v296
  %330 = vst.msk [vmem:[%s3 + $0x18] sm:$0xff] %vm326, %v297
  %331 = vst.msk [vmem:[%s3 + $0x20] sm:$0xff] %vm326, %v298
  %332 = vst.msk [vmem:[%s3 + $0x28] sm:$0xff] %vm326, %v299
  %333 = vst.msk [vmem:[%s3 + $0x30] sm:$0xff] %vm326, %v300
  %334 = vst.msk [vmem:[%s3 + $0x38] sm:$0xff] %vm326, %v301
  %335 = vst.msk [vmem:[%s3 + $0x40] sm:$0xff] %vm326, %v302
  %336 = vst.msk [vmem:[%s3 + $0x48] sm:$0xff] %vm326, %v303
  %337 = vst.msk [vmem:[%s3 + $0x50] sm:$0xff] %vm326, %v304
  %338 = vst.msk [vmem:[%s3 + $0x58] sm:$0xff] %vm326, %v305
  %339 = vst.msk [vmem:[%s3 + $0x60] sm:$0xff] %vm326, %v306
  %340 = vst.msk [vmem:[%s3 + $0x68] sm:$0xff] %vm326, %v307
  %341 = vst.msk [vmem:[%s3 + $0x70] sm:$0xff] %vm326, %v308
  %342 = vst.msk [vmem:[%s3 + $0x78] sm:$0xff] %vm326, %v309
  %343 = vst.msk [vmem:[%s3 + $0x80] sm:$0xff] %vm326, %v310
  %344 = vst.msk [vmem:[%s3 + $0x88] sm:$0xff] %vm326, %v311
  %345 = vst.msk [vmem:[%s3 + $0x90] sm:$0xff] %vm326, %v312
  %346 = vst.msk [vmem:[%s3 + $0x98] sm:$0xff] %vm326, %v313
  %347 = vst.msk [vmem:[%s3 + $0xa0] sm:$0xff] %vm326, %v314
  %348 = vst.msk [vmem:[%s3 + $0xa8] sm:$0xff] %vm326, %v315
  %349 = vst.msk [vmem:[%s3 + $0xb0] sm:$0xff] %vm326, %v316
  %350 = vst.msk [vmem:[%s3 + $0xb8] sm:$0xff] %vm326, %v317
  %351 = vst.msk [vmem:[%s3 + $0xc0] sm:$0xff] %vm326, %v318
  %352 = vst.msk [vmem:[%s3 + $0xc8] sm:$0xff] %vm326, %v319
  %353 = vst.msk [vmem:[%s3 + $0xd0] sm:$0xff] %vm326, %v320
  %354 = vst.msk [vmem:[%s3 + $0xd8] sm:$0xff] %vm326, %v321
  %355 = vst.msk [vmem:[%s3 + $0xe0] sm:$0xff] %vm326, %v322
  %356 = vst.msk [vmem:[%s3 + $0xe8] sm:$0xff] %vm326, %v323
  %357 = vst.msk [vmem:[%s3 + $0xf0] sm:$0xff] %vm326, %v324
  %358 = vst.msk [vmem:[%s3 + $0xf8] sm:$0xff] %vm326, %v325
  // Predicated region
  $region14: #{_lambda_.24} parent=0 // pred_check
    _
  $region15: #{_lambda_.24} parent=0 // pred_check_branch
    %360 = sbr.rel (0) target = $region17
  $region16: #{_lambda_.24} parent=0 // pred_region
    _
  $region17: #{_lambda_.24} parent=0 // pred_fallthru
    _
  // Predicated region
  $region18: #{_lambda_.24} parent=0 // pred_check
    _
  $region19: #{_lambda_.24} parent=0 // pred_check_branch
    %362 = sbr.rel (0) target = $region21
  $region20: #{_lambda_.24} parent=0 // pred_region
    _
  $region21: #{_lambda_.24} parent=0 // pred_fallthru
    _

// kernel: _lambda_.25
$region0: #{_lambda_.25}
  #allocation0 [shape = 'u32[]', space=smem, size = 0x4, offset = 0x4, fixed_abs, tag = 'smem constant byte address 0x4 - core index']
  #allocation1 [shape = 'u32[144,128]{1,0:T(1,128)}', space=vmem, size = 0x12000, scoped, tag = 'internal scratch']
  %s0 = inlined_call_operand.vmem [shape: f32[64,72], index: 0, kind: input, shape index: {}]
  %s1 = inlined_call_operand.vmem [shape: bf16[72,8], index: 1, kind: input, shape index: {}]
  %s2 = inlined_call_operand.vmem [shape: f32[1,8], index: 2, kind: input, shape index: {}]
  %s3 = inlined_call_operand.vmem [shape: f32[64,8], index: 3, kind: output, shape index: {}]
  %s4 = sld [smem:[#allocation0]]
  $region22: #{_lambda_.25} parent=0
    _
  %s6 = ssub.s32 1, %s4
  %s7 = scalar_select 0, %s6, %s4
  // Predicated region
  $region2: #{_lambda_.25} parent=0 // pred_check
    _
  $region3: #{_lambda_.25} parent=0 // pred_check_branch
    %9 = sbr.rel (0) target = $region5
  $region4: #{_lambda_.25} parent=0 // pred_region
    _
  $region5: #{_lambda_.25} parent=0 // pred_fallthru
    _
  // Predicated region
  $region6: #{_lambda_.25} parent=0 // pred_check
    _
  $region7: #{_lambda_.25} parent=0 // pred_check_branch
    %11 = sbr.rel (0) target = $region9
  $region8: #{_lambda_.25} parent=0 // pred_region
    _
  $region9: #{_lambda_.25} parent=0 // pred_fallthru
    _
  // Predicated region
  $region10: #{_lambda_.25} parent=0 // pred_check
    _
  $region11: #{_lambda_.25} parent=0 // pred_check_branch
    %13 = sbr.rel (0) target = $region13
  $region12: #{_lambda_.25} parent=0 // pred_region
    _
  $region13: #{_lambda_.25} parent=0 // pred_fallthru
    _
  %v15 = vld [vmem:[%s0] sm:$0xff]
  %v16 = vld [vmem:[%s0 + $0x8] sm:$0xff]
  %v17 = vld [vmem:[%s0 + $0x10] sm:$0xff]
  %v18 = vld [vmem:[%s0 + $0x18] sm:$0xff]
  %v19 = vld [vmem:[%s0 + $0x20] sm:$0xff]
  %v20 = vld [vmem:[%s0 + $0x28] sm:$0xff]
  %v21 = vld [vmem:[%s0 + $0x30] sm:$0xff]
  %v22 = vld [vmem:[%s0 + $0x38] sm:$0xff]
  %v23 = vpack.c.bf16 %v16, %v15
  %v24 = vpack.c.bf16 %v18, %v17
  %v25 = vpack.c.bf16 %v20, %v19
  %v26 = vpack.c.bf16 %v22, %v21
  %v27 = vld [vmem:[%s1] sm:$0xf]
  %v28 = vld [vmem:[%s1 + $0x4] sm:$0xf]
  %v29 = vld [vmem:[%s1 + $0x8] sm:$0xf]
  %v30 = vld [vmem:[%s1 + $0xc] sm:$0xf]
  %v31 = vld [vmem:[%s1 + $0x10] sm:$0xf]
  %v32 = vld [vmem:[%s1 + $0x14] sm:$0xf]
  %v33 = vld [vmem:[%s1 + $0x18] sm:$0xf]
  %v34 = vld [vmem:[%s1 + $0x1c] sm:$0xf]
  %v35 = vld [vmem:[%s1 + $0x20] sm:$0xf]
  %v36 = vld [vmem:[%s2] sm:$0x1]
  %v38 = vlaneseq
  %v39 = vshrl.u32 %v38, 7
  %v40 = vsub.s32 0, %v39
  %v41 = vrot.slane %v36, %v40
  %v52 = vunpack.c.l.b16 %v27
  %v53 = vunpack.c.l.b16 %v28
  %v54 = vunpack.c.l.b16 %v29
  %v55 = vunpack.c.l.b16 %v30
  %v56 = vunpack.c.l.b16 %v31
  %v57 = vunpack.c.l.b16 %v32
  %v58 = vunpack.c.l.b16 %v33
  %v59 = vunpack.c.l.b16 %v34
  %v60 = vunpack.c.l.b16 %v35
  %v61 = vpack.c.b16 %v53, %v52
  %v62 = vpack.c.b16 %v55, %v54
  %v63 = vpack.c.b16 %v57, %v56
  %v64 = vpack.c.b16 %v59, %v58
  %v65 = vpack.c.b16 %v60, %v60
  %vm70 = vcmask 588800
  %v72 = vsel %vm70, %v23, 0
  %v75 = vsel %vm70, %v24, 0
  %v78 = vsel %vm70, %v25, 0
  %v81 = vsel %vm70, %v26, 0
  %vm83 = vcmask 1043456
  %v85 = vsel %vm83, %v65, 0
  %87 = vmatprep.subr.bf16.mxu0 0
  %88 = vmatpush1.bf16.msra.mxu0 %v61
  %89 = vmatprep.subr.bf16.mxu0 0
  %90 = vmatpush1.bf16.msra.mxu0 %v62
  %91 = vmatprep.subr.bf16.mxu0 0
  %92 = vmatpush1.bf16.msra.mxu0 %v63
  %93 = vmatprep.subr.bf16.mxu0 0
  %94 = vmatpush1.bf16.msra.mxu0 %v64
  %95 = vmatprep.subr.bf16.mxu0 0
  %96 = vmatpush1.bf16.msra.mxu0 %v85
  %97 = vmatprep.subr.bf16.mxu0 0
  %98 = vmatpush1.bf16.msra.mxu0 0
  %99 = vmatprep.subr.bf16.mxu0 0
  %100 = vmatpush1.bf16.msra.mxu0 0
  %101 = vmatprep.subr.bf16.mxu0 0
  %102 = vmatpush1.bf16.msra.mxu0 0
  %103 = vmatprep.subr.bf16.mxu0 0
  %104 = vmatpush1.bf16.msra.mxu0 0
  %105 = vmatprep.subr.bf16.mxu0 0
  %106 = vmatpush1.bf16.msra.mxu0 0
  %107 = vmatprep.subr.bf16.mxu0 0
  %108 = vmatpush1.bf16.msra.mxu0 0
  %109 = vmatprep.subr.bf16.mxu0 0
  %110 = vmatpush1.bf16.msra.mxu0 0
  %111 = vmatprep.subr.bf16.mxu0 0
  %112 = vmatpush1.bf16.msra.mxu0 0
  %113 = vmatprep.subr.bf16.mxu0 0
  %114 = vmatpush1.bf16.msra.mxu0 0
  %115 = vmatprep.subr.bf16.mxu0 0
  %116 = vmatpush1.bf16.msra.mxu0 0
  %117 = vmatprep.subr.bf16.mxu0 0
  %118 = vmatpush1.bf16.msra.mxu0 0
  %119 = vmatprep.mubr.bf16.mxu0 0
  %120 = vmatmul.mubr.bf16.gmra.mrb[0].mxu0 %v72
  %v121 = vpop.f32.mrb[0].mxu0
  %v122 = vadd.f32 %v41, %v121
  %v123 = vpop.f32.mrb[0].mxu0
  %v124 = vpop.f32.mrb[0].mxu0
  %v125 = vadd.f32 %v41, %v124
  %v126 = vpop.f32.mrb[0].mxu0
  %127 = vmatprep.mubr.bf16.mxu0 0
  %128 = vmatmul.mubr.bf16.gmra.mrb[0].mxu0 %v75
  %v129 = vpop.f32.mrb[0].mxu0
  %v130 = vadd.f32 %v41, %v129
  %v131 = vpop.f32.mrb[0].mxu0
  %v132 = vpop.f32.mrb[0].mxu0
  %v133 = vadd.f32 %v41, %v132
  %v134 = vpop.f32.mrb[0].mxu0
  %135 = vmatprep.mubr.bf16.mxu0 0
  %136 = vmatmul.mubr.bf16.gmra.mrb[0].mxu0 %v78
  %v137 = vpop.f32.mrb[0].mxu0
  %v138 = vadd.f32 %v41, %v137
  %v139 = vpop.f32.mrb[0].mxu0
  %v140 = vpop.f32.mrb[0].mxu0
  %v141 = vadd.f32 %v41, %v140
  %v142 = vpop.f32.mrb[0].mxu0
  %143 = vmatprep.mubr.bf16.mxu0 0
  %144 = vmatmul.mubr.bf16.gmra.mrb[0].mxu0 %v81
  %v145 = vpop.f32.mrb[0].mxu0
  %v146 = vadd.f32 %v41, %v145
  %v147 = vpop.f32.mrb[0].mxu0
  %v148 = vpop.f32.mrb[0].mxu0
  %v149 = vadd.f32 %v41, %v148
  %v150 = vpop.f32.mrb[0].mxu0
  %151 = vdwg.mxu0
  %v152 = vmax.f32 %v122, 0.0
  %v153 = vmax.f32 %v125, 0.0
  %v154 = vmax.f32 %v130, 0.0
  %v155 = vmax.f32 %v133, 0.0
  %v156 = vmax.f32 %v138, 0.0
  %v157 = vmax.f32 %v141, 0.0
  %v158 = vmax.f32 %v146, 0.0
  %v159 = vmax.f32 %v149, 0.0
  %vm160 = vcmask 64512
  %161 = vst.msk [vmem:[%s3] sm:$0xff] %vm160, %v152
  %162 = vst.msk [vmem:[%s3 + $0x8] sm:$0xff] %vm160, %v153
  %163 = vst.msk [vmem:[%s3 + $0x10] sm:$0xff] %vm160, %v154
  %164 = vst.msk [vmem:[%s3 + $0x18] sm:$0xff] %vm160, %v155
  %165 = vst.msk [vmem:[%s3 + $0x20] sm:$0xff] %vm160, %v156
  %166 = vst.msk [vmem:[%s3 + $0x28] sm:$0xff] %vm160, %v157
  %167 = vst.msk [vmem:[%s3 + $0x30] sm:$0xff] %vm160, %v158
  %168 = vst.msk [vmem:[%s3 + $0x38] sm:$0xff] %vm160, %v159
  // Predicated region
  $region14: #{_lambda_.25} parent=0 // pred_check
    _
  $region15: #{_lambda_.25} parent=0 // pred_check_branch
    %170 = sbr.rel (0) target = $region17
  $region16: #{_lambda_.25} parent=0 // pred_region
    _
  $region17: #{_lambda_.25} parent=0 // pred_fallthru
    _
  // Predicated region
  $region18: #{_lambda_.25} parent=0 // pred_check
    _
  $region19: #{_lambda_.25} parent=0 // pred_check_branch
    %172 = sbr.rel (0) target = $region21
  $region20: #{_lambda_.25} parent=0 // pred_region
    _
  $region21: #{_lambda_.25} parent=0 // pred_fallthru
    _

// kernel: _lambda_.26
$region0: #{_lambda_.26}
  #allocation0 [shape = 'u32[]', space=smem, size = 0x4, offset = 0x4, fixed_abs, tag = 'smem constant byte address 0x4 - core index']
  #allocation1 [shape = 'u32[144,128]{1,0:T(1,128)}', space=vmem, size = 0x12000, scoped, tag = 'internal scratch']
  %s0 = inlined_call_operand.vmem [shape: f32[16,32], index: 0, kind: input, shape index: {}]
  %s1 = inlined_call_operand.vmem [shape: bf16[32,32], index: 1, kind: input, shape index: {}]
  %s2 = inlined_call_operand.vmem [shape: f32[1,32], index: 2, kind: input, shape index: {}]
  %s3 = inlined_call_operand.vmem [shape: f32[16,32], index: 3, kind: output, shape index: {}]
  %s4 = sld [smem:[#allocation0]]
  $region22: #{_lambda_.26} parent=0
    _
  %s6 = ssub.s32 1, %s4
  %s7 = scalar_select 0, %s6, %s4
  // Predicated region
  $region2: #{_lambda_.26} parent=0 // pred_check
    _
  $region3: #{_lambda_.26} parent=0 // pred_check_branch
    %9 = sbr.rel (0) target = $region5
  $region4: #{_lambda_.26} parent=0 // pred_region
    _
  $region5: #{_lambda_.26} parent=0 // pred_fallthru
    _
  // Predicated region
  $region6: #{_lambda_.26} parent=0 // pred_check
    _
  $region7: #{_lambda_.26} parent=0 // pred_check_branch
    %11 = sbr.rel (0) target = $region9
  $region8: #{_lambda_.26} parent=0 // pred_region
    _
  $region9: #{_lambda_.26} parent=0 // pred_fallthru
    _
  // Predicated region
  $region10: #{_lambda_.26} parent=0 // pred_check
    _
  $region11: #{_lambda_.26} parent=0 // pred_check_branch
    %13 = sbr.rel (0) target = $region13
  $region12: #{_lambda_.26} parent=0 // pred_region
    _
  $region13: #{_lambda_.26} parent=0 // pred_fallthru
    _
  %v15 = vld [vmem:[%s0] sm:$0xff]
  %v16 = vld [vmem:[%s0 + $0x8] sm:$0xff]
  %v17 = vpack.c.bf16 %v16, %v15
  %v18 = vld [vmem:[%s1] sm:$0xf]
  %v19 = vld [vmem:[%s1 + $0x4] sm:$0xf]
  %v20 = vld [vmem:[%s1 + $0x8] sm:$0xf]
  %v21 = vld [vmem:[%s1 + $0xc] sm:$0xf]
  %v22 = vld [vmem:[%s2] sm:$0x1]
  %v24 = vlaneseq
  %v25 = vshrl.u32 %v24, 7
  %v26 = vsub.s32 0, %v25
  %v27 = vrot.slane %v22, %v26
  %v33 = vunpack.c.l.b16 %v18
  %v34 = vunpack.c.l.b16 %v19
  %v35 = vunpack.c.l.b16 %v20
  %v36 = vunpack.c.l.b16 %v21
  %v37 = vpack.c.b16 %v34, %v33
  %v38 = vpack.c.b16 %v36, %v35
  %vm41 = vcmask 261120
  %v43 = vsel %vm41, %v17, 0
  %45 = vmatprep.subr.bf16.mxu0 0
  %46 = vmatpush1.bf16.msra.mxu0 %v37
  %47 = vmatprep.subr.bf16.mxu0 0
  %48 = vmatpush1.bf16.msra.mxu0 %v38
  %49 = vmatprep.subr.bf16.mxu0 0
  %50 = vmatpush1.bf16.msra.mxu0 0
  %51 = vmatprep.subr.bf16.mxu0 0
  %52 = vmatpush1.bf16.msra.mxu0 0
  %53 = vmatprep.subr.bf16.mxu0 0
  %54 = vmatpush1.bf16.msra.mxu0 0
  %55 = vmatprep.subr.bf16.mxu0 0
  %56 = vmatpush1.bf16.msra.mxu0 0
  %57 = vmatprep.subr.bf16.mxu0 0
  %58 = vmatpush1.bf16.msra.mxu0 0
  %59 = vmatprep.subr.bf16.mxu0 0
  %60 = vmatpush1.bf16.msra.mxu0 0
  %61 = vmatprep.subr.bf16.mxu0 0
  %62 = vmatpush1.bf16.msra.mxu0 0
  %63 = vmatprep.subr.bf16.mxu0 0
  %64 = vmatpush1.bf16.msra.mxu0 0
  %65 = vmatprep.subr.bf16.mxu0 0
  %66 = vmatpush1.bf16.msra.mxu0 0
  %67 = vmatprep.subr.bf16.mxu0 0
  %68 = vmatpush1.bf16.msra.mxu0 0
  %69 = vmatprep.subr.bf16.mxu0 0
  %70 = vmatpush1.bf16.msra.mxu0 0
  %71 = vmatprep.subr.bf16.mxu0 0
  %72 = vmatpush1.bf16.msra.mxu0 0
  %73 = vmatprep.subr.bf16.mxu0 0
  %74 = vmatpush1.bf16.msra.mxu0 0
  %75 = vmatprep.subr.bf16.mxu0 0
  %76 = vmatpush1.bf16.msra.mxu0 0
  %77 = vmatprep.mubr.bf16.mxu0 0
  %78 = vmatmul.mubr.bf16.gmra.mrb[0].mxu0 %v43
  %v79 = vpop.f32.mrb[0].mxu0
  %v80 = vadd.f32 %v27, %v79
  %v81 = vpop.f32.mrb[0].mxu0
  %v82 = vpop.f32.mrb[0].mxu0
  %v83 = vadd.f32 %v27, %v82
  %v84 = vpop.f32.mrb[0].mxu0
  %85 = vdwg.mxu0
  %86 = vst.msk [vmem:[%s3] sm:$0xff] %vm41, %v80
  %87 = vst.msk [vmem:[%s3 + $0x8] sm:$0xff] %vm41, %v83
  // Predicated region
  $region14: #{_lambda_.26} parent=0 // pred_check
    _
  $region15: #{_lambda_.26} parent=0 // pred_check_branch
    %89 = sbr.rel (0) target = $region17
  $region16: #{_lambda_.26} parent=0 // pred_region
    _
  $region17: #{_lambda_.26} parent=0 // pred_fallthru
    _
  // Predicated region
  $region18: #{_lambda_.26} parent=0 // pred_check
    _
  $region19: #{_lambda_.26} parent=0 // pred_check_branch
    %91 = sbr.rel (0) target = $region21
  $region20: #{_lambda_.26} parent=0 // pred_region
    _
  $region21: #{_lambda_.26} parent=0 // pred_fallthru
    _

// kernel: _lambda_.27
$region0: #{_lambda_.27}
  #allocation0 [shape = 'u32[]', space=smem, size = 0x4, offset = 0x4, fixed_abs, tag = 'smem constant byte address 0x4 - core index']
  #allocation1 [shape = 'u32[144,128]{1,0:T(1,128)}', space=vmem, size = 0x12000, scoped, tag = 'internal scratch']
  %s0 = inlined_call_operand.vmem [shape: f32[16,32], index: 0, kind: input, shape index: {}]
  %s1 = inlined_call_operand.vmem [shape: bf16[32,128], index: 1, kind: input, shape index: {}]
  %s2 = inlined_call_operand.vmem [shape: f32[1,128], index: 2, kind: input, shape index: {}]
  %s3 = inlined_call_operand.vmem [shape: f32[1,32], index: 3, kind: input, shape index: {}]
  %s4 = inlined_call_operand.vmem [shape: f32[1,32], index: 4, kind: input, shape index: {}]
  %s5 = inlined_call_operand.vmem [shape: f32[16,128], index: 5, kind: output, shape index: {}]
  %s6 = sld [smem:[#allocation0]]
  $region30: #{_lambda_.27} parent=0
    _
  %s8 = ssub.s32 1, %s6
  %s9 = scalar_select 0, %s8, %s6
  // Predicated region
  $region2: #{_lambda_.27} parent=0 // pred_check
    _
  $region3: #{_lambda_.27} parent=0 // pred_check_branch
    %11 = sbr.rel (0) target = $region5
  $region4: #{_lambda_.27} parent=0 // pred_region
    _
  $region5: #{_lambda_.27} parent=0 // pred_fallthru
    _
  // Predicated region
  $region6: #{_lambda_.27} parent=0 // pred_check
    _
  $region7: #{_lambda_.27} parent=0 // pred_check_branch
    %13 = sbr.rel (0) target = $region9
  $region8: #{_lambda_.27} parent=0 // pred_region
    _
  $region9: #{_lambda_.27} parent=0 // pred_fallthru
    _
  // Predicated region
  $region10: #{_lambda_.27} parent=0 // pred_check
    _
  $region11: #{_lambda_.27} parent=0 // pred_check_branch
    %15 = sbr.rel (0) target = $region13
  $region12: #{_lambda_.27} parent=0 // pred_region
    _
  $region13: #{_lambda_.27} parent=0 // pred_fallthru
    _
  // Predicated region
  $region14: #{_lambda_.27} parent=0 // pred_check
    _
  $region15: #{_lambda_.27} parent=0 // pred_check_branch
    %17 = sbr.rel (0) target = $region17
  $region16: #{_lambda_.27} parent=0 // pred_region
    _
  $region17: #{_lambda_.27} parent=0 // pred_fallthru
    _
  // Predicated region
  $region18: #{_lambda_.27} parent=0 // pred_check
    _
  $region19: #{_lambda_.27} parent=0 // pred_check_branch
    %19 = sbr.rel (0) target = $region21
  $region20: #{_lambda_.27} parent=0 // pred_region
    _
  $region21: #{_lambda_.27} parent=0 // pred_fallthru
    _
  %v21 = vld [vmem:[%s0] sm:$0xff]
  %v22 = vld [vmem:[%s0 + $0x8] sm:$0xff]
  %vm23 = vcmask 261120
  %v24 = vsel %vm23, %v21, 0.0
  %25 = vadd.xlane.f32.xlu0 %v24
  %v26 = vpop.xlane.xlu0 %25
  %v27 = vsel %vm23, %v22, 0.0
  %28 = vadd.xlane.f32.xlu0 %v27
  %v29 = vpop.xlane.xlu0 %28
  %v30 = vrcp.pop 32.0
  %v31 = vmul.f32 %v26, %v30
  %v32 = vmul.f32 %v29, %v30
  %v33 = vsub.f32 %v21, %v31
  %v34 = vsub.f32 %v22, %v32
  %v35 = vmul.f32 %v33, %v33
  %v36 = vmul.f32 %v34, %v34
  %v37 = vsel %vm23, %v35, 0.0
  %38 = vadd.xlane.f32.xlu0 %v37
  %v39 = vpop.xlane.xlu0 %38
  %v40 = vsel %vm23, %v36, 0.0
  %41 = vadd.xlane.f32.xlu0 %v40
  %v42 = vpop.xlane.xlu0 %41
  %v43 = vmul.f32 %v39, %v30
  %v44 = vmul.f32 %v42, %v30
  %v45 = vadd.f32 %v43, 1e-05
  %v46 = vadd.f32 %v44, 1e-05
  %v47 = vrsqrt.pop %v45
  %v48 = vrsqrt.pop %v46
  %v49 = vmul.f32 %v33, %v47
  %v50 = vmul.f32 %v34, %v48
  %v51 = vld [vmem:[%s3] sm:$0x1]
  %v53 = vlaneseq
  %v54 = vshrl.u32 %v53, 7
  %v55 = vsub.s32 0, %v54
  %v56 = vrot.slane %v51, %v55
  %v58 = vmul.f32 %v49, %v56
  %v59 = vmul.f32 %v50, %v56
  %v60 = vld [vmem:[%s4] sm:$0x1]
  %v62 = vlaneseq
  %v63 = vshrl.u32 %v62, 7
  %v64 = vsub.s32 0, %v63
  %v65 = vrot.slane %v60, %v64
  %v67 = vadd.f32 %v58, %v65
  %v68 = vadd.f32 %v59, %v65
  %v69 = vpack.c.bf16 %v68, %v67
  %v70 = vld [vmem:[%s1] sm:$0xf]
  %v71 = vld [vmem:[%s1 + $0x4] sm:$0xf]
  %v72 = vld [vmem:[%s1 + $0x8] sm:$0xf]
  %v73 = vld [vmem:[%s1 + $0xc] sm:$0xf]
  %v74 = vld [vmem:[%s2] sm:$0x1]
  %v76 = vlaneseq
  %v77 = vshrl.u32 %v76, 7
  %v78 = vsub.s32 0, %v77
  %v79 = vrot.slane %v74, %v78
  %v85 = vunpack.c.l.b16 %v70
  %v86 = vunpack.c.l.b16 %v71
  %v87 = vunpack.c.l.b16 %v72
  %v88 = vunpack.c.l.b16 %v73
  %v89 = vpack.c.b16 %v86, %v85
  %v90 = vpack.c.b16 %v88, %v87
  %v94 = vsel %vm23, %v69, 0
  %96 = vmatprep.subr.bf16.mxu0 0
  %97 = vmatpush1.bf16.msra.mxu0 %v89
  %98 = vmatprep.subr.bf16.mxu0 0
  %99 = vmatpush1.bf16.msra.mxu0 %v90
  %100 = vmatprep.subr.bf16.mxu0 0
  %101 = vmatpush1.bf16.msra.mxu0 0
  %102 = vmatprep.subr.bf16.mxu0 0
  %103 = vmatpush1.bf16.msra.mxu0 0
  %104 = vmatprep.subr.bf16.mxu0 0
  %105 = vmatpush1.bf16.msra.mxu0 0
  %106 = vmatprep.subr.bf16.mxu0 0
  %107 = vmatpush1.bf16.msra.mxu0 0
  %108 = vmatprep.subr.bf16.mxu0 0
  %109 = vmatpush1.bf16.msra.mxu0 0
  %110 = vmatprep.subr.bf16.mxu0 0
  %111 = vmatpush1.bf16.msra.mxu0 0
  %112 = vmatprep.subr.bf16.mxu0 0
  %113 = vmatpush1.bf16.msra.mxu0 0
  %114 = vmatprep.subr.bf16.mxu0 0
  %115 = vmatpush1.bf16.msra.mxu0 0
  %116 = vmatprep.subr.bf16.mxu0 0
  %117 = vmatpush1.bf16.msra.mxu0 0
  %118 = vmatprep.subr.bf16.mxu0 0
  %119 = vmatpush1.bf16.msra.mxu0 0
  %120 = vmatprep.subr.bf16.mxu0 0
  %121 = vmatpush1.bf16.msra.mxu0 0
  %122 = vmatprep.subr.bf16.mxu0 0
  %123 = vmatpush1.bf16.msra.mxu0 0
  %124 = vmatprep.subr.bf16.mxu0 0
  %125 = vmatpush1.bf16.msra.mxu0 0
  %126 = vmatprep.subr.bf16.mxu0 0
  %127 = vmatpush1.bf16.msra.mxu0 0
  %128 = vmatprep.mubr.bf16.mxu0 0
  %129 = vmatmul.mubr.bf16.gmra.mrb[0].mxu0 %v94
  %v130 = vpop.f32.mrb[0].mxu0
  %v131 = vadd.f32 %v79, %v130
  %v132 = vpop.f32.mrb[0].mxu0
  %v133 = vpop.f32.mrb[0].mxu0
  %v134 = vadd.f32 %v79, %v133
  %v135 = vpop.f32.mrb[0].mxu0
  %136 = vdwg.mxu0
  %v137 = vxor.u32 %v131, 2147483648
  %v138 = vxor.u32 %v134, 2147483648
  %v139 = vmul.f32 %v137, 1.442695
  %v140 = vpow.pop %v139
  %v141 = vmul.f32 %v138, 1.442695
  %v142 = vpow.pop %v141
  %v143 = vadd.f32 %v140, 1.0
  %v144 = vadd.f32 %v142, 1.0
  %v145 = vrcp.pop %v143
  %v146 = vmul.f32 1.0, %v145
  %v147 = vrcp.pop %v144
  %v148 = vmul.f32 1.0, %v147
  %v149 = vmul.f32 %v131, %v146
  %v150 = vmul.f32 %v134, %v148
  %151 = vst [vmem:[%s5] sm:$0xff] %v149
  %152 = vst [vmem:[%s5 + $0x8] sm:$0xff] %v150
  // Predicated region
  $region22: #{_lambda_.27} parent=0 // pred_check
    _
  $region23: #{_lambda_.27} parent=0 // pred_check_branch
    %154 = sbr.rel (0) target = $region25
  $region24: #{_lambda_.27} parent=0 // pred_region
    _
  $region25: #{_lambda_.27} parent=0 // pred_fallthru
    _
  // Predicated region
  $region26: #{_lambda_.27} parent=0 // pred_check
    _
  $region27: #{_lambda_.27} parent=0 // pred_check_branch
    %156 = sbr.rel (0) target = $region29
  $region28: #{_lambda_.27} parent=0 // pred_region
    _
  $region29: #{_lambda_.27} parent=0 // pred_fallthru
    _

// kernel: _lambda_.28
$region0: #{_lambda_.28}
  #allocation0 [shape = 'u32[]', space=smem, size = 0x4, offset = 0x4, fixed_abs, tag = 'smem constant byte address 0x4 - core index']
  #allocation1 [shape = 'u32[144,128]{1,0:T(1,128)}', space=vmem, size = 0x12000, scoped, tag = 'internal scratch']
  %s0 = inlined_call_operand.vmem [shape: f32[16,128], index: 0, kind: input, shape index: {}]
  %s1 = inlined_call_operand.vmem [shape: bf16[128,32], index: 1, kind: input, shape index: {}]
  %s2 = inlined_call_operand.vmem [shape: f32[1,32], index: 2, kind: input, shape index: {}]
  %s3 = inlined_call_operand.vmem [shape: f32[16,32], index: 3, kind: input, shape index: {}]
  %s4 = inlined_call_operand.vmem [shape: f32[16,32], index: 4, kind: output, shape index: {}]
  %s5 = sld [smem:[#allocation0]]
  $region26: #{_lambda_.28} parent=0
    _
  %s7 = ssub.s32 1, %s5
  %s8 = scalar_select 0, %s7, %s5
  // Predicated region
  $region2: #{_lambda_.28} parent=0 // pred_check
    _
  $region3: #{_lambda_.28} parent=0 // pred_check_branch
    %10 = sbr.rel (0) target = $region5
  $region4: #{_lambda_.28} parent=0 // pred_region
    _
  $region5: #{_lambda_.28} parent=0 // pred_fallthru
    _
  // Predicated region
  $region6: #{_lambda_.28} parent=0 // pred_check
    _
  $region7: #{_lambda_.28} parent=0 // pred_check_branch
    %12 = sbr.rel (0) target = $region9
  $region8: #{_lambda_.28} parent=0 // pred_region
    _
  $region9: #{_lambda_.28} parent=0 // pred_fallthru
    _
  // Predicated region
  $region10: #{_lambda_.28} parent=0 // pred_check
    _
  $region11: #{_lambda_.28} parent=0 // pred_check_branch
    %14 = sbr.rel (0) target = $region13
  $region12: #{_lambda_.28} parent=0 // pred_region
    _
  $region13: #{_lambda_.28} parent=0 // pred_fallthru
    _
  // Predicated region
  $region14: #{_lambda_.28} parent=0 // pred_check
    _
  $region15: #{_lambda_.28} parent=0 // pred_check_branch
    %16 = sbr.rel (0) target = $region17
  $region16: #{_lambda_.28} parent=0 // pred_region
    _
  $region17: #{_lambda_.28} parent=0 // pred_fallthru
    _
  %v18 = vld [vmem:[%s0] sm:$0xff]
  %v19 = vld [vmem:[%s0 + $0x8] sm:$0xff]
  %v20 = vpack.c.bf16 %v19, %v18
  %v21 = vld [vmem:[%s1] sm:$0xf]
  %v22 = vld [vmem:[%s1 + $0x4] sm:$0xf]
  %v23 = vld [vmem:[%s1 + $0x8] sm:$0xf]
  %v24 = vld [vmem:[%s1 + $0xc] sm:$0xf]
  %v25 = vld [vmem:[%s1 + $0x10] sm:$0xf]
  %v26 = vld [vmem:[%s1 + $0x14] sm:$0xf]
  %v27 = vld [vmem:[%s1 + $0x18] sm:$0xf]
  %v28 = vld [vmem:[%s1 + $0x1c] sm:$0xf]
  %v29 = vld [vmem:[%s1 + $0x20] sm:$0xf]
  %v30 = vld [vmem:[%s1 + $0x24] sm:$0xf]
  %v31 = vld [vmem:[%s1 + $0x28] sm:$0xf]
  %v32 = vld [vmem:[%s1 + $0x2c] sm:$0xf]
  %v33 = vld [vmem:[%s1 + $0x30] sm:$0xf]
  %v34 = vld [vmem:[%s1 + $0x34] sm:$0xf]
  %v35 = vld [vmem:[%s1 + $0x38] sm:$0xf]
  %v36 = vld [vmem:[%s1 + $0x3c] sm:$0xf]
  %v37 = vld [vmem:[%s2] sm:$0x1]
  %v39 = vlaneseq
  %v40 = vshrl.u32 %v39, 7
  %v41 = vsub.s32 0, %v40
  %v42 = vrot.slane %v37, %v41
  %v60 = vunpack.c.l.b16 %v21
  %v61 = vunpack.c.l.b16 %v22
  %v62 = vunpack.c.l.b16 %v23
  %v63 = vunpack.c.l.b16 %v24
  %v64 = vunpack.c.l.b16 %v25
  %v65 = vunpack.c.l.b16 %v26
  %v66 = vunpack.c.l.b16 %v27
  %v67 = vunpack.c.l.b16 %v28
  %v68 = vunpack.c.l.b16 %v29
  %v69 = vunpack.c.l.b16 %v30
  %v70 = vunpack.c.l.b16 %v31
  %v71 = vunpack.c.l.b16 %v32
  %v72 = vunpack.c.l.b16 %v33
  %v73 = vunpack.c.l.b16 %v34
  %v74 = vunpack.c.l.b16 %v35
  %v75 = vunpack.c.l.b16 %v36
  %v76 = vpack.c.b16 %v61, %v60
  %v77 = vpack.c.b16 %v63, %v62
  %v78 = vpack.c.b16 %v65, %v64
  %v79 = vpack.c.b16 %v67, %v66
  %v80 = vpack.c.b16 %v69, %v68
  %v81 = vpack.c.b16 %v71, %v70
  %v82 = vpack.c.b16 %v73, %v72
  %v83 = vpack.c.b16 %v75, %v74
  %92 = vmatprep.subr.bf16.mxu0 0
  %93 = vmatpush1.bf16.msra.mxu0 %v76
  %94 = vmatprep.subr.bf16.mxu0 0
  %95 = vmatpush1.bf16.msra.mxu0 %v77
  %96 = vmatprep.subr.bf16.mxu0 0
  %97 = vmatpush1.bf16.msra.mxu0 %v78
  %98 = vmatprep.subr.bf16.mxu0 0
  %99 = vmatpush1.bf16.msra.mxu0 %v79
  %100 = vmatprep.subr.bf16.mxu0 0
  %101 = vmatpush1.bf16.msra.mxu0 %v80
  %102 = vmatprep.subr.bf16.mxu0 0
  %103 = vmatpush1.bf16.msra.mxu0 %v81
  %104 = vmatprep.subr.bf16.mxu0 0
  %105 = vmatpush1.bf16.msra.mxu0 %v82
  %106 = vmatprep.subr.bf16.mxu0 0
  %107 = vmatpush1.bf16.msra.mxu0 %v83
  %108 = vmatprep.subr.bf16.mxu0 0
  %109 = vmatpush1.bf16.msra.mxu0 0
  %110 = vmatprep.subr.bf16.mxu0 0
  %111 = vmatpush1.bf16.msra.mxu0 0
  %112 = vmatprep.subr.bf16.mxu0 0
  %113 = vmatpush1.bf16.msra.mxu0 0
  %114 = vmatprep.subr.bf16.mxu0 0
  %115 = vmatpush1.bf16.msra.mxu0 0
  %116 = vmatprep.subr.bf16.mxu0 0
  %117 = vmatpush1.bf16.msra.mxu0 0
  %118 = vmatprep.subr.bf16.mxu0 0
  %119 = vmatpush1.bf16.msra.mxu0 0
  %120 = vmatprep.subr.bf16.mxu0 0
  %121 = vmatpush1.bf16.msra.mxu0 0
  %122 = vmatprep.subr.bf16.mxu0 0
  %123 = vmatpush1.bf16.msra.mxu0 0
  %124 = vmatprep.mubr.bf16.mxu0 0
  %125 = vmatmul.mubr.bf16.gmra.mrb[0].mxu0 %v20
  %v126 = vpop.f32.mrb[0].mxu0
  %v127 = vadd.f32 %v42, %v126
  %v128 = vpop.f32.mrb[0].mxu0
  %v129 = vpop.f32.mrb[0].mxu0
  %v130 = vadd.f32 %v42, %v129
  %v131 = vpop.f32.mrb[0].mxu0
  %132 = vdwg.mxu0
  %v133 = vld [vmem:[%s3] sm:$0xff]
  %v134 = vld [vmem:[%s3 + $0x8] sm:$0xff]
  %v135 = vmul.f32 %v127, 0.5
  %v136 = vmul.f32 %v130, 0.5
  %v137 = vadd.f32 %v133, %v135
  %v138 = vadd.f32 %v134, %v136
  %vm139 = vcmask 261120
  %140 = vst.msk [vmem:[%s4] sm:$0xff] %vm139, %v137
  %141 = vst.msk [vmem:[%s4 + $0x8] sm:$0xff] %vm139, %v138
  // Predicated region
  $region18: #{_lambda_.28} parent=0 // pred_check
    _
  $region19: #{_lambda_.28} parent=0 // pred_check_branch
    %143 = sbr.rel (0) target = $region21
  $region20: #{_lambda_.28} parent=0 // pred_region
    _
  $region21: #{_lambda_.28} parent=0 // pred_fallthru
    _
  // Predicated region
  $region22: #{_lambda_.28} parent=0 // pred_check
    _
  $region23: #{_lambda_.28} parent=0 // pred_check_branch
    %145 = sbr.rel (0) target = $region25
  $region24: #{_lambda_.28} parent=0 // pred_region
    _
  $region25: #{_lambda_.28} parent=0 // pred_fallthru
    _

// kernel: _lambda_.29
$region0: #{_lambda_.29}
  #allocation0 [shape = 'u32[]', space=smem, size = 0x4, offset = 0x4, fixed_abs, tag = 'smem constant byte address 0x4 - core index']
  #allocation1 [shape = 'u32[144,128]{1,0:T(1,128)}', space=vmem, size = 0x12000, scoped, tag = 'internal scratch']
  %s0 = inlined_call_operand.vmem [shape: f32[16,32], index: 0, kind: input, shape index: {}]
  %s1 = inlined_call_operand.vmem [shape: bf16[32,96], index: 1, kind: input, shape index: {}]
  %s2 = inlined_call_operand.vmem [shape: f32[1,96], index: 2, kind: input, shape index: {}]
  %s3 = inlined_call_operand.vmem [shape: f32[1,32], index: 3, kind: input, shape index: {}]
  %s4 = inlined_call_operand.vmem [shape: f32[1,32], index: 4, kind: input, shape index: {}]
  %s5 = inlined_call_operand.vmem [shape: f32[16,96], index: 5, kind: output, shape index: {}]
  %s6 = sld [smem:[#allocation0]]
  $region30: #{_lambda_.29} parent=0
    _
  %s8 = ssub.s32 1, %s6
  %s9 = scalar_select 0, %s8, %s6
  // Predicated region
  $region2: #{_lambda_.29} parent=0 // pred_check
    _
  $region3: #{_lambda_.29} parent=0 // pred_check_branch
    %11 = sbr.rel (0) target = $region5
  $region4: #{_lambda_.29} parent=0 // pred_region
    _
  $region5: #{_lambda_.29} parent=0 // pred_fallthru
    _
  // Predicated region
  $region6: #{_lambda_.29} parent=0 // pred_check
    _
  $region7: #{_lambda_.29} parent=0 // pred_check_branch
    %13 = sbr.rel (0) target = $region9
  $region8: #{_lambda_.29} parent=0 // pred_region
    _
  $region9: #{_lambda_.29} parent=0 // pred_fallthru
    _
  // Predicated region
  $region10: #{_lambda_.29} parent=0 // pred_check
    _
  $region11: #{_lambda_.29} parent=0 // pred_check_branch
    %15 = sbr.rel (0) target = $region13
  $region12: #{_lambda_.29} parent=0 // pred_region
    _
  $region13: #{_lambda_.29} parent=0 // pred_fallthru
    _
  // Predicated region
  $region14: #{_lambda_.29} parent=0 // pred_check
    _
  $region15: #{_lambda_.29} parent=0 // pred_check_branch
    %17 = sbr.rel (0) target = $region17
  $region16: #{_lambda_.29} parent=0 // pred_region
    _
  $region17: #{_lambda_.29} parent=0 // pred_fallthru
    _
  // Predicated region
  $region18: #{_lambda_.29} parent=0 // pred_check
    _
  $region19: #{_lambda_.29} parent=0 // pred_check_branch
    %19 = sbr.rel (0) target = $region21
  $region20: #{_lambda_.29} parent=0 // pred_region
    _
  $region21: #{_lambda_.29} parent=0 // pred_fallthru
    _
  %v21 = vld [vmem:[%s0] sm:$0xff]
  %v22 = vld [vmem:[%s0 + $0x8] sm:$0xff]
  %vm23 = vcmask 261120
  %v24 = vsel %vm23, %v21, 0.0
  %25 = vadd.xlane.f32.xlu0 %v24
  %v26 = vpop.xlane.xlu0 %25
  %v27 = vsel %vm23, %v22, 0.0
  %28 = vadd.xlane.f32.xlu0 %v27
  %v29 = vpop.xlane.xlu0 %28
  %v30 = vrcp.pop 32.0
  %v31 = vmul.f32 %v26, %v30
  %v32 = vmul.f32 %v29, %v30
  %v33 = vsub.f32 %v21, %v31
  %v34 = vsub.f32 %v22, %v32
  %v35 = vmul.f32 %v33, %v33
  %v36 = vmul.f32 %v34, %v34
  %v37 = vsel %vm23, %v35, 0.0
  %38 = vadd.xlane.f32.xlu0 %v37
  %v39 = vpop.xlane.xlu0 %38
  %v40 = vsel %vm23, %v36, 0.0
  %41 = vadd.xlane.f32.xlu0 %v40
  %v42 = vpop.xlane.xlu0 %41
  %v43 = vmul.f32 %v39, %v30
  %v44 = vmul.f32 %v42, %v30
  %v45 = vadd.f32 %v43, 1e-05
  %v46 = vadd.f32 %v44, 1e-05
  %v47 = vrsqrt.pop %v45
  %v48 = vrsqrt.pop %v46
  %v49 = vmul.f32 %v33, %v47
  %v50 = vmul.f32 %v34, %v48
  %v51 = vld [vmem:[%s3] sm:$0x1]
  %v53 = vlaneseq
  %v54 = vshrl.u32 %v53, 7
  %v55 = vsub.s32 0, %v54
  %v56 = vrot.slane %v51, %v55
  %v58 = vmul.f32 %v49, %v56
  %v59 = vmul.f32 %v50, %v56
  %v60 = vld [vmem:[%s4] sm:$0x1]
  %v62 = vlaneseq
  %v63 = vshrl.u32 %v62, 7
  %v64 = vsub.s32 0, %v63
  %v65 = vrot.slane %v60, %v64
  %v67 = vadd.f32 %v58, %v65
  %v68 = vadd.f32 %v59, %v65
  %v69 = vpack.c.bf16 %v68, %v67
  %v70 = vld [vmem:[%s1] sm:$0xf]
  %v71 = vld [vmem:[%s1 + $0x4] sm:$0xf]
  %v72 = vld [vmem:[%s1 + $0x8] sm:$0xf]
  %v73 = vld [vmem:[%s1 + $0xc] sm:$0xf]
  %v74 = vld [vmem:[%s2] sm:$0x1]
  %v76 = vlaneseq
  %v77 = vshrl.u32 %v76, 7
  %v78 = vsub.s32 0, %v77
  %v79 = vrot.slane %v74, %v78
  %v85 = vunpack.c.l.b16 %v70
  %v86 = vunpack.c.l.b16 %v71
  %v87 = vunpack.c.l.b16 %v72
  %v88 = vunpack.c.l.b16 %v73
  %v89 = vpack.c.b16 %v86, %v85
  %v90 = vpack.c.b16 %v88, %v87
  %v94 = vsel %vm23, %v69, 0
  %96 = vmatprep.subr.bf16.mxu0 0
  %97 = vmatpush1.bf16.msra.mxu0 %v89
  %98 = vmatprep.subr.bf16.mxu0 0
  %99 = vmatpush1.bf16.msra.mxu0 %v90
  %100 = vmatprep.subr.bf16.mxu0 0
  %101 = vmatpush1.bf16.msra.mxu0 0
  %102 = vmatprep.subr.bf16.mxu0 0
  %103 = vmatpush1.bf16.msra.mxu0 0
  %104 = vmatprep.subr.bf16.mxu0 0
  %105 = vmatpush1.bf16.msra.mxu0 0
  %106 = vmatprep.subr.bf16.mxu0 0
  %107 = vmatpush1.bf16.msra.mxu0 0
  %108 = vmatprep.subr.bf16.mxu0 0
  %109 = vmatpush1.bf16.msra.mxu0 0
  %110 = vmatprep.subr.bf16.mxu0 0
  %111 = vmatpush1.bf16.msra.mxu0 0
  %112 = vmatprep.subr.bf16.mxu0 0
  %113 = vmatpush1.bf16.msra.mxu0 0
  %114 = vmatprep.subr.bf16.mxu0 0
  %115 = vmatpush1.bf16.msra.mxu0 0
  %116 = vmatprep.subr.bf16.mxu0 0
  %117 = vmatpush1.bf16.msra.mxu0 0
  %118 = vmatprep.subr.bf16.mxu0 0
  %119 = vmatpush1.bf16.msra.mxu0 0
  %120 = vmatprep.subr.bf16.mxu0 0
  %121 = vmatpush1.bf16.msra.mxu0 0
  %122 = vmatprep.subr.bf16.mxu0 0
  %123 = vmatpush1.bf16.msra.mxu0 0
  %124 = vmatprep.subr.bf16.mxu0 0
  %125 = vmatpush1.bf16.msra.mxu0 0
  %126 = vmatprep.subr.bf16.mxu0 0
  %127 = vmatpush1.bf16.msra.mxu0 0
  %128 = vmatprep.mubr.bf16.mxu0 0
  %129 = vmatmul.mubr.bf16.gmra.mrb[0].mxu0 %v94
  %v130 = vpop.f32.mrb[0].mxu0
  %v131 = vadd.f32 %v79, %v130
  %v132 = vpop.f32.mrb[0].mxu0
  %v133 = vpop.f32.mrb[0].mxu0
  %v134 = vadd.f32 %v79, %v133
  %v135 = vpop.f32.mrb[0].mxu0
  %136 = vdwg.mxu0
  %vm137 = vcmask 785408
  %138 = vst.msk [vmem:[%s5] sm:$0xff] %vm137, %v131
  %139 = vst.msk [vmem:[%s5 + $0x8] sm:$0xff] %vm137, %v134
  // Predicated region
  $region22: #{_lambda_.29} parent=0 // pred_check
    _
  $region23: #{_lambda_.29} parent=0 // pred_check_branch
    %141 = sbr.rel (0) target = $region25
  $region24: #{_lambda_.29} parent=0 // pred_region
    _
  $region25: #{_lambda_.29} parent=0 // pred_fallthru
    _
  // Predicated region
  $region26: #{_lambda_.29} parent=0 // pred_check
    _
  $region27: #{_lambda_.29} parent=0 // pred_check_branch
    %143 = sbr.rel (0) target = $region29
  $region28: #{_lambda_.29} parent=0 // pred_region
    _
  $region29: #{_lambda_.29} parent=0 // pred_fallthru
    _

// kernel: _lambda_.31
$region0: #{_lambda_.31}
  #allocation0 [shape = 'u32[]', space=smem, size = 0x4, offset = 0x4, fixed_abs, tag = 'smem constant byte address 0x4 - core index']
  #allocation1 [shape = 'u32[144,128]{1,0:T(1,128)}', space=vmem, size = 0x12000, scoped, tag = 'internal scratch']
  %s0 = inlined_call_operand.vmem [shape: f32[16,32], index: 0, kind: input, shape index: {}]
  %s1 = inlined_call_operand.vmem [shape: bf16[32,32], index: 1, kind: input, shape index: {}]
  %s2 = inlined_call_operand.vmem [shape: f32[1,32], index: 2, kind: input, shape index: {}]
  %s3 = inlined_call_operand.vmem [shape: f32[16,32], index: 3, kind: input, shape index: {}]
  %s4 = inlined_call_operand.vmem [shape: f32[16,32], index: 4, kind: output, shape index: {}]
  %s5 = sld [smem:[#allocation0]]
  $region26: #{_lambda_.31} parent=0
    _
  %s7 = ssub.s32 1, %s5
  %s8 = scalar_select 0, %s7, %s5
  // Predicated region
  $region2: #{_lambda_.31} parent=0 // pred_check
    _
  $region3: #{_lambda_.31} parent=0 // pred_check_branch
    %10 = sbr.rel (0) target = $region5
  $region4: #{_lambda_.31} parent=0 // pred_region
    _
  $region5: #{_lambda_.31} parent=0 // pred_fallthru
    _
  // Predicated region
  $region6: #{_lambda_.31} parent=0 // pred_check
    _
  $region7: #{_lambda_.31} parent=0 // pred_check_branch
    %12 = sbr.rel (0) target = $region9
  $region8: #{_lambda_.31} parent=0 // pred_region
    _
  $region9: #{_lambda_.31} parent=0 // pred_fallthru
    _
  // Predicated region
  $region10: #{_lambda_.31} parent=0 // pred_check
    _
  $region11: #{_lambda_.31} parent=0 // pred_check_branch
    %14 = sbr.rel (0) target = $region13
  $region12: #{_lambda_.31} parent=0 // pred_region
    _
  $region13: #{_lambda_.31} parent=0 // pred_fallthru
    _
  // Predicated region
  $region14: #{_lambda_.31} parent=0 // pred_check
    _
  $region15: #{_lambda_.31} parent=0 // pred_check_branch
    %16 = sbr.rel (0) target = $region17
  $region16: #{_lambda_.31} parent=0 // pred_region
    _
  $region17: #{_lambda_.31} parent=0 // pred_fallthru
    _
  %v18 = vld [vmem:[%s0] sm:$0xff]
  %v19 = vld [vmem:[%s0 + $0x8] sm:$0xff]
  %v20 = vpack.c.bf16 %v19, %v18
  %v21 = vld [vmem:[%s1] sm:$0xf]
  %v22 = vld [vmem:[%s1 + $0x4] sm:$0xf]
  %v23 = vld [vmem:[%s1 + $0x8] sm:$0xf]
  %v24 = vld [vmem:[%s1 + $0xc] sm:$0xf]
  %v25 = vld [vmem:[%s2] sm:$0x1]
  %v27 = vlaneseq
  %v28 = vshrl.u32 %v27, 7
  %v29 = vsub.s32 0, %v28
  %v30 = vrot.slane %v25, %v29
  %v36 = vunpack.c.l.b16 %v21
  %v37 = vunpack.c.l.b16 %v22
  %v38 = vunpack.c.l.b16 %v23
  %v39 = vunpack.c.l.b16 %v24
  %v40 = vpack.c.b16 %v37, %v36
  %v41 = vpack.c.b16 %v39, %v38
  %vm44 = vcmask 261120
  %v46 = vsel %vm44, %v20, 0
  %48 = vmatprep.subr.bf16.mxu0 0
  %49 = vmatpush1.bf16.msra.mxu0 %v40
  %50 = vmatprep.subr.bf16.mxu0 0
  %51 = vmatpush1.bf16.msra.mxu0 %v41
  %52 = vmatprep.subr.bf16.mxu0 0
  %53 = vmatpush1.bf16.msra.mxu0 0
  %54 = vmatprep.subr.bf16.mxu0 0
  %55 = vmatpush1.bf16.msra.mxu0 0
  %56 = vmatprep.subr.bf16.mxu0 0
  %57 = vmatpush1.bf16.msra.mxu0 0
  %58 = vmatprep.subr.bf16.mxu0 0
  %59 = vmatpush1.bf16.msra.mxu0 0
  %60 = vmatprep.subr.bf16.mxu0 0
  %61 = vmatpush1.bf16.msra.mxu0 0
  %62 = vmatprep.subr.bf16.mxu0 0
  %63 = vmatpush1.bf16.msra.mxu0 0
  %64 = vmatprep.subr.bf16.mxu0 0
  %65 = vmatpush1.bf16.msra.mxu0 0
  %66 = vmatprep.subr.bf16.mxu0 0
  %67 = vmatpush1.bf16.msra.mxu0 0
  %68 = vmatprep.subr.bf16.mxu0 0
  %69 = vmatpush1.bf16.msra.mxu0 0
  %70 = vmatprep.subr.bf16.mxu0 0
  %71 = vmatpush1.bf16.msra.mxu0 0
  %72 = vmatprep.subr.bf16.mxu0 0
  %73 = vmatpush1.bf16.msra.mxu0 0
  %74 = vmatprep.subr.bf16.mxu0 0
  %75 = vmatpush1.bf16.msra.mxu0 0
  %76 = vmatprep.subr.bf16.mxu0 0
  %77 = vmatpush1.bf16.msra.mxu0 0
  %78 = vmatprep.subr.bf16.mxu0 0
  %79 = vmatpush1.bf16.msra.mxu0 0
  %80 = vmatprep.mubr.bf16.mxu0 0
  %81 = vmatmul.mubr.bf16.gmra.mrb[0].mxu0 %v46
  %v82 = vpop.f32.mrb[0].mxu0
  %v83 = vadd.f32 %v30, %v82
  %v84 = vpop.f32.mrb[0].mxu0
  %v85 = vpop.f32.mrb[0].mxu0
  %v86 = vadd.f32 %v30, %v85
  %v87 = vpop.f32.mrb[0].mxu0
  %88 = vdwg.mxu0
  %v89 = vld [vmem:[%s3] sm:$0xff]
  %v90 = vld [vmem:[%s3 + $0x8] sm:$0xff]
  %v91 = vadd.f32 %v89, %v83
  %v92 = vadd.f32 %v90, %v86
  %93 = vst.msk [vmem:[%s4] sm:$0xff] %vm44, %v91
  %94 = vst.msk [vmem:[%s4 + $0x8] sm:$0xff] %vm44, %v92
  // Predicated region
  $region18: #{_lambda_.31} parent=0 // pred_check
    _
  $region19: #{_lambda_.31} parent=0 // pred_check_branch
    %96 = sbr.rel (0) target = $region21
  $region20: #{_lambda_.31} parent=0 // pred_region
    _
  $region21: #{_lambda_.31} parent=0 // pred_fallthru
    _
  // Predicated region
  $region22: #{_lambda_.31} parent=0 // pred_check
    _
  $region23: #{_lambda_.31} parent=0 // pred_check_branch
    %98 = sbr.rel (0) target = $region25
  $region24: #{_lambda_.31} parent=0 // pred_region
    _
  $region25: #{_lambda_.31} parent=0 // pred_fallthru
    _

// kernel: _lambda_.30
$region0: #{_lambda_.30}
  #allocation0 [shape = 'u32[]', space=smem, size = 0x4, offset = 0x4, fixed_abs, tag = 'smem constant byte address 0x4 - core index']
  #allocation1 [shape = 'u32[144,128]{1,0:T(1,128)}', space=vmem, size = 0x12000, scoped, tag = 'internal scratch']
  #allocation2 [shape = 'f32[4,8,1]{2,1,0:T(8,128)}', space=vmem, size = 0x4000, scoped, tag = 'scratch operand']
  #allocation3 [shape = 'f32[4,8,1]{2,1,0:T(8,128)}', space=vmem, size = 0x4000, scoped, tag = 'scratch operand']
  #allocation4 [shape = 'f32[4,8,8]{2,1,0:T(8,128)}', space=vmem, size = 0x4000, scoped, tag = 'scratch operand']
  %s0 = inlined_call_operand.vmem [shape: f32[2,4,8,8], index: 0, kind: input, shape index: {}]
  %s1 = inlined_call_operand.vmem [shape: f32[2,4,8,8], index: 1, kind: input, shape index: {}]
  %s2 = inlined_call_operand.vmem [shape: f32[2,4,8,8], index: 2, kind: input, shape index: {}]
  %s3 = inlined_call_operand.vmem [shape: f32[2,1,8], index: 3, kind: input, shape index: {}]
  %s4 = inlined_call_operand.vmem [shape: f32[2,4,8,8], index: 4, kind: output, shape index: {}]
  %s5 = sld [smem:[#allocation0]]
  $region57: #{_lambda_.30} parent=0
    _
  %s7 = ssub.s32 1, %s5
  %s8 = scalar_select 0, %s7, %s5
  loop: start=0, step=1, limit=4
  $region2: #{_lambda_.30} parent=0 // loop_pre_header
    _
  $region3: #{_lambda_.30} parent=0 // loop_header
    %s10 = sphi 0, %s14
    %p11 = scmp.ge.s32.totalorder %s10, 4
    %s17 = sphi 0, %s36
    %s18 = sphi 0, %s32
    %s19 = sphi 0, %s28
    %s20 = sphi 0, %s17
    %s21 = sphi 0, %s18
    %s22 = sphi 0, %s19
    %s23 = sphi 0, %s20
    %s24 = sphi 0, %s21
    %s25 = sphi 0, %s22
    %s41 = sphi 0, %s43
    %s44 = sphi 0, %s41
    %s45 = sphi 0, %s44
    %s61 = sphi 0, %s45
    %s69 = sphi 0, %s71
    %s72 = sphi 0, %s69
    %s73 = sphi 0, %s72
    %s89 = sphi 0, %s73
    %s97 = sphi 0, %s99
    %s100 = sphi 0, %s97
    %s101 = sphi 0, %s100
    %s117 = sphi 0, %s101
    %s125 = sphi 0, %s127
    %s128 = sphi 0, %s125
    %s129 = sphi 0, %s128
    %s145 = sphi 0, %s129
    %s153 = sphi 0, %s155
    %s156 = sphi 0, %s153
    %s157 = sphi 0, %s156
    %s173 = sphi 0, %s157
  $region4: #{_lambda_.30} parent=0 // loop_header_branch
    %13 = sbr.rel (%p11) target = $region8
  $region5: #{_lambda_.30} parent=0 // loop_body
    %s15 = ssub.s32 %s10, 1
    %s16 = ssub.s32 %s10, 2
    %s26 = sadd.s32 1, %s19
    %p27 = scmp.ge.s32.totalorder %s26, 1
    %s28 = scalar_select %p27, 0, %s26
    %s29 = sadd.s32 1, %s18
    %s30 = scalar_select %p27, %s29, %s18
    %p31 = scmp.ge.s32.totalorder %s30, 1
    %s32 = scalar_select %p31, 0, %s30
    %s33 = sadd.s32 1, %s17
    %s34 = scalar_select %p31, %s33, %s17
    %p35 = scmp.ge.s32.totalorder %s34, 2
    %s36 = scalar_select %p35, 0, %s34
    %s37 = ssub.s32 %s17, %s36
    %s38 = ssub.s32 %s18, %s32
    %s39 = sor.u32 %s37, %s38
    %p40 = scmp.eq.s32.totalorder %s39, 0
    %s42 = sadd.s32 %s41, 1
    %s43 = scalar_select %p40, %s41, %s42
    %p46 = pneg %p40
    %p47 = scmp.eq.s32.totalorder %s10, 1
    %p48 = por %p46, %p47
    %p49 = scmp.ne.s32.totalorder %s41, %s44
    %p50 = scmp.eq.s32.totalorder %s10, 0
    %p51 = por %p49, %p50
    %p52 = scmp.ne.s32.totalorder %s41, %s44
    %p53 = scmp.eq.s32.totalorder %s15, 1
    %p54 = por %p52, %p53
    %p55 = scmp.ne.s32.totalorder %s44, %s45
    %p56 = scmp.eq.s32.totalorder %s15, 0
    %p57 = por %p55, %p56
    %p58 = scmp.ne.s32.totalorder %s44, %s45
    %p59 = scmp.eq.s32.totalorder %s16, 1
    %p60 = por %p58, %p59
    %p62 = scmp.ne.s32.totalorder %s45, %s61
    %p63 = scmp.eq.s32.totalorder %s16, 0
    %p64 = por %p62, %p63
    %s65 = ssub.s32 %s17, %s36
    %s66 = ssub.s32 %s19, %s28
    %s67 = sor.u32 %s65, %s66
    %p68 = scmp.eq.s32.totalorder %s67, 0
    %s70 = sadd.s32 %s69, 1
    %s71 = scalar_select %p68, %s69, %s70
    %p74 = pneg %p68
    %p75 = scmp.eq.s32.totalorder %s10, 1
    %p76 = por %p74, %p75
    %p77 = scmp.ne.s32.totalorder %s69, %s72
    %p78 = scmp.eq.s32.totalorder %s10, 0
    %p79 = por %p77, %p78
    %p80 = scmp.ne.s32.totalorder %s69, %s72
    %p81 = scmp.eq.s32.totalorder %s15, 1
    %p82 = por %p80, %p81
    %p83 = scmp.ne.s32.totalorder %s72, %s73
    %p84 = scmp.eq.s32.totalorder %s15, 0
    %p85 = por %p83, %p84
    %p86 = scmp.ne.s32.totalorder %s72, %s73
    %p87 = scmp.eq.s32.totalorder %s16, 1
    %p88 = por %p86, %p87
    %p90 = scmp.ne.s32.totalorder %s73, %s89
    %p91 = scmp.eq.s32.totalorder %s16, 0
    %p92 = por %p90, %p91
    %s93 = ssub.s32 %s17, %s36
    %s94 = ssub.s32 %s19, %s28
    %s95 = sor.u32 %s93, %s94
    %p96 = scmp.eq.s32.totalorder %s95, 0
    %s98 = sadd.s32 %s97, 1
    %s99 = scalar_select %p96, %s97, %s98
    %p102 = pneg %p96
    %p103 = scmp.eq.s32.totalorder %s10, 1
    %p104 = por %p102, %p103
    %p105 = scmp.ne.s32.totalorder %s97, %s100
    %p106 = scmp.eq.s32.totalorder %s10, 0
    %p107 = por %p105, %p106
    %p108 = scmp.ne.s32.totalorder %s97, %s100
    %p109 = scmp.eq.s32.totalorder %s15, 1
    %p110 = por %p108, %p109
    %p111 = scmp.ne.s32.totalorder %s100, %s101
    %p112 = scmp.eq.s32.totalorder %s15, 0
    %p113 = por %p111, %p112
    %p114 = scmp.ne.s32.totalorder %s100, %s101
    %p115 = scmp.eq.s32.totalorder %s16, 1
    %p116 = por %p114, %p115
    %p118 = scmp.ne.s32.totalorder %s101, %s117
    %p119 = scmp.eq.s32.totalorder %s16, 0
    %p120 = por %p118, %p119
    %s121 = ssub.s32 %s17, %s36
    %s122 = ssub.s32 %s19, %s28
    %s123 = sor.u32 %s121, %s122
    %p124 = scmp.eq.s32.totalorder %s123, 0
    %s126 = sadd.s32 %s125, 1
    %s127 = scalar_select %p124, %s125, %s126
    %p130 = pneg %p124
    %p131 = scmp.eq.s32.totalorder %s10, 1
    %p132 = por %p130, %p131
    %p133 = scmp.ne.s32.totalorder %s125, %s128
    %p134 = scmp.eq.s32.totalorder %s10, 0
    %p135 = por %p133, %p134
    %p136 = scmp.ne.s32.totalorder %s125, %s128
    %p137 = scmp.eq.s32.totalorder %s15, 1
    %p138 = por %p136, %p137
    %p139 = scmp.ne.s32.totalorder %s128, %s129
    %p140 = scmp.eq.s32.totalorder %s15, 0
    %p141 = por %p139, %p140
    %p142 = scmp.ne.s32.totalorder %s128, %s129
    %p143 = scmp.eq.s32.totalorder %s16, 1
    %p144 = por %p142, %p143
    %p146 = scmp.ne.s32.totalorder %s129, %s145
    %p147 = scmp.eq.s32.totalorder %s16, 0
    %p148 = por %p146, %p147
    %s149 = ssub.s32 %s17, %s36
    %s150 = ssub.s32 %s18, %s32
    %s151 = sor.u32 %s149, %s150
    %p152 = scmp.eq.s32.totalorder %s151, 0
    %s154 = sadd.s32 %s153, 1
    %s155 = scalar_select %p152, %s153, %s154
    %p158 = pneg %p152
    %p159 = scmp.eq.s32.totalorder %s10, 1
    %p160 = por %p158, %p159
    %p161 = scmp.ne.s32.totalorder %s153, %s156
    %p162 = scmp.eq.s32.totalorder %s10, 0
    %p163 = por %p161, %p162
    %p164 = scmp.ne.s32.totalorder %s153, %s156
    %p165 = scmp.eq.s32.totalorder %s15, 1
    %p166 = por %p164, %p165
    %p167 = scmp.ne.s32.totalorder %s156, %s157
    %p168 = scmp.eq.s32.totalorder %s15, 0
    %p169 = por %p167, %p168
    %p170 = scmp.ne.s32.totalorder %s156, %s157
    %p171 = scmp.eq.s32.totalorder %s16, 1
    %p172 = por %p170, %p171
    %p174 = scmp.ne.s32.totalorder %s157, %s173
    %p175 = scmp.eq.s32.totalorder %s16, 0
    %p176 = por %p174, %p175
    %p177 = scmp.le.s32.totalorder 1, %s10
    %p178 = scmp.lt.s32.totalorder %s10, 3
    %p179 = pnand %p177, %p178
    %p180 = pneg %p179
    // Predicated region
    $region9: #{_lambda_.30} parent=5 // pred_check
      _
    $region10: #{_lambda_.30} parent=5 // pred_check_branch
      %182 = sbr.rel (%p179) target = $region12
    $region11: #{_lambda_.30} parent=5 // pred_region
      %s183 = ssub.s32 %s10, 1
    $region12: #{_lambda_.30} parent=5 // pred_fallthru
      _
    %p184 = scmp.lt.s32.totalorder %s10, 2
    // Predicated region
    $region13: #{_lambda_.30} parent=5 // pred_check
      %p185 = pneg %p184
    $region14: #{_lambda_.30} parent=5 // pred_check_branch
      %187 = sbr.rel (%p185) target = $region16
    $region15: #{_lambda_.30} parent=5 // pred_region
      // Predicated region
      $region17: #{_lambda_.30} parent=15 // pred_check
        %p188 = pneg %p51
      $region18: #{_lambda_.30} parent=15 // pred_check_branch
        %190 = sbr.rel (%p188) target = $region20
      $region19: #{_lambda_.30} parent=15 // pred_region
        %p191 = scmp.lt.s32.totalorder %s17, 1
        %s192 = scalar_select %p191, %s17, 1
        %p193 = scmp.lt.s32.totalorder %s18, 0
        %s194 = scalar_select %p193, %s18, 0
        %s195 = smul.addr %s192, 4
        %s196 = sadd.s32 %s194, %s195
        %s197 = smul.addr %s196, 8
        %s198 = scalar_lea.vmem %s0, %s197
      $region20: #{_lambda_.30} parent=15 // pred_fallthru
        _
      // Predicated region
      $region21: #{_lambda_.30} parent=15 // pred_check
        %p199 = pneg %p79
      $region22: #{_lambda_.30} parent=15 // pred_check_branch
        %201 = sbr.rel (%p199) target = $region24
      $region23: #{_lambda_.30} parent=15 // pred_region
        %p202 = scmp.lt.s32.totalorder %s17, 1
        %s203 = scalar_select %p202, %s17, 1
        %p204 = scmp.lt.s32.totalorder %s19, 0
        %s205 = scalar_select %p204, %s19, 0
        %s206 = smul.addr %s203, 4
        %s207 = sadd.s32 %s205, %s206
        %s208 = smul.addr %s207, 8
        %s209 = scalar_lea.vmem %s1, %s208
      $region24: #{_lambda_.30} parent=15 // pred_fallthru
        _
      // Predicated region
      $region25: #{_lambda_.30} parent=15 // pred_check
        %p210 = pneg %p107
      $region26: #{_lambda_.30} parent=15 // pred_check_branch
        %212 = sbr.rel (%p210) target = $region28
      $region27: #{_lambda_.30} parent=15 // pred_region
        %p213 = scmp.lt.s32.totalorder %s17, 1
        %s214 = scalar_select %p213, %s17, 1
        %p215 = scmp.lt.s32.totalorder %s19, 0
        %s216 = scalar_select %p215, %s19, 0
        %s217 = smul.addr %s214, 4
        %s218 = sadd.s32 %s216, %s217
        %s219 = smul.addr %s218, 8
        %s220 = scalar_lea.vmem %s2, %s219
      $region28: #{_lambda_.30} parent=15 // pred_fallthru
        _
      // Predicated region
      $region29: #{_lambda_.30} parent=15 // pred_check
        %p221 = pneg %p135
      $region30: #{_lambda_.30} parent=15 // pred_check_branch
        %223 = sbr.rel (%p221) target = $region32
      $region31: #{_lambda_.30} parent=15 // pred_region
        %p224 = scmp.lt.s32.totalorder %s17, 1
        %s225 = scalar_select %p224, %s17, 1
        %p226 = scmp.lt.s32.totalorder %s19, 0
        %s227 = scalar_select %p226, %s19, 0
        %s228 = sadd.s32 %s227, %s225
        %s229 = scalar_lea.vmem %s3, %s228
      $region32: #{_lambda_.30} parent=15 // pred_fallthru
        _
    $region16: #{_lambda_.30} parent=5 // pred_fallthru
      _
    %p230 = scmp.le.s32.totalorder 1, %s10
    %p231 = scmp.lt.s32.totalorder %s10, 3
    %p232 = pnand %p230, %p231
    %p233 = pneg %p232
    // Predicated region
    $region33: #{_lambda_.30} parent=5 // pred_check
      _
    $region34: #{_lambda_.30} parent=5 // pred_check_branch
      %235 = sbr.rel (%p232) target = $region36
    $region35: #{_lambda_.30} parent=5 // pred_region
      %s236 = ssub.s32 %s10, 1
      %p237 = scmp.lt.s32.totalorder %s20, 1
      %s238 = scalar_select %p237, %s20, 1
      %p239 = scmp.lt.s32.totalorder %s21, 0
      %s240 = scalar_select %p239, %s21, 0
      %s241 = smul.addr %s238, 4
      %s242 = sadd.s32 %s240, %s241
      %s243 = smul.addr %s242, 8
      %s244 = scalar_lea.vmem %s0, %s243
      %p245 = pneg %p57
      %p246 = pneg %p54
      %p247 = scmp.lt.s32.totalorder %s20, 1
      %s248 = scalar_select %p247, %s20, 1
      %p249 = scmp.lt.s32.totalorder %s22, 0
      %s250 = scalar_select %p249, %s22, 0
      %s251 = smul.addr %s248, 4
      %s252 = sadd.s32 %s250, %s251
      %s253 = smul.addr %s252, 8
      %s254 = scalar_lea.vmem %s1, %s253
      %p255 = pneg %p85
      %p256 = pneg %p82
      %p257 = scmp.lt.s32.totalorder %s20, 1
      %s258 = scalar_select %p257, %s20, 1
      %p259 = scmp.lt.s32.totalorder %s22, 0
      %s260 = scalar_select %p259, %s22, 0
      %s261 = smul.addr %s258, 4
      %s262 = sadd.s32 %s260, %s261
      %s263 = smul.addr %s262, 8
      %s264 = scalar_lea.vmem %s2, %s263
      %p265 = pneg %p113
      %p266 = pneg %p110
      %p267 = scmp.lt.s32.totalorder %s20, 1
      %s268 = scalar_select %p267, %s20, 1
      %p269 = scmp.lt.s32.totalorder %s22, 0
      %s270 = scalar_select %p269, %s22, 0
      %s271 = sadd.s32 %s270, %s268
      %s272 = scalar_lea.vmem %s3, %s271
      %p273 = pneg %p141
      %p274 = pneg %p138
      %p275 = pneg %p169
      %p276 = pneg %p166
      %p277 = scmp.lt.s32.totalorder %s20, 1
      %s278 = scalar_select %p277, %s20, 1
      %p279 = scmp.lt.s32.totalorder %s21, 0
      %s280 = scalar_select %p279, %s21, 0
      %s281 = smul.addr %s278, 4
      %s282 = sadd.s32 %s280, %s281
      %s283 = smul.addr %s282, 8
      %s284 = scalar_lea.vmem %s4, %s283
      %p285 = scmp.lt.s32.totalorder %s20, 1
      %s286 = scalar_select %p285, %s20, 1
      %p287 = scmp.lt.s32.totalorder %s21, 0
      %s288 = scalar_select %p287, %s21, 0
      %s289 = smul.addr %s286, 4
      %s290 = sadd.s32 %s288, %s289
      %s291 = smul.addr %s290, 8
      %s292 = scalar_lea.vmem %s0, %s291
      %p293 = scmp.lt.s32.totalorder %s20, 1
      %s294 = scalar_select %p293, %s20, 1
      %p295 = scmp.lt.s32.totalorder %s22, 0
      %s296 = scalar_select %p295, %s22, 0
      %s297 = smul.addr %s294, 4
      %s298 = sadd.s32 %s296, %s297
      %s299 = smul.addr %s298, 8
      %s300 = scalar_lea.vmem %s1, %s299
      %p301 = scmp.lt.s32.totalorder %s20, 1
      %s302 = scalar_select %p301, %s20, 1
      %p303 = scmp.lt.s32.totalorder %s22, 0
      %s304 = scalar_select %p303, %s22, 0
      %s305 = smul.addr %s302, 4
      %s306 = sadd.s32 %s304, %s305
      %s307 = smul.addr %s306, 8
      %s308 = scalar_lea.vmem %s2, %s307
      %p309 = scmp.lt.s32.totalorder %s20, 1
      %s310 = scalar_select %p309, %s20, 1
      %p311 = scmp.lt.s32.totalorder %s22, 0
      %s312 = scalar_select %p311, %s22, 0
      %s313 = sadd.s32 %s312, %s310
      %s314 = scalar_lea.vmem %s3, %s313
      %p315 = scmp.lt.s32.totalorder %s20, 1
      %s316 = scalar_select %p315, %s20, 1
      %p317 = scmp.lt.s32.totalorder %s21, 0
      %s318 = scalar_select %p317, %s21, 0
      %s319 = smul.addr %s316, 4
      %s320 = sadd.s32 %s318, %s319
      %s321 = smul.addr %s320, 8
      %s322 = scalar_lea.vmem %s4, %s321
      %p324 = scmp.eq.s32.totalorder %s22, 0
      // Predicated region
      $region37: #{_lambda_.30} parent=35 // pred_check
        %p325 = pneg %p324
      $region38: #{_lambda_.30} parent=35 // pred_check_branch
        %327 = sbr.rel (%p325) target = $region40
      $region39: #{_lambda_.30} parent=35 // pred_region
        %vm328 = vcmask 7168
        %329 = vst.msk [vmem:[#allocation2] sm:$0xff] %vm328, -inf
        %330 = vst.msk [vmem:[#allocation2 + $0x8] sm:$0xff] %vm328, -inf
        %331 = vst.msk [vmem:[#allocation2 + $0x10] sm:$0xff] %vm328, -inf
        %332 = vst.msk [vmem:[#allocation2 + $0x18] sm:$0xff] %vm328, -inf
        %333 = vst.msk [vmem:[#allocation3] sm:$0xff] %vm328, 0.0
        %334 = vst.msk [vmem:[#allocation3 + $0x8] sm:$0xff] %vm328, 0.0
        %335 = vst.msk [vmem:[#allocation3 + $0x10] sm:$0xff] %vm328, 0.0
        %336 = vst.msk [vmem:[#allocation3 + $0x18] sm:$0xff] %vm328, 0.0
        %vm337 = vcmask 64512
        %338 = vst.msk [vmem:[#allocation4] sm:$0xff] %vm337, 0.0
        %339 = vst.msk [vmem:[#allocation4 + $0x8] sm:$0xff] %vm337, 0.0
        %340 = vst.msk [vmem:[#allocation4 + $0x10] sm:$0xff] %vm337, 0.0
        %341 = vst.msk [vmem:[#allocation4 + $0x18] sm:$0xff] %vm337, 0.0
      $region40: #{_lambda_.30} parent=35 // pred_fallthru
        _
      %v342 = vld [vmem:[%s292] sm:$0xff]
      %v343 = vld [vmem:[%s292 + $0x8] sm:$0xff]
      %v344 = vld [vmem:[%s292 + $0x10] sm:$0xff]
      %v345 = vld [vmem:[%s292 + $0x18] sm:$0xff]
      %v346 = vmul.f32 %v342, 0.35355338
      %v347 = vmul.f32 %v343, 0.35355338
      %v348 = vmul.f32 %v344, 0.35355338
      %v349 = vmul.f32 %v345, 0.35355338
      %v350 = vpack.c.bf16 %v346, %v346
      %v351 = vpack.c.bf16 %v347, %v347
      %v352 = vpack.c.bf16 %v348, %v348
      %v353 = vpack.c.bf16 %v349, %v349
      %v354 = vld [vmem:[%s300] sm:$0xff]
      %v355 = vld [vmem:[%s300 + $0x8] sm:$0xff]
      %v356 = vld [vmem:[%s300 + $0x10] sm:$0xff]
      %v357 = vld [vmem:[%s300 + $0x18] sm:$0xff]
      %v358 = vpack.c.bf16 %v354, %v354
      %v359 = vpack.c.bf16 %v355, %v355
      %v360 = vpack.c.bf16 %v356, %v356
      %v361 = vpack.c.bf16 %v357, %v357
      %v362 = vld [vmem:[%s308] sm:$0xff]
      %v363 = vld [vmem:[%s308 + $0x8] sm:$0xff]
      %v364 = vld [vmem:[%s308 + $0x10] sm:$0xff]
      %v365 = vld [vmem:[%s308 + $0x18] sm:$0xff]
      %s366 = smul.u32 %s22, 8
      %v367 = vlaneseq
      %v368 = vand.u32 %v367, 127
      %v369 = vstv %s366
      %v370 = vadd.s32 %v369, %v368
      %vm371 = vcmp.lt.s32.totalorder %v370, 8
      %v372 = vld [vmem:[%s314] sm:$0x1]
      %v374 = vlaneseq
      %v375 = vshrl.u32 %v374, 7
      %v376 = vsub.s32 0, %v375
      %v377 = vrot.slane %v372, %v376
      %vm379 = vcmask 64512
      %v381 = vsel %vm379, %v350, 0
      %v384 = vsel %vm379, %v358, 0
      %386 = vmatprep.subr.bf16.mxu0 0
      %387 = vmatpush1.bf16.xpose.msra.mxu0 %v384
      %388 = vmatprep.subr.bf16.mxu0 0
      %389 = vmatpush1.bf16.xpose.msra.mxu0 0
      %390 = vmatprep.subr.bf16.mxu0 0
      %391 = vmatpush1.bf16.xpose.msra.mxu0 0
      %392 = vmatprep.subr.bf16.mxu0 0
      %393 = vmatpush1.bf16.xpose.msra.mxu0 0
      %394 = vmatprep.subr.bf16.mxu0 0
      %395 = vmatpush1.bf16.xpose.msra.mxu0 0
      %396 = vmatprep.subr.bf16.mxu0 0
      %397 = vmatpush1.bf16.xpose.msra.mxu0 0
      %398 = vmatprep.subr.bf16.mxu0 0
      %399 = vmatpush1.bf16.xpose.msra.mxu0 0
      %400 = vmatprep.subr.bf16.mxu0 0
      %401 = vmatpush1.bf16.xpose.msra.mxu0 0
      %402 = vmatprep.subr.bf16.mxu0 0
      %403 = vmatpush1.bf16.xpose.msra.mxu0 0
      %404 = vmatprep.subr.bf16.mxu0 0
      %405 = vmatpush1.bf16.xpose.msra.mxu0 0
      %406 = vmatprep.subr.bf16.mxu0 0
      %407 = vmatpush1.bf16.xpose.msra.mxu0 0
      %408 = vmatprep.subr.bf16.mxu0 0
      %409 = vmatpush1.bf16.xpose.msra.mxu0 0
      %410 = vmatprep.subr.bf16.mxu0 0
      %411 = vmatpush1.bf16.xpose.msra.mxu0 0
      %412 = vmatprep.subr.bf16.mxu0 0
      %413 = vmatpush1.bf16.xpose.msra.mxu0 0
      %414 = vmatprep.subr.bf16.mxu0 0
      %415 = vmatpush1.bf16.xpose.msra.mxu0 0
      %416 = vmatprep.subr.bf16.mxu0 0
      %417 = vmatpush1.bf16.xpose.msra.mxu0 0
      %418 = vmatprep.mubr.bf16.mxu0 0
      %419 = vmatmul.mubr.bf16.gmra.mrb[0].mxu0 %v381
      %v420 = vpop.f32.mrb[0].mxu0
      %v421 = vadd.f32 %v377, %v420
      %v422 = vpop.f32.mrb[0].mxu0
      %v423 = vpop.f32.mrb[0].mxu0
      %v424 = vpop.f32.mrb[0].mxu0
      %425 = vdwg.mxu0
      %v427 = vsel %vm379, %v351, 0
      %v430 = vsel %vm379, %v359, 0
      %432 = vmatprep.subr.bf16.mxu0 0
      %433 = vmatpush1.bf16.xpose.msra.mxu0 %v430
      %434 = vmatprep.subr.bf16.mxu0 0
      %435 = vmatpush1.bf16.xpose.msra.mxu0 0
      %436 = vmatprep.subr.bf16.mxu0 0
      %437 = vmatpush1.bf16.xpose.msra.mxu0 0
      %438 = vmatprep.subr.bf16.mxu0 0
      %439 = vmatpush1.bf16.xpose.msra.mxu0 0
      %440 = vmatprep.subr.bf16.mxu0 0
      %441 = vmatpush1.bf16.xpose.msra.mxu0 0
      %442 = vmatprep.subr.bf16.mxu0 0
      %443 = vmatpush1.bf16.xpose.msra.mxu0 0
      %444 = vmatprep.subr.bf16.mxu0 0
      %445 = vmatpush1.bf16.xpose.msra.mxu0 0
      %446 = vmatprep.subr.bf16.mxu0 0
      %447 = vmatpush1.bf16.xpose.msra.mxu0 0
      %448 = vmatprep.subr.bf16.mxu0 0
      %449 = vmatpush1.bf16.xpose.msra.mxu0 0
      %450 = vmatprep.subr.bf16.mxu0 0
      %451 = vmatpush1.bf16.xpose.msra.mxu0 0
      %452 = vmatprep.subr.bf16.mxu0 0
      %453 = vmatpush1.bf16.xpose.msra.mxu0 0
      %454 = vmatprep.subr.bf16.mxu0 0
      %455 = vmatpush1.bf16.xpose.msra.mxu0 0
      %456 = vmatprep.subr.bf16.mxu0 0
      %457 = vmatpush1.bf16.xpose.msra.mxu0 0
      %458 = vmatprep.subr.bf16.mxu0 0
      %459 = vmatpush1.bf16.xpose.msra.mxu0 0
      %460 = vmatprep.subr.bf16.mxu0 0
      %461 = vmatpush1.bf16.xpose.msra.mxu0 0
      %462 = vmatprep.subr.bf16.mxu0 0
      %463 = vmatpush1.bf16.xpose.msra.mxu0 0
      %464 = vmatprep.mubr.bf16.mxu0 0
      %465 = vmatmul.mubr.bf16.gmra.mrb[0].mxu0 %v427
      %v466 = vpop.f32.mrb[0].mxu0
      %v467 = vadd.f32 %v377, %v466
      %v468 = vpop.f32.mrb[0].mxu0
      %v469 = vpop.f32.mrb[0].mxu0
      %v470 = vpop.f32.mrb[0].mxu0
      %471 = vdwg.mxu0
      %v473 = vsel %vm379, %v352, 0
      %v476 = vsel %vm379, %v360, 0
      %478 = vmatprep.subr.bf16.mxu0 0
      %479 = vmatpush1.bf16.xpose.msra.mxu0 %v476
      %480 = vmatprep.subr.bf16.mxu0 0
      %481 = vmatpush1.bf16.xpose.msra.mxu0 0
      %482 = vmatprep.subr.bf16.mxu0 0
      %483 = vmatpush1.bf16.xpose.msra.mxu0 0
      %484 = vmatprep.subr.bf16.mxu0 0
      %485 = vmatpush1.bf16.xpose.msra.mxu0 0
      %486 = vmatprep.subr.bf16.mxu0 0
      %487 = vmatpush1.bf16.xpose.msra.mxu0 0
      %488 = vmatprep.subr.bf16.mxu0 0
      %489 = vmatpush1.bf16.xpose.msra.mxu0 0
      %490 = vmatprep.subr.bf16.mxu0 0
      %491 = vmatpush1.bf16.xpose.msra.mxu0 0
      %492 = vmatprep.subr.bf16.mxu0 0
      %493 = vmatpush1.bf16.xpose.msra.mxu0 0
      %494 = vmatprep.subr.bf16.mxu0 0
      %495 = vmatpush1.bf16.xpose.msra.mxu0 0
      %496 = vmatprep.subr.bf16.mxu0 0
      %497 = vmatpush1.bf16.xpose.msra.mxu0 0
      %498 = vmatprep.subr.bf16.mxu0 0
      %499 = vmatpush1.bf16.xpose.msra.mxu0 0
      %500 = vmatprep.subr.bf16.mxu0 0
      %501 = vmatpush1.bf16.xpose.msra.mxu0 0
      %502 = vmatprep.subr.bf16.mxu0 0
      %503 = vmatpush1.bf16.xpose.msra.mxu0 0
      %504 = vmatprep.subr.bf16.mxu0 0
      %505 = vmatpush1.bf16.xpose.msra.mxu0 0
      %506 = vmatprep.subr.bf16.mxu0 0
      %507 = vmatpush1.bf16.xpose.msra.mxu0 0
      %508 = vmatprep.subr.bf16.mxu0 0
      %509 = vmatpush1.bf16.xpose.msra.mxu0 0
      %510 = vmatprep.mubr.bf16.mxu0 0
      %511 = vmatmul.mubr.bf16.gmra.mrb[0].mxu0 %v473
      %v512 = vpop.f32.mrb[0].mxu0
      %v513 = vadd.f32 %v377, %v512
      %v514 = vpop.f32.mrb[0].mxu0
      %v515 = vpop.f32.mrb[0].mxu0
      %v516 = vpop.f32.mrb[0].mxu0
      %517 = vdwg.mxu0
      %v519 = vsel %vm379, %v353, 0
      %v522 = vsel %vm379, %v361, 0
      %524 = vmatprep.subr.bf16.mxu0 0
      %525 = vmatpush1.bf16.xpose.msra.mxu0 %v522
      %526 = vmatprep.subr.bf16.mxu0 0
      %527 = vmatpush1.bf16.xpose.msra.mxu0 0
      %528 = vmatprep.subr.bf16.mxu0 0
      %529 = vmatpush1.bf16.xpose.msra.mxu0 0
      %530 = vmatprep.subr.bf16.mxu0 0
      %531 = vmatpush1.bf16.xpose.msra.mxu0 0
      %532 = vmatprep.subr.bf16.mxu0 0
      %533 = vmatpush1.bf16.xpose.msra.mxu0 0
      %534 = vmatprep.subr.bf16.mxu0 0
      %535 = vmatpush1.bf16.xpose.msra.mxu0 0
      %536 = vmatprep.subr.bf16.mxu0 0
      %537 = vmatpush1.bf16.xpose.msra.mxu0 0
      %538 = vmatprep.subr.bf16.mxu0 0
      %539 = vmatpush1.bf16.xpose.msra.mxu0 0
      %540 = vmatprep.subr.bf16.mxu0 0
      %541 = vmatpush1.bf16.xpose.msra.mxu0 0
      %542 = vmatprep.subr.bf16.mxu0 0
      %543 = vmatpush1.bf16.xpose.msra.mxu0 0
      %544 = vmatprep.subr.bf16.mxu0 0
      %545 = vmatpush1.bf16.xpose.msra.mxu0 0
      %546 = vmatprep.subr.bf16.mxu0 0
      %547 = vmatpush1.bf16.xpose.msra.mxu0 0
      %548 = vmatprep.subr.bf16.mxu0 0
      %549 = vmatpush1.bf16.xpose.msra.mxu0 0
      %550 = vmatprep.subr.bf16.mxu0 0
      %551 = vmatpush1.bf16.xpose.msra.mxu0 0
      %552 = vmatprep.subr.bf16.mxu0 0
      %553 = vmatpush1.bf16.xpose.msra.mxu0 0
      %554 = vmatprep.subr.bf16.mxu0 0
      %555 = vmatpush1.bf16.xpose.msra.mxu0 0
      %556 = vmatprep.mubr.bf16.mxu0 0
      %557 = vmatmul.mubr.bf16.gmra.mrb[0].mxu0 %v519
      %v558 = vpop.f32.mrb[0].mxu0
      %v559 = vadd.f32 %v377, %v558
      %v560 = vpop.f32.mrb[0].mxu0
      %v561 = vpop.f32.mrb[0].mxu0
      %v562 = vpop.f32.mrb[0].mxu0
      %563 = vdwg.mxu0
      %v564 = vsel %vm371, 1, 0
      %vm565 = vcmp.eq.s32.totalorder %v564, 1
      %v566 = vsel %vm565, %v421, -1e+30
      %v567 = vsel %vm565, %v467, -1e+30
      %v568 = vsel %vm565, %v513, -1e+30
      %v569 = vsel %vm565, %v559, -1e+30
      %v570 = vld [vmem:[#allocation2] sm:$0xff]
      %v571 = vld [vmem:[#allocation2 + $0x8] sm:$0xff]
      %v572 = vld [vmem:[#allocation2 + $0x10] sm:$0xff]
      %v573 = vld [vmem:[#allocation2 + $0x18] sm:$0xff]
      %v574 = vsel %vm379, %v566, -inf
      %575 = vmax.xlane.f32.xlu0 %v574
      %v576 = vpop.xlane.xlu0 %575
      %v577 = vsel %vm379, %v567, -inf
      %578 = vmax.xlane.f32.xlu0 %v577
      %v579 = vpop.xlane.xlu0 %578
      %v580 = vsel %vm379, %v568, -inf
      %581 = vmax.xlane.f32.xlu0 %v580
      %v582 = vpop.xlane.xlu0 %581
      %v583 = vsel %vm379, %v569, -inf
      %584 = vmax.xlane.f32.xlu0 %v583
      %v585 = vpop.xlane.xlu0 %584
      %v586 = vmax.f32 %v570, %v576
      %v587 = vmax.f32 %v571, %v579
      %v588 = vmax.f32 %v572, %v582
      %v589 = vmax.f32 %v573, %v585
      %v590 = vsub.f32 %v570, %v586
      %v591 = vsub.f32 %v571, %v587
      %v592 = vsub.f32 %v572, %v588
      %v593 = vsub.f32 %v573, %v589
      %v594 = vmul.f32 %v590, 1.442695
      %v595 = vpow.pop %v594
      %v596 = vmul.f32 %v591, 1.442695
      %v597 = vpow.pop %v596
      %v598 = vmul.f32 %v592, 1.442695
      %v599 = vpow.pop %v598
      %v600 = vmul.f32 %v593, 1.442695
      %v601 = vpow.pop %v600
      %603 = vset.pattern.permute.xlu0 0
      %604 = vperm.xlu0 %603, %v586
      %v605 = vpop.permute.xlu0 %604
      %608 = vset.pattern.permute.xlu0 0
      %609 = vperm.xlu0 %608, %v587
      %v610 = vpop.permute.xlu0 %609
      %613 = vset.pattern.permute.xlu0 0
      %614 = vperm.xlu0 %613, %v588
      %v615 = vpop.permute.xlu0 %614
      %618 = vset.pattern.permute.xlu0 0
      %619 = vperm.xlu0 %618, %v589
      %v620 = vpop.permute.xlu0 %619
      %v622 = vsub.f32 %v566, %v605
      %v623 = vsub.f32 %v567, %v610
      %v624 = vsub.f32 %v568, %v615
      %v625 = vsub.f32 %v569, %v620
      %v626 = vmul.f32 %v622, 1.442695
      %v627 = vpow.pop %v626
      %v628 = vmul.f32 %v623, 1.442695
      %v629 = vpow.pop %v628
      %v630 = vmul.f32 %v624, 1.442695
      %v631 = vpow.pop %v630
      %v632 = vmul.f32 %v625, 1.442695
      %v633 = vpow.pop %v632
      %v634 = vlaneseq
      %v635 = vshrl.u32 %v634, 7
      %v636 = vadd.s32 %v369, %v635
      %vm637 = vcmp.lt.s32.totalorder %v636, 8
      %v638 = vsel %vm637, 1, 0
      %vm639 = vcmp.eq.s32.totalorder %v638, 1
      %v640 = vsel %vm639, %v362, 0.0
      %v641 = vsel %vm639, %v363, 0.0
      %v642 = vsel %vm639, %v364, 0.0
      %v643 = vsel %vm639, %v365, 0.0
      %v644 = vld [vmem:[#allocation3] sm:$0xff]
      %v645 = vld [vmem:[#allocation3 + $0x8] sm:$0xff]
      %v646 = vld [vmem:[#allocation3 + $0x10] sm:$0xff]
      %v647 = vld [vmem:[#allocation3 + $0x18] sm:$0xff]
      %v648 = vmul.f32 %v595, %v644
      %v649 = vmul.f32 %v597, %v645
      %v650 = vmul.f32 %v599, %v646
      %v651 = vmul.f32 %v601, %v647
      %v652 = vsel %vm379, %v627, 0.0
      %653 = vadd.xlane.f32.xlu0 %v652
      %v654 = vpop.xlane.xlu0 %653
      %v655 = vsel %vm379, %v629, 0.0
      %656 = vadd.xlane.f32.xlu0 %v655
      %v657 = vpop.xlane.xlu0 %656
      %v658 = vsel %vm379, %v631, 0.0
      %659 = vadd.xlane.f32.xlu0 %v658
      %v660 = vpop.xlane.xlu0 %659
      %v661 = vsel %vm379, %v633, 0.0
      %662 = vadd.xlane.f32.xlu0 %v661
      %v663 = vpop.xlane.xlu0 %662
      %v664 = vadd.f32 %v648, %v654
      %v665 = vadd.f32 %v649, %v657
      %v666 = vadd.f32 %v650, %v660
      %v667 = vadd.f32 %v651, %v663
      %vm668 = vcmask 7168
      %669 = vst.msk [vmem:[#allocation3] sm:$0xff] %vm668, %v664
      %670 = vst.msk [vmem:[#allocation3 + $0x8] sm:$0xff] %vm668, %v665
      %671 = vst.msk [vmem:[#allocation3 + $0x10] sm:$0xff] %vm668, %v666
      %672 = vst.msk [vmem:[#allocation3 + $0x18] sm:$0xff] %vm668, %v667
      %v673 = vld [vmem:[#allocation4] sm:$0xff]
      %v674 = vld [vmem:[#allocation4 + $0x8] sm:$0xff]
      %v675 = vld [vmem:[#allocation4 + $0x10] sm:$0xff]
      %v676 = vld [vmem:[#allocation4 + $0x18] sm:$0xff]
      %678 = vset.pattern.permute.xlu0 0
      %679 = vperm.xlu0 %678, %v595
      %v680 = vpop.permute.xlu0 %679
      %683 = vset.pattern.permute.xlu0 0
      %684 = vperm.xlu0 %683, %v597
      %v685 = vpop.permute.xlu0 %684
      %688 = vset.pattern.permute.xlu0 0
      %689 = vperm.xlu0 %688, %v599
      %v690 = vpop.permute.xlu0 %689
      %693 = vset.pattern.permute.xlu0 0
      %694 = vperm.xlu0 %693, %v601
      %v695 = vpop.permute.xlu0 %694
      %v697 = vmul.f32 %v680, %v673
      %v698 = vmul.f32 %v685, %v674
      %v699 = vmul.f32 %v690, %v675
      %v700 = vmul.f32 %v695, %v676
      %v701 = vpack.c.bf16 %v627, %v627
      %v702 = vpack.c.bf16 %v629, %v629
      %v703 = vpack.c.bf16 %v631, %v631
      %v704 = vpack.c.bf16 %v633, %v633
      %v705 = vpack.c.bf16 %v640, %v640
      %v706 = vpack.c.bf16 %v641, %v641
      %v707 = vpack.c.bf16 %v642, %v642
      %v708 = vpack.c.bf16 %v643, %v643
      %v710 = vsel %vm379, %v701, 0
      %vm712 = vcmask 1043456
      %v714 = vsel %vm712, %v705, 0
      %716 = vmatprep.subr.bf16.mxu0 0
      %717 = vmatpush1.bf16.msra.mxu0 %v714
      %718 = vmatprep.subr.bf16.mxu0 0
      %719 = vmatpush1.bf16.msra.mxu0 0
      %720 = vmatprep.subr.bf16.mxu0 0
      %721 = vmatpush1.bf16.msra.mxu0 0
      %722 = vmatprep.subr.bf16.mxu0 0
      %723 = vmatpush1.bf16.msra.mxu0 0
      %724 = vmatprep.subr.bf16.mxu0 0
      %725 = vmatpush1.bf16.msra.mxu0 0
      %726 = vmatprep.subr.bf16.mxu0 0
      %727 = vmatpush1.bf16.msra.mxu0 0
      %728 = vmatprep.subr.bf16.mxu0 0
      %729 = vmatpush1.bf16.msra.mxu0 0
      %730 = vmatprep.subr.bf16.mxu0 0
      %731 = vmatpush1.bf16.msra.mxu0 0
      %732 = vmatprep.subr.bf16.mxu0 0
      %733 = vmatpush1.bf16.msra.mxu0 0
      %734 = vmatprep.subr.bf16.mxu0 0
      %735 = vmatpush1.bf16.msra.mxu0 0
      %736 = vmatprep.subr.bf16.mxu0 0
      %737 = vmatpush1.bf16.msra.mxu0 0
      %738 = vmatprep.subr.bf16.mxu0 0
      %739 = vmatpush1.bf16.msra.mxu0 0
      %740 = vmatprep.subr.bf16.mxu0 0
      %741 = vmatpush1.bf16.msra.mxu0 0
      %742 = vmatprep.subr.bf16.mxu0 0
      %743 = vmatpush1.bf16.msra.mxu0 0
      %744 = vmatprep.subr.bf16.mxu0 0
      %745 = vmatpush1.bf16.msra.mxu0 0
      %746 = vmatprep.subr.bf16.mxu0 0
      %747 = vmatpush1.bf16.msra.mxu0 0
      %748 = vmatprep.mubr.bf16.mxu0 0
      %749 = vmatmul.mubr.bf16.gmra.mrb[0].mxu0 %v710
      %v750 = vpop.f32.mrb[0].mxu0
      %v751 = vadd.f32 0.0, %v750
      %v752 = vpop.f32.mrb[0].mxu0
      %v753 = vpop.f32.mrb[0].mxu0
      %v754 = vpop.f32.mrb[0].mxu0
      %755 = vdwg.mxu0
      %v757 = vsel %vm379, %v702, 0
      %v760 = vsel %vm712, %v706, 0
      %762 = vmatprep.subr.bf16.mxu0 0
      %763 = vmatpush1.bf16.msra.mxu0 %v760
      %764 = vmatprep.subr.bf16.mxu0 0
      %765 = vmatpush1.bf16.msra.mxu0 0
      %766 = vmatprep.subr.bf16.mxu0 0
      %767 = vmatpush1.bf16.msra.mxu0 0
      %768 = vmatprep.subr.bf16.mxu0 0
      %769 = vmatpush1.bf16.msra.mxu0 0
      %770 = vmatprep.subr.bf16.mxu0 0
      %771 = vmatpush1.bf16.msra.mxu0 0
      %772 = vmatprep.subr.bf16.mxu0 0
      %773 = vmatpush1.bf16.msra.mxu0 0
      %774 = vmatprep.subr.bf16.mxu0 0
      %775 = vmatpush1.bf16.msra.mxu0 0
      %776 = vmatprep.subr.bf16.mxu0 0
      %777 = vmatpush1.bf16.msra.mxu0 0
      %778 = vmatprep.subr.bf16.mxu0 0
      %779 = vmatpush1.bf16.msra.mxu0 0
      %780 = vmatprep.subr.bf16.mxu0 0
      %781 = vmatpush1.bf16.msra.mxu0 0
      %782 = vmatprep.subr.bf16.mxu0 0
      %783 = vmatpush1.bf16.msra.mxu0 0
      %784 = vmatprep.subr.bf16.mxu0 0
      %785 = vmatpush1.bf16.msra.mxu0 0
      %786 = vmatprep.subr.bf16.mxu0 0
      %787 = vmatpush1.bf16.msra.mxu0 0
      %788 = vmatprep.subr.bf16.mxu0 0
      %789 = vmatpush1.bf16.msra.mxu0 0
      %790 = vmatprep.subr.bf16.mxu0 0
      %791 = vmatpush1.bf16.msra.mxu0 0
      %792 = vmatprep.subr.bf16.mxu0 0
      %793 = vmatpush1.bf16.msra.mxu0 0
      %794 = vmatprep.mubr.bf16.mxu0 0
      %795 = vmatmul.mubr.bf16.gmra.mrb[0].mxu0 %v757
      %v796 = vpop.f32.mrb[0].mxu0
      %v797 = vadd.f32 0.0, %v796
      %v798 = vpop.f32.mrb[0].mxu0
      %v799 = vpop.f32.mrb[0].mxu0
      %v800 = vpop.f32.mrb[0].mxu0
      %801 = vdwg.mxu0
      %v803 = vsel %vm379, %v703, 0
      %v806 = vsel %vm712, %v707, 0
      %808 = vmatprep.subr.bf16.mxu0 0
      %809 = vmatpush1.bf16.msra.mxu0 %v806
      %810 = vmatprep.subr.bf16.mxu0 0
      %811 = vmatpush1.bf16.msra.mxu0 0
      %812 = vmatprep.subr.bf16.mxu0 0
      %813 = vmatpush1.bf16.msra.mxu0 0
      %814 = vmatprep.subr.bf16.mxu0 0
      %815 = vmatpush1.bf16.msra.mxu0 0
      %816 = vmatprep.subr.bf16.mxu0 0
      %817 = vmatpush1.bf16.msra.mxu0 0
      %818 = vmatprep.subr.bf16.mxu0 0
      %819 = vmatpush1.bf16.msra.mxu0 0
      %820 = vmatprep.subr.bf16.mxu0 0
      %821 = vmatpush1.bf16.msra.mxu0 0
      %822 = vmatprep.subr.bf16.mxu0 0
      %823 = vmatpush1.bf16.msra.mxu0 0
      %824 = vmatprep.subr.bf16.mxu0 0
      %825 = vmatpush1.bf16.msra.mxu0 0
      %826 = vmatprep.subr.bf16.mxu0 0
      %827 = vmatpush1.bf16.msra.mxu0 0
      %828 = vmatprep.subr.bf16.mxu0 0
      %829 = vmatpush1.bf16.msra.mxu0 0
      %830 = vmatprep.subr.bf16.mxu0 0
      %831 = vmatpush1.bf16.msra.mxu0 0
      %832 = vmatprep.subr.bf16.mxu0 0
      %833 = vmatpush1.bf16.msra.mxu0 0
      %834 = vmatprep.subr.bf16.mxu0 0
      %835 = vmatpush1.bf16.msra.mxu0 0
      %836 = vmatprep.subr.bf16.mxu0 0
      %837 = vmatpush1.bf16.msra.mxu0 0
      %838 = vmatprep.subr.bf16.mxu0 0
      %839 = vmatpush1.bf16.msra.mxu0 0
      %840 = vmatprep.mubr.bf16.mxu0 0
      %841 = vmatmul.mubr.bf16.gmra.mrb[0].mxu0 %v803
      %v842 = vpop.f32.mrb[0].mxu0
      %v843 = vadd.f32 0.0, %v842
      %v844 = vpop.f32.mrb[0].mxu0
      %v845 = vpop.f32.mrb[0].mxu0
      %v846 = vpop.f32.mrb[0].mxu0
      %847 = vdwg.mxu0
      %v849 = vsel %vm379, %v704, 0
      %v852 = vsel %vm712, %v708, 0
      %854 = vmatprep.subr.bf16.mxu0 0
      %855 = vmatpush1.bf16.msra.mxu0 %v852
      %856 = vmatprep.subr.bf16.mxu0 0
      %857 = vmatpush1.bf16.msra.mxu0 0
      %858 = vmatprep.subr.bf16.mxu0 0
      %859 = vmatpush1.bf16.msra.mxu0 0
      %860 = vmatprep.subr.bf16.mxu0 0
      %861 = vmatpush1.bf16.msra.mxu0 0
      %862 = vmatprep.subr.bf16.mxu0 0
      %863 = vmatpush1.bf16.msra.mxu0 0
      %864 = vmatprep.subr.bf16.mxu0 0
      %865 = vmatpush1.bf16.msra.mxu0 0
      %866 = vmatprep.subr.bf16.mxu0 0
      %867 = vmatpush1.bf16.msra.mxu0 0
      %868 = vmatprep.subr.bf16.mxu0 0
      %869 = vmatpush1.bf16.msra.mxu0 0
      %870 = vmatprep.subr.bf16.mxu0 0
      %871 = vmatpush1.bf16.msra.mxu0 0
      %872 = vmatprep.subr.bf16.mxu0 0
      %873 = vmatpush1.bf16.msra.mxu0 0
      %874 = vmatprep.subr.bf16.mxu0 0
      %875 = vmatpush1.bf16.msra.mxu0 0
      %876 = vmatprep.subr.bf16.mxu0 0
      %877 = vmatpush1.bf16.msra.mxu0 0
      %878 = vmatprep.subr.bf16.mxu0 0
      %879 = vmatpush1.bf16.msra.mxu0 0
      %880 = vmatprep.subr.bf16.mxu0 0
      %881 = vmatpush1.bf16.msra.mxu0 0
      %882 = vmatprep.subr.bf16.mxu0 0
      %883 = vmatpush1.bf16.msra.mxu0 0
      %884 = vmatprep.subr.bf16.mxu0 0
      %885 = vmatpush1.bf16.msra.mxu0 0
      %886 = vmatprep.mubr.bf16.mxu0 0
      %887 = vmatmul.mubr.bf16.gmra.mrb[0].mxu0 %v849
      %v888 = vpop.f32.mrb[0].mxu0
      %v889 = vadd.f32 0.0, %v888
      %v890 = vpop.f32.mrb[0].mxu0
      %v891 = vpop.f32.mrb[0].mxu0
      %v892 = vpop.f32.mrb[0].mxu0
      %893 = vdwg.mxu0
      %v894 = vadd.f32 %v697, %v751
      %v895 = vadd.f32 %v698, %v797
      %v896 = vadd.f32 %v699, %v843
      %v897 = vadd.f32 %v700, %v889
      %898 = vst.msk [vmem:[#allocation4] sm:$0xff] %vm379, %v894
      %899 = vst.msk [vmem:[#allocation4 + $0x8] sm:$0xff] %vm379, %v895
      %900 = vst.msk [vmem:[#allocation4 + $0x10] sm:$0xff] %vm379, %v896
      %901 = vst.msk [vmem:[#allocation4 + $0x18] sm:$0xff] %vm379, %v897
      %902 = vst.msk [vmem:[#allocation2] sm:$0xff] %vm668, %v586
      %903 = vst.msk [vmem:[#allocation2 + $0x8] sm:$0xff] %vm668, %v587
      %904 = vst.msk [vmem:[#allocation2 + $0x10] sm:$0xff] %vm668, %v588
      %905 = vst.msk [vmem:[#allocation2 + $0x18] sm:$0xff] %vm668, %v589
      // Predicated region
      $region41: #{_lambda_.30} parent=35 // pred_check
        %p906 = pneg %p324
      $region42: #{_lambda_.30} parent=35 // pred_check_branch
        %908 = sbr.rel (%p906) target = $region44
      $region43: #{_lambda_.30} parent=35 // pred_region
        %v909 = vld [vmem:[#allocation4] sm:$0xff]
        %v910 = vld [vmem:[#allocation4 + $0x8] sm:$0xff]
        %v911 = vld [vmem:[#allocation4 + $0x10] sm:$0xff]
        %v912 = vld [vmem:[#allocation4 + $0x18] sm:$0xff]
        %v913 = vld [vmem:[#allocation3] sm:$0xff]
        %v914 = vld [vmem:[#allocation3 + $0x8] sm:$0xff]
        %v915 = vld [vmem:[#allocation3 + $0x10] sm:$0xff]
        %v916 = vld [vmem:[#allocation3 + $0x18] sm:$0xff]
        %v917 = vrcp.pop %v913
        %v918 = vrcp.pop %v914
        %v919 = vrcp.pop %v915
        %v920 = vrcp.pop %v916
        %922 = vset.pattern.permute.xlu0 0
        %923 = vperm.xlu0 %922, %v917
        %v924 = vpop.permute.xlu0 %923
        %927 = vset.pattern.permute.xlu0 0
        %928 = vperm.xlu0 %927, %v918
        %v929 = vpop.permute.xlu0 %928
        %932 = vset.pattern.permute.xlu0 0
        %933 = vperm.xlu0 %932, %v919
        %v934 = vpop.permute.xlu0 %933
        %937 = vset.pattern.permute.xlu0 0
        %938 = vperm.xlu0 %937, %v920
        %v939 = vpop.permute.xlu0 %938
        %v941 = vmul.f32 %v909, %v924
        %v942 = vmul.f32 %v910, %v929
        %v943 = vmul.f32 %v911, %v934
        %v944 = vmul.f32 %v912, %v939
        %945 = vst.msk [vmem:[%s322] sm:$0xff] %vm379, %v941
        %946 = vst.msk [vmem:[%s322 + $0x8] sm:$0xff] %vm379, %v942
        %947 = vst.msk [vmem:[%s322 + $0x10] sm:$0xff] %vm379, %v943
        %948 = vst.msk [vmem:[%s322 + $0x18] sm:$0xff] %vm379, %v944
      $region44: #{_lambda_.30} parent=35 // pred_fallthru
        _
      %p949 = scmp.lt.s32.totalorder %s20, 1
      %s950 = scalar_select %p949, %s20, 1
      %p951 = scmp.lt.s32.totalorder %s21, 0
      %s952 = scalar_select %p951, %s21, 0
      %s953 = smul.addr %s950, 4
      %s954 = sadd.s32 %s952, %s953
      %s955 = smul.addr %s954, 8
      %s956 = scalar_lea.vmem %s4, %s955
      // Predicated region
      $region45: #{_lambda_.30} parent=35 // pred_check
        %p957 = pneg %p166
      $region46: #{_lambda_.30} parent=35 // pred_check_branch
        %959 = sbr.rel (%p957) target = $region48
      $region47: #{_lambda_.30} parent=35 // pred_region
        _
      $region48: #{_lambda_.30} parent=35 // pred_fallthru
        _
    $region36: #{_lambda_.30} parent=5 // pred_fallthru
      _
    %p960 = scmp.le.s32.totalorder 2, %s10
    // Predicated region
    $region49: #{_lambda_.30} parent=5 // pred_check
      %p961 = pneg %p960
    $region50: #{_lambda_.30} parent=5 // pred_check_branch
      %963 = sbr.rel (%p961) target = $region52
    $region51: #{_lambda_.30} parent=5 // pred_region
      %s964 = ssub.s32 %s10, 2
      // Predicated region
      $region53: #{_lambda_.30} parent=51 // pred_check
        %p965 = pneg %p172
      $region54: #{_lambda_.30} parent=51 // pred_check_branch
        %967 = sbr.rel (%p965) target = $region56
      $region55: #{_lambda_.30} parent=51 // pred_region
        %p968 = scmp.lt.s32.totalorder %s23, 1
        %s969 = scalar_select %p968, %s23, 1
        %p970 = scmp.lt.s32.totalorder %s24, 0
        %s971 = scalar_select %p970, %s24, 0
        %s972 = smul.addr %s969, 4
        %s973 = sadd.s32 %s971, %s972
        %s974 = smul.addr %s973, 8
        %s975 = scalar_lea.vmem %s4, %s974
      $region56: #{_lambda_.30} parent=51 // pred_fallthru
        _
    $region52: #{_lambda_.30} parent=5 // pred_fallthru
      _
  $region6: #{_lambda_.30} parent=0 // loop_footer
    %s14 = sadd.s32 1, %s10
  $region7: #{_lambda_.30} parent=0 // loop_footer_branch
    %9 = sbr.rel target = $region3
  $region8: #{_lambda_.30} parent=0 // loop_exit
    _

// kernel: _lambda_.33
$region0: #{_lambda_.33}
  #allocation0 [shape = 'u32[]', space=smem, size = 0x4, offset = 0x4, fixed_abs, tag = 'smem constant byte address 0x4 - core index']
  #allocation1 [shape = 'u32[144,128]{1,0:T(1,128)}', space=vmem, size = 0x12000, scoped, tag = 'internal scratch']
  %s0 = inlined_call_operand.vmem [shape: f32[2,16,32], index: 0, kind: input, shape index: {}]
  %s1 = inlined_call_operand.vmem [shape: f32[2,8,32], index: 1, kind: input, shape index: {}]
  %s2 = inlined_call_operand.vmem [shape: f32[7,32], index: 2, kind: input, shape index: {}]
  %s3 = inlined_call_operand.vmem [shape: f32[1,32], index: 3, kind: input, shape index: {}]
  %s4 = inlined_call_operand.vmem [shape: f32[1,32], index: 4, kind: input, shape index: {}]
  %s5 = inlined_call_operand.vmem [shape: f32[1,32], index: 5, kind: input, shape index: {}]
  %s6 = inlined_call_operand.vmem [shape: f32[2,8,32], index: 6, kind: output, shape index: {}]
  %s7 = sld [smem:[#allocation0]]
  $region57: #{_lambda_.33} parent=0
    _
  %s9 = ssub.s32 1, %s7
  %s10 = scalar_select 0, %s9, %s7
  loop: start=0, step=1, limit=4
  $region2: #{_lambda_.33} parent=0 // loop_pre_header
    _
  $region3: #{_lambda_.33} parent=0 // loop_header
    %s12 = sphi 0, %s16
    %p13 = scmp.ge.s32.totalorder %s12, 4
    %s19 = sphi 0, %s31
    %s20 = sphi 0, %s27
    %s21 = sphi 0, %s19
    %s22 = sphi 0, %s20
    %s23 = sphi 0, %s21
    %s24 = sphi 0, %s22
    %s36 = sphi 0, %s38
    %s39 = sphi 0, %s36
    %s40 = sphi 0, %s39
    %s56 = sphi 0, %s40
    %s64 = sphi 0, %s66
    %s67 = sphi 0, %s64
    %s68 = sphi 0, %s67
    %s84 = sphi 0, %s68
    %s88 = sphi 0, %s88
    %s90 = sphi 0, %s88
    %s91 = sphi 0, %s90
    %s105 = sphi 0, %s91
    %s109 = sphi 0, %s109
    %s111 = sphi 0, %s109
    %s112 = sphi 0, %s111
    %s126 = sphi 0, %s112
    %s130 = sphi 0, %s130
    %s132 = sphi 0, %s130
    %s133 = sphi 0, %s132
    %s147 = sphi 0, %s133
    %s151 = sphi 0, %s151
    %s153 = sphi 0, %s151
    %s154 = sphi 0, %s153
    %s168 = sphi 0, %s154
    %s176 = sphi 0, %s178
    %s179 = sphi 0, %s176
    %s180 = sphi 0, %s179
    %s196 = sphi 0, %s180
  $region4: #{_lambda_.33} parent=0 // loop_header_branch
    %15 = sbr.rel (%p13) target = $region8
  $region5: #{_lambda_.33} parent=0 // loop_body
    %s17 = ssub.s32 %s12, 1
    %s18 = ssub.s32 %s12, 2
    %s25 = sadd.s32 1, %s20
    %p26 = scmp.ge.s32.totalorder %s25, 1
    %s27 = scalar_select %p26, 0, %s25
    %s28 = sadd.s32 1, %s19
    %s29 = scalar_select %p26, %s28, %s19
    %p30 = scmp.ge.s32.totalorder %s29, 2
    %s31 = scalar_select %p30, 0, %s29
    %s32 = ssub.s32 %s19, %s31
    %s33 = ssub.s32 %s20, %s27
    %s34 = sor.u32 %s32, %s33
    %p35 = scmp.eq.s32.totalorder %s34, 0
    %s37 = sadd.s32 %s36, 1
    %s38 = scalar_select %p35, %s36, %s37
    %p41 = pneg %p35
    %p42 = scmp.eq.s32.totalorder %s12, 1
    %p43 = por %p41, %p42
    %p44 = scmp.ne.s32.totalorder %s36, %s39
    %p45 = scmp.eq.s32.totalorder %s12, 0
    %p46 = por %p44, %p45
    %p47 = scmp.ne.s32.totalorder %s36, %s39
    %p48 = scmp.eq.s32.totalorder %s17, 1
    %p49 = por %p47, %p48
    %p50 = scmp.ne.s32.totalorder %s39, %s40
    %p51 = scmp.eq.s32.totalorder %s17, 0
    %p52 = por %p50, %p51
    %p53 = scmp.ne.s32.totalorder %s39, %s40
    %p54 = scmp.eq.s32.totalorder %s18, 1
    %p55 = por %p53, %p54
    %p57 = scmp.ne.s32.totalorder %s40, %s56
    %p58 = scmp.eq.s32.totalorder %s18, 0
    %p59 = por %p57, %p58
    %s60 = ssub.s32 %s19, %s31
    %s61 = ssub.s32 %s20, %s27
    %s62 = sor.u32 %s60, %s61
    %p63 = scmp.eq.s32.totalorder %s62, 0
    %s65 = sadd.s32 %s64, 1
    %s66 = scalar_select %p63, %s64, %s65
    %p69 = pneg %p63
    %p70 = scmp.eq.s32.totalorder %s12, 1
    %p71 = por %p69, %p70
    %p72 = scmp.ne.s32.totalorder %s64, %s67
    %p73 = scmp.eq.s32.totalorder %s12, 0
    %p74 = por %p72, %p73
    %p75 = scmp.ne.s32.totalorder %s64, %s67
    %p76 = scmp.eq.s32.totalorder %s17, 1
    %p77 = por %p75, %p76
    %p78 = scmp.ne.s32.totalorder %s67, %s68
    %p79 = scmp.eq.s32.totalorder %s17, 0
    %p80 = por %p78, %p79
    %p81 = scmp.ne.s32.totalorder %s67, %s68
    %p82 = scmp.eq.s32.totalorder %s18, 1
    %p83 = por %p81, %p82
    %p85 = scmp.ne.s32.totalorder %s68, %s84
    %p86 = scmp.eq.s32.totalorder %s18, 0
    %p87 = por %p85, %p86
    %s89 = sadd.s32 %s88, 1
    %p92 = scmp.eq.s32.totalorder %s12, 1
    %p93 = scmp.ne.s32.totalorder %s88, %s90
    %p94 = scmp.eq.s32.totalorder %s12, 0
    %p95 = por %p93, %p94
    %p96 = scmp.ne.s32.totalorder %s88, %s90
    %p97 = scmp.eq.s32.totalorder %s17, 1
    %p98 = por %p96, %p97
    %p99 = scmp.ne.s32.totalorder %s90, %s91
    %p100 = scmp.eq.s32.totalorder %s17, 0
    %p101 = por %p99, %p100
    %p102 = scmp.ne.s32.totalorder %s90, %s91
    %p103 = scmp.eq.s32.totalorder %s18, 1
    %p104 = por %p102, %p103
    %p106 = scmp.ne.s32.totalorder %s91, %s105
    %p107 = scmp.eq.s32.totalorder %s18, 0
    %p108 = por %p106, %p107
    %s110 = sadd.s32 %s109, 1
    %p113 = scmp.eq.s32.totalorder %s12, 1
    %p114 = scmp.ne.s32.totalorder %s109, %s111
    %p115 = scmp.eq.s32.totalorder %s12, 0
    %p116 = por %p114, %p115
    %p117 = scmp.ne.s32.totalorder %s109, %s111
    %p118 = scmp.eq.s32.totalorder %s17, 1
    %p119 = por %p117, %p118
    %p120 = scmp.ne.s32.totalorder %s111, %s112
    %p121 = scmp.eq.s32.totalorder %s17, 0
    %p122 = por %p120, %p121
    %p123 = scmp.ne.s32.totalorder %s111, %s112
    %p124 = scmp.eq.s32.totalorder %s18, 1
    %p125 = por %p123, %p124
    %p127 = scmp.ne.s32.totalorder %s112, %s126
    %p128 = scmp.eq.s32.totalorder %s18, 0
    %p129 = por %p127, %p128
    %s131 = sadd.s32 %s130, 1
    %p134 = scmp.eq.s32.totalorder %s12, 1
    %p135 = scmp.ne.s32.totalorder %s130, %s132
    %p136 = scmp.eq.s32.totalorder %s12, 0
    %p137 = por %p135, %p136
    %p138 = scmp.ne.s32.totalorder %s130, %s132
    %p139 = scmp.eq.s32.totalorder %s17, 1
    %p140 = por %p138, %p139
    %p141 = scmp.ne.s32.totalorder %s132, %s133
    %p142 = scmp.eq.s32.totalorder %s17, 0
    %p143 = por %p141, %p142
    %p144 = scmp.ne.s32.totalorder %s132, %s133
    %p145 = scmp.eq.s32.totalorder %s18, 1
    %p146 = por %p144, %p145
    %p148 = scmp.ne.s32.totalorder %s133, %s147
    %p149 = scmp.eq.s32.totalorder %s18, 0
    %p150 = por %p148, %p149
    %s152 = sadd.s32 %s151, 1
    %p155 = scmp.eq.s32.totalorder %s12, 1
    %p156 = scmp.ne.s32.totalorder %s151, %s153
    %p157 = scmp.eq.s32.totalorder %s12, 0
    %p158 = por %p156, %p157
    %p159 = scmp.ne.s32.totalorder %s151, %s153
    %p160 = scmp.eq.s32.totalorder %s17, 1
    %p161 = por %p159, %p160
    %p162 = scmp.ne.s32.totalorder %s153, %s154
    %p163 = scmp.eq.s32.totalorder %s17, 0
    %p164 = por %p162, %p163
    %p165 = scmp.ne.s32.totalorder %s153, %s154
    %p166 = scmp.eq.s32.totalorder %s18, 1
    %p167 = por %p165, %p166
    %p169 = scmp.ne.s32.totalorder %s154, %s168
    %p170 = scmp.eq.s32.totalorder %s18, 0
    %p171 = por %p169, %p170
    %s172 = ssub.s32 %s19, %s31
    %s173 = ssub.s32 %s20, %s27
    %s174 = sor.u32 %s172, %s173
    %p175 = scmp.eq.s32.totalorder %s174, 0
    %s177 = sadd.s32 %s176, 1
    %s178 = scalar_select %p175, %s176, %s177
    %p181 = pneg %p175
    %p182 = scmp.eq.s32.totalorder %s12, 1
    %p183 = por %p181, %p182
    %p184 = scmp.ne.s32.totalorder %s176, %s179
    %p185 = scmp.eq.s32.totalorder %s12, 0
    %p186 = por %p184, %p185
    %p187 = scmp.ne.s32.totalorder %s176, %s179
    %p188 = scmp.eq.s32.totalorder %s17, 1
    %p189 = por %p187, %p188
    %p190 = scmp.ne.s32.totalorder %s179, %s180
    %p191 = scmp.eq.s32.totalorder %s17, 0
    %p192 = por %p190, %p191
    %p193 = scmp.ne.s32.totalorder %s179, %s180
    %p194 = scmp.eq.s32.totalorder %s18, 1
    %p195 = por %p193, %p194
    %p197 = scmp.ne.s32.totalorder %s180, %s196
    %p198 = scmp.eq.s32.totalorder %s18, 0
    %p199 = por %p197, %p198
    %p200 = scmp.le.s32.totalorder 1, %s12
    %p201 = scmp.lt.s32.totalorder %s12, 3
    %p202 = pnand %p200, %p201
    %p203 = pneg %p202
    // Predicated region
    $region9: #{_lambda_.33} parent=5 // pred_check
      _
    $region10: #{_lambda_.33} parent=5 // pred_check_branch
      %205 = sbr.rel (%p202) target = $region12
    $region11: #{_lambda_.33} parent=5 // pred_region
      %s206 = ssub.s32 %s12, 1
      // Predicated region
      $region13: #{_lambda_.33} parent=11 // pred_check
        %p207 = pneg %p101
      $region14: #{_lambda_.33} parent=11 // pred_check_branch
        %209 = sbr.rel (%p207) target = $region16
      $region15: #{_lambda_.33} parent=11 // pred_region
        _
      $region16: #{_lambda_.33} parent=11 // pred_fallthru
        _
      // Predicated region
      $region17: #{_lambda_.33} parent=11 // pred_check
        %p210 = pneg %p122
      $region18: #{_lambda_.33} parent=11 // pred_check_branch
        %212 = sbr.rel (%p210) target = $region20
      $region19: #{_lambda_.33} parent=11 // pred_region
        _
      $region20: #{_lambda_.33} parent=11 // pred_fallthru
        _
      // Predicated region
      $region21: #{_lambda_.33} parent=11 // pred_check
        %p213 = pneg %p143
      $region22: #{_lambda_.33} parent=11 // pred_check_branch
        %215 = sbr.rel (%p213) target = $region24
      $region23: #{_lambda_.33} parent=11 // pred_region
        _
      $region24: #{_lambda_.33} parent=11 // pred_fallthru
        _
      // Predicated region
      $region25: #{_lambda_.33} parent=11 // pred_check
        %p216 = pneg %p164
      $region26: #{_lambda_.33} parent=11 // pred_check_branch
        %218 = sbr.rel (%p216) target = $region28
      $region27: #{_lambda_.33} parent=11 // pred_region
        _
      $region28: #{_lambda_.33} parent=11 // pred_fallthru
        _
    $region12: #{_lambda_.33} parent=5 // pred_fallthru
      _
    %p219 = scmp.lt.s32.totalorder %s12, 2
    // Predicated region
    $region29: #{_lambda_.33} parent=5 // pred_check
      %p220 = pneg %p219
    $region30: #{_lambda_.33} parent=5 // pred_check_branch
      %222 = sbr.rel (%p220) target = $region32
    $region31: #{_lambda_.33} parent=5 // pred_region
      // Predicated region
      $region33: #{_lambda_.33} parent=31 // pred_check
        %p223 = pneg %p46
      $region34: #{_lambda_.33} parent=31 // pred_check_branch
        %225 = sbr.rel (%p223) target = $region36
      $region35: #{_lambda_.33} parent=31 // pred_region
        %p226 = scmp.lt.s32.totalorder %s19, 1
        %s227 = scalar_select %p226, %s19, 1
        %p228 = scmp.lt.s32.totalorder %s20, 1
        %s229 = scalar_select %p228, %s20, 1
        %s230 = smul.addr %s227, 2
        %s231 = sadd.s32 %s229, %s230
        %s232 = smul.addr %s231, 8
        %s233 = scalar_lea.vmem %s0, %s232
      $region36: #{_lambda_.33} parent=31 // pred_fallthru
        _
      // Predicated region
      $region37: #{_lambda_.33} parent=31 // pred_check
        %p234 = pneg %p74
      $region38: #{_lambda_.33} parent=31 // pred_check_branch
        %236 = sbr.rel (%p234) target = $region40
      $region39: #{_lambda_.33} parent=31 // pred_region
        %p237 = scmp.lt.s32.totalorder %s19, 1
        %s238 = scalar_select %p237, %s19, 1
        %p239 = scmp.lt.s32.totalorder %s20, 0
        %s240 = scalar_select %p239, %s20, 0
        %s241 = sadd.s32 %s240, %s238
        %s242 = smul.addr %s241, 8
        %s243 = scalar_lea.vmem %s1, %s242
      $region40: #{_lambda_.33} parent=31 // pred_fallthru
        _
    $region32: #{_lambda_.33} parent=5 // pred_fallthru
      _
    %p244 = scmp.le.s32.totalorder 1, %s12
    %p245 = scmp.lt.s32.totalorder %s12, 3
    %p246 = pnand %p244, %p245
    %p247 = pneg %p246
    // Predicated region
    $region41: #{_lambda_.33} parent=5 // pred_check
      _
    $region42: #{_lambda_.33} parent=5 // pred_check_branch
      %249 = sbr.rel (%p246) target = $region44
    $region43: #{_lambda_.33} parent=5 // pred_region
      %s250 = ssub.s32 %s12, 1
      %p251 = scmp.lt.s32.totalorder %s21, 1
      %s252 = scalar_select %p251, %s21, 1
      %p253 = scmp.lt.s32.totalorder %s22, 1
      %s254 = scalar_select %p253, %s22, 1
      %s255 = smul.addr %s252, 2
      %s256 = sadd.s32 %s254, %s255
      %s257 = smul.addr %s256, 8
      %s258 = scalar_lea.vmem %s0, %s257
      %p259 = pneg %p52
      %p260 = pneg %p49
      %p261 = scmp.lt.s32.totalorder %s21, 1
      %s262 = scalar_select %p261, %s21, 1
      %p263 = scmp.lt.s32.totalorder %s22, 0
      %s264 = scalar_select %p263, %s22, 0
      %s265 = sadd.s32 %s264, %s262
      %s266 = smul.addr %s265, 8
      %s267 = scalar_lea.vmem %s1, %s266
      %p268 = pneg %p80
      %p269 = pneg %p77
      %p270 = pneg %p101
      %p271 = pneg %p98
      %p272 = pneg %p122
      %p273 = pneg %p119
      %p274 = pneg %p143
      %p275 = pneg %p140
      %p276 = pneg %p164
      %p277 = pneg %p161
      %p278 = pneg %p192
      %p279 = pneg %p189
      %p280 = scmp.lt.s32.totalorder %s21, 1
      %s281 = scalar_select %p280, %s21, 1
      %p282 = scmp.lt.s32.totalorder %s22, 0
      %s283 = scalar_select %p282, %s22, 0
      %s284 = sadd.s32 %s283, %s281
      %s285 = smul.addr %s284, 8
      %s286 = scalar_lea.vmem %s6, %s285
      %p287 = scmp.lt.s32.totalorder %s21, 1
      %s288 = scalar_select %p287, %s21, 1
      %p289 = scmp.lt.s32.totalorder %s22, 1
      %s290 = scalar_select %p289, %s22, 1
      %s291 = smul.addr %s288, 2
      %s292 = sadd.s32 %s290, %s291
      %s293 = smul.addr %s292, 8
      %s294 = scalar_lea.vmem %s0, %s293
      %p295 = scmp.lt.s32.totalorder %s21, 1
      %s296 = scalar_select %p295, %s21, 1
      %p297 = scmp.lt.s32.totalorder %s22, 0
      %s298 = scalar_select %p297, %s22, 0
      %s299 = sadd.s32 %s298, %s296
      %s300 = smul.addr %s299, 8
      %s301 = scalar_lea.vmem %s1, %s300
      %p302 = scmp.lt.s32.totalorder %s21, 1
      %s303 = scalar_select %p302, %s21, 1
      %p304 = scmp.lt.s32.totalorder %s22, 0
      %s305 = scalar_select %p304, %s22, 0
      %s306 = sadd.s32 %s305, %s303
      %s307 = smul.addr %s306, 8
      %s308 = scalar_lea.vmem %s6, %s307
      %v309 = vld [vmem:[%s294] sm:$0xff]
      %v310 = vld [vmem:[%s301] sm:$0xff]
      %v311 = vld [vmem:[%s2] sm:$0x1]
      %v312 = vlaneseq
      %v313 = vshrl.u32 %v312, 7
      %v314 = vsub.s32 0, %v313
      %v315 = vrot.slane %v311, %v314
      %v316 = vmul.f32 %v309, %v315
      %v317 = vadd.f32 %v316, 0.0
      %v318 = vld [vmem:[%s2 + $0x1] sm:$0x1]
      %v319 = vlaneseq
      %v320 = vshrl.u32 %v319, 7
      %v321 = vsub.s32 0, %v320
      %v322 = vrot.slane %v318, %v321
      %v323 = vmul.f32 %v309, %v322
      %v324 = vmul.f32 %v310, %v322
      %vm327 = vcmask 1046528
      %v328 = vrot.slane %v323, 1
      %v329 = vrot.slane %v324, 1
      %v330 = vsel %vm327, %v328, %v329
      %v332 = vadd.f32 %v317, %v330
      %v333 = vld [vmem:[%s2 + $0x2] sm:$0x1]
      %v334 = vlaneseq
      %v335 = vshrl.u32 %v334, 7
      %v336 = vsub.s32 0, %v335
      %v337 = vrot.slane %v333, %v336
      %v338 = vmul.f32 %v309, %v337
      %v339 = vmul.f32 %v310, %v337
      %vm342 = vcmask 1045504
      %v343 = vrot.slane %v338, 2
      %v344 = vrot.slane %v339, 2
      %v345 = vsel %vm342, %v343, %v344
      %v347 = vadd.f32 %v332, %v345
      %v348 = vld [vmem:[%s2 + $0x3] sm:$0x1]
      %v349 = vlaneseq
      %v350 = vshrl.u32 %v349, 7
      %v351 = vsub.s32 0, %v350
      %v352 = vrot.slane %v348, %v351
      %v353 = vmul.f32 %v309, %v352
      %v354 = vmul.f32 %v310, %v352
      %vm357 = vcmask 1044480
      %v358 = vrot.slane %v353, 3
      %v359 = vrot.slane %v354, 3
      %v360 = vsel %vm357, %v358, %v359
      %v362 = vadd.f32 %v347, %v360
      %v363 = vld [vmem:[%s2 + $0x4] sm:$0x1]
      %v364 = vlaneseq
      %v365 = vshrl.u32 %v364, 7
      %v366 = vsub.s32 0, %v365
      %v367 = vrot.slane %v363, %v366
      %v368 = vmul.f32 %v309, %v367
      %v369 = vmul.f32 %v310, %v367
      %vm372 = vcmask 1043456
      %v373 = vrot.slane %v368, 4
      %v374 = vrot.slane %v369, 4
      %v375 = vsel %vm372, %v373, %v374
      %v377 = vadd.f32 %v362, %v375
      %v378 = vld [vmem:[%s2 + $0x5] sm:$0x1]
      %v379 = vlaneseq
      %v380 = vshrl.u32 %v379, 7
      %v381 = vsub.s32 0, %v380
      %v382 = vrot.slane %v378, %v381
      %v383 = vmul.f32 %v309, %v382
      %v384 = vmul.f32 %v310, %v382
      %vm387 = vcmask 1042432
      %v388 = vrot.slane %v383, 5
      %v389 = vrot.slane %v384, 5
      %v390 = vsel %vm387, %v388, %v389
      %v392 = vadd.f32 %v377, %v390
      %v393 = vld [vmem:[%s2 + $0x6] sm:$0x1]
      %v394 = vlaneseq
      %v395 = vshrl.u32 %v394, 7
      %v396 = vsub.s32 0, %v395
      %v397 = vrot.slane %v393, %v396
      %v398 = vmul.f32 %v309, %v397
      %v399 = vmul.f32 %v310, %v397
      %vm402 = vcmask 1041408
      %v403 = vrot.slane %v398, 6
      %v404 = vrot.slane %v399, 6
      %v405 = vsel %vm402, %v403, %v404
      %v407 = vadd.f32 %v392, %v405
      %v408 = vld [vmem:[%s3] sm:$0x1]
      %v410 = vlaneseq
      %v411 = vshrl.u32 %v410, 7
      %v412 = vsub.s32 0, %v411
      %v413 = vrot.slane %v408, %v412
      %v415 = vadd.f32 %v407, %v413
      %v416 = vld [vmem:[%s4] sm:$0x1]
      %v418 = vlaneseq
      %v419 = vshrl.u32 %v418, 7
      %v420 = vsub.s32 0, %v419
      %v421 = vrot.slane %v416, %v420
      %v423 = vmul.f32 %v415, %v421
      %v424 = vld [vmem:[%s5] sm:$0x1]
      %v426 = vlaneseq
      %v427 = vshrl.u32 %v426, 7
      %v428 = vsub.s32 0, %v427
      %v429 = vrot.slane %v424, %v428
      %v431 = vadd.f32 %v423, %v429
      %v432 = vxor.u32 %v431, 2147483648
      %v433 = vmul.f32 %v432, 1.442695
      %v434 = vpow.pop %v433
      %v435 = vadd.f32 %v434, 1.0
      %v436 = vrcp.pop %v435
      %v437 = vmul.f32 1.0, %v436
      %v438 = vmul.f32 %v431, %v437
      %vm439 = vcmask 261120
      %440 = vst.msk [vmem:[%s308] sm:$0xff] %vm439, %v438
      %p441 = scmp.lt.s32.totalorder %s21, 1
      %s442 = scalar_select %p441, %s21, 1
      %p443 = scmp.lt.s32.totalorder %s22, 0
      %s444 = scalar_select %p443, %s22, 0
      %s445 = sadd.s32 %s444, %s442
      %s446 = smul.addr %s445, 8
      %s447 = scalar_lea.vmem %s6, %s446
      // Predicated region
      $region45: #{_lambda_.33} parent=43 // pred_check
        %p448 = pneg %p189
      $region46: #{_lambda_.33} parent=43 // pred_check_branch
        %450 = sbr.rel (%p448) target = $region48
      $region47: #{_lambda_.33} parent=43 // pred_region
        _
      $region48: #{_lambda_.33} parent=43 // pred_fallthru
        _
    $region44: #{_lambda_.33} parent=5 // pred_fallthru
      _
    %p451 = scmp.le.s32.totalorder 2, %s12
    // Predicated region
    $region49: #{_lambda_.33} parent=5 // pred_check
      %p452 = pneg %p451
    $region50: #{_lambda_.33} parent=5 // pred_check_branch
      %454 = sbr.rel (%p452) target = $region52
    $region51: #{_lambda_.33} parent=5 // pred_region
      %s455 = ssub.s32 %s12, 2
      // Predicated region
      $region53: #{_lambda_.33} parent=51 // pred_check
        %p456 = pneg %p195
      $region54: #{_lambda_.33} parent=51 // pred_check_branch
        %458 = sbr.rel (%p456) target = $region56
      $region55: #{_lambda_.33} parent=51 // pred_region
        %p459 = scmp.lt.s32.totalorder %s23, 1
        %s460 = scalar_select %p459, %s23, 1
        %p461 = scmp.lt.s32.totalorder %s24, 0
        %s462 = scalar_select %p461, %s24, 0
        %s463 = sadd.s32 %s462, %s460
        %s464 = smul.addr %s463, 8
        %s465 = scalar_lea.vmem %s6, %s464
      $region56: #{_lambda_.33} parent=51 // pred_fallthru
        _
    $region52: #{_lambda_.33} parent=5 // pred_fallthru
      _
  $region6: #{_lambda_.33} parent=0 // loop_footer
    %s16 = sadd.s32 1, %s12
  $region7: #{_lambda_.33} parent=0 // loop_footer_branch
    %11 = sbr.rel target = $region3
  $region8: #{_lambda_.33} parent=0 // loop_exit
    _

// kernel: _lambda_.32
$region0: #{_lambda_.32}
  #allocation0 [shape = 'u32[]', space=smem, size = 0x4, offset = 0x4, fixed_abs, tag = 'smem constant byte address 0x4 - core index']
  #allocation1 [shape = 'u32[144,128]{1,0:T(1,128)}', space=vmem, size = 0x12000, scoped, tag = 'internal scratch']
  %s0 = inlined_call_operand.vmem [shape: f32[16,32], index: 0, kind: input, shape index: {}]
  %s1 = inlined_call_operand.vmem [shape: bf16[32,32], index: 1, kind: input, shape index: {}]
  %s2 = inlined_call_operand.vmem [shape: f32[1,32], index: 2, kind: input, shape index: {}]
  %s3 = inlined_call_operand.vmem [shape: f32[1,32], index: 3, kind: input, shape index: {}]
  %s4 = inlined_call_operand.vmem [shape: f32[1,32], index: 4, kind: input, shape index: {}]
  %s5 = inlined_call_operand.vmem [shape: bf16[32,32], index: 5, kind: input, shape index: {}]
  %s6 = inlined_call_operand.vmem [shape: f32[1,32], index: 6, kind: input, shape index: {}]
  %s7 = inlined_call_operand.vmem [shape: f32[16,32], index: 7, kind: output, shape index: {}]
  %s8 = sld [smem:[#allocation0]]
  $region38: #{_lambda_.32} parent=0
    _
  %s10 = ssub.s32 1, %s8
  %s11 = scalar_select 0, %s10, %s8
  // Predicated region
  $region2: #{_lambda_.32} parent=0 // pred_check
    _
  $region3: #{_lambda_.32} parent=0 // pred_check_branch
    %13 = sbr.rel (0) target = $region5
  $region4: #{_lambda_.32} parent=0 // pred_region
    _
  $region5: #{_lambda_.32} parent=0 // pred_fallthru
    _
  // Predicated region
  $region6: #{_lambda_.32} parent=0 // pred_check
    _
  $region7: #{_lambda_.32} parent=0 // pred_check_branch
    %15 = sbr.rel (0) target = $region9
  $region8: #{_lambda_.32} parent=0 // pred_region
    _
  $region9: #{_lambda_.32} parent=0 // pred_fallthru
    _
  // Predicated region
  $region10: #{_lambda_.32} parent=0 // pred_check
    _
  $region11: #{_lambda_.32} parent=0 // pred_check_branch
    %17 = sbr.rel (0) target = $region13
  $region12: #{_lambda_.32} parent=0 // pred_region
    _
  $region13: #{_lambda_.32} parent=0 // pred_fallthru
    _
  // Predicated region
  $region14: #{_lambda_.32} parent=0 // pred_check
    _
  $region15: #{_lambda_.32} parent=0 // pred_check_branch
    %19 = sbr.rel (0) target = $region17
  $region16: #{_lambda_.32} parent=0 // pred_region
    _
  $region17: #{_lambda_.32} parent=0 // pred_fallthru
    _
  // Predicated region
  $region18: #{_lambda_.32} parent=0 // pred_check
    _
  $region19: #{_lambda_.32} parent=0 // pred_check_branch
    %21 = sbr.rel (0) target = $region21
  $region20: #{_lambda_.32} parent=0 // pred_region
    _
  $region21: #{_lambda_.32} parent=0 // pred_fallthru
    _
  // Predicated region
  $region22: #{_lambda_.32} parent=0 // pred_check
    _
  $region23: #{_lambda_.32} parent=0 // pred_check_branch
    %23 = sbr.rel (0) target = $region25
  $region24: #{_lambda_.32} parent=0 // pred_region
    _
  $region25: #{_lambda_.32} parent=0 // pred_fallthru
    _
  // Predicated region
  $region26: #{_lambda_.32} parent=0 // pred_check
    _
  $region27: #{_lambda_.32} parent=0 // pred_check_branch
    %25 = sbr.rel (0) target = $region29
  $region28: #{_lambda_.32} parent=0 // pred_region
    _
  $region29: #{_lambda_.32} parent=0 // pred_fallthru
    _
  %v27 = vld [vmem:[%s0] sm:$0xff]
  %v28 = vld [vmem:[%s0 + $0x8] sm:$0xff]
  %vm29 = vcmask 261120
  %v30 = vsel %vm29, %v27, 0.0
  %31 = vadd.xlane.f32.xlu0 %v30
  %v32 = vpop.xlane.xlu0 %31
  %v33 = vsel %vm29, %v28, 0.0
  %34 = vadd.xlane.f32.xlu0 %v33
  %v35 = vpop.xlane.xlu0 %34
  %v36 = vrcp.pop 32.0
  %v37 = vmul.f32 %v32, %v36
  %v38 = vmul.f32 %v35, %v36
  %v39 = vsub.f32 %v27, %v37
  %v40 = vsub.f32 %v28, %v38
  %v41 = vmul.f32 %v39, %v39
  %v42 = vmul.f32 %v40, %v40
  %v43 = vsel %vm29, %v41, 0.0
  %44 = vadd.xlane.f32.xlu0 %v43
  %v45 = vpop.xlane.xlu0 %44
  %v46 = vsel %vm29, %v42, 0.0
  %47 = vadd.xlane.f32.xlu0 %v46
  %v48 = vpop.xlane.xlu0 %47
  %v49 = vmul.f32 %v45, %v36
  %v50 = vmul.f32 %v48, %v36
  %v51 = vadd.f32 %v49, 1e-05
  %v52 = vadd.f32 %v50, 1e-05
  %v53 = vrsqrt.pop %v51
  %v54 = vrsqrt.pop %v52
  %v55 = vmul.f32 %v39, %v53
  %v56 = vmul.f32 %v40, %v54
  %v57 = vld [vmem:[%s3] sm:$0x1]
  %v59 = vlaneseq
  %v60 = vshrl.u32 %v59, 7
  %v61 = vsub.s32 0, %v60
  %v62 = vrot.slane %v57, %v61
  %v64 = vmul.f32 %v55, %v62
  %v65 = vmul.f32 %v56, %v62
  %v66 = vld [vmem:[%s4] sm:$0x1]
  %v68 = vlaneseq
  %v69 = vshrl.u32 %v68, 7
  %v70 = vsub.s32 0, %v69
  %v71 = vrot.slane %v66, %v70
  %v73 = vadd.f32 %v64, %v71
  %v74 = vadd.f32 %v65, %v71
  %v75 = vpack.c.bf16 %v74, %v73
  %v76 = vld [vmem:[%s1] sm:$0xf]
  %v77 = vld [vmem:[%s1 + $0x4] sm:$0xf]
  %v78 = vld [vmem:[%s1 + $0x8] sm:$0xf]
  %v79 = vld [vmem:[%s1 + $0xc] sm:$0xf]
  %v80 = vld [vmem:[%s2] sm:$0x1]
  %v82 = vlaneseq
  %v83 = vshrl.u32 %v82, 7
  %v84 = vsub.s32 0, %v83
  %v85 = vrot.slane %v80, %v84
  %v91 = vunpack.c.l.b16 %v76
  %v92 = vunpack.c.l.b16 %v77
  %v93 = vunpack.c.l.b16 %v78
  %v94 = vunpack.c.l.b16 %v79
  %v95 = vpack.c.b16 %v92, %v91
  %v96 = vpack.c.b16 %v94, %v93
  %v100 = vsel %vm29, %v75, 0
  %102 = vmatprep.subr.bf16.mxu0 0
  %103 = vmatpush1.bf16.msra.mxu0 %v95
  %104 = vmatprep.subr.bf16.mxu0 0
  %105 = vmatpush1.bf16.msra.mxu0 %v96
  %106 = vmatprep.subr.bf16.mxu0 0
  %107 = vmatpush1.bf16.msra.mxu0 0
  %108 = vmatprep.subr.bf16.mxu0 0
  %109 = vmatpush1.bf16.msra.mxu0 0
  %110 = vmatprep.subr.bf16.mxu0 0
  %111 = vmatpush1.bf16.msra.mxu0 0
  %112 = vmatprep.subr.bf16.mxu0 0
  %113 = vmatpush1.bf16.msra.mxu0 0
  %114 = vmatprep.subr.bf16.mxu0 0
  %115 = vmatpush1.bf16.msra.mxu0 0
  %116 = vmatprep.subr.bf16.mxu0 0
  %117 = vmatpush1.bf16.msra.mxu0 0
  %118 = vmatprep.subr.bf16.mxu0 0
  %119 = vmatpush1.bf16.msra.mxu0 0
  %120 = vmatprep.subr.bf16.mxu0 0
  %121 = vmatpush1.bf16.msra.mxu0 0
  %122 = vmatprep.subr.bf16.mxu0 0
  %123 = vmatpush1.bf16.msra.mxu0 0
  %124 = vmatprep.subr.bf16.mxu0 0
  %125 = vmatpush1.bf16.msra.mxu0 0
  %126 = vmatprep.subr.bf16.mxu0 0
  %127 = vmatpush1.bf16.msra.mxu0 0
  %128 = vmatprep.subr.bf16.mxu0 0
  %129 = vmatpush1.bf16.msra.mxu0 0
  %130 = vmatprep.subr.bf16.mxu0 0
  %131 = vmatpush1.bf16.msra.mxu0 0
  %132 = vmatprep.subr.bf16.mxu0 0
  %133 = vmatpush1.bf16.msra.mxu0 0
  %134 = vmatprep.mubr.bf16.mxu0 0
  %135 = vmatmul.mubr.bf16.gmra.mrb[0].mxu0 %v100
  %v136 = vpop.f32.mrb[0].mxu0
  %v137 = vadd.f32 %v85, %v136
  %v138 = vpop.f32.mrb[0].mxu0
  %v139 = vpop.f32.mrb[0].mxu0
  %v140 = vadd.f32 %v85, %v139
  %v141 = vpop.f32.mrb[0].mxu0
  %142 = vdwg.mxu0
  %v143 = vld [vmem:[%s5] sm:$0xf]
  %v144 = vld [vmem:[%s5 + $0x4] sm:$0xf]
  %v145 = vld [vmem:[%s5 + $0x8] sm:$0xf]
  %v146 = vld [vmem:[%s5 + $0xc] sm:$0xf]
  %v147 = vld [vmem:[%s6] sm:$0x1]
  %v149 = vlaneseq
  %v150 = vshrl.u32 %v149, 7
  %v151 = vsub.s32 0, %v150
  %v152 = vrot.slane %v147, %v151
  %v158 = vunpack.c.l.b16 %v143
  %v159 = vunpack.c.l.b16 %v144
  %v160 = vunpack.c.l.b16 %v145
  %v161 = vunpack.c.l.b16 %v146
  %v162 = vpack.c.b16 %v159, %v158
  %v163 = vpack.c.b16 %v161, %v160
  %166 = vmatprep.subr.bf16.mxu0 0
  %167 = vmatpush1.bf16.msra.mxu0 %v162
  %168 = vmatprep.subr.bf16.mxu0 0
  %169 = vmatpush1.bf16.msra.mxu0 %v163
  %170 = vmatprep.subr.bf16.mxu0 0
  %171 = vmatpush1.bf16.msra.mxu0 0
  %172 = vmatprep.subr.bf16.mxu0 0
  %173 = vmatpush1.bf16.msra.mxu0 0
  %174 = vmatprep.subr.bf16.mxu0 0
  %175 = vmatpush1.bf16.msra.mxu0 0
  %176 = vmatprep.subr.bf16.mxu0 0
  %177 = vmatpush1.bf16.msra.mxu0 0
  %178 = vmatprep.subr.bf16.mxu0 0
  %179 = vmatpush1.bf16.msra.mxu0 0
  %180 = vmatprep.subr.bf16.mxu0 0
  %181 = vmatpush1.bf16.msra.mxu0 0
  %182 = vmatprep.subr.bf16.mxu0 0
  %183 = vmatpush1.bf16.msra.mxu0 0
  %184 = vmatprep.subr.bf16.mxu0 0
  %185 = vmatpush1.bf16.msra.mxu0 0
  %186 = vmatprep.subr.bf16.mxu0 0
  %187 = vmatpush1.bf16.msra.mxu0 0
  %188 = vmatprep.subr.bf16.mxu0 0
  %189 = vmatpush1.bf16.msra.mxu0 0
  %190 = vmatprep.subr.bf16.mxu0 0
  %191 = vmatpush1.bf16.msra.mxu0 0
  %192 = vmatprep.subr.bf16.mxu0 0
  %193 = vmatpush1.bf16.msra.mxu0 0
  %194 = vmatprep.subr.bf16.mxu0 0
  %195 = vmatpush1.bf16.msra.mxu0 0
  %196 = vmatprep.subr.bf16.mxu0 0
  %197 = vmatpush1.bf16.msra.mxu0 0
  %198 = vmatprep.mubr.bf16.mxu0 0
  %199 = vmatmul.mubr.bf16.gmra.mrb[0].mxu0 %v100
  %v200 = vpop.f32.mrb[0].mxu0
  %v201 = vadd.f32 %v152, %v200
  %v202 = vpop.f32.mrb[0].mxu0
  %v203 = vpop.f32.mrb[0].mxu0
  %v204 = vadd.f32 %v152, %v203
  %v205 = vpop.f32.mrb[0].mxu0
  %206 = vdwg.mxu0
  %v207 = vxor.u32 %v201, 2147483648
  %v208 = vxor.u32 %v204, 2147483648
  %v209 = vmul.f32 %v207, 1.442695
  %v210 = vpow.pop %v209
  %v211 = vmul.f32 %v208, 1.442695
  %v212 = vpow.pop %v211
  %v213 = vadd.f32 %v210, 1.0
  %v214 = vadd.f32 %v212, 1.0
  %v215 = vrcp.pop %v213
  %v216 = vmul.f32 1.0, %v215
  %v217 = vrcp.pop %v214
  %v218 = vmul.f32 1.0, %v217
  %v219 = vmul.f32 %v137, %v216
  %v220 = vmul.f32 %v140, %v218
  %221 = vst.msk [vmem:[%s7] sm:$0xff] %vm29, %v219
  %222 = vst.msk [vmem:[%s7 + $0x8] sm:$0xff] %vm29, %v220
  // Predicated region
  $region30: #{_lambda_.32} parent=0 // pred_check
    _
  $region31: #{_lambda_.32} parent=0 // pred_check_branch
    %224 = sbr.rel (0) target = $region33
  $region32: #{_lambda_.32} parent=0 // pred_region
    _
  $region33: #{_lambda_.32} parent=0 // pred_fallthru
    _
  // Predicated region
  $region34: #{_lambda_.32} parent=0 // pred_check
    _
  $region35: #{_lambda_.32} parent=0 // pred_check_branch
    %226 = sbr.rel (0) target = $region37
  $region36: #{_lambda_.32} parent=0 // pred_region
    _
  $region37: #{_lambda_.32} parent=0 // pred_fallthru
    _

// kernel: _lambda_.36
$region0: #{_lambda_.36}
  #allocation0 [shape = 'u32[]', space=smem, size = 0x4, offset = 0x4, fixed_abs, tag = 'smem constant byte address 0x4 - core index']
  #allocation1 [shape = 'u32[144,128]{1,0:T(1,128)}', space=vmem, size = 0x12000, scoped, tag = 'internal scratch']
  %s0 = inlined_call_operand.vmem [shape: f32[16,128], index: 0, kind: input, shape index: {}]
  %s1 = inlined_call_operand.vmem [shape: bf16[128,32], index: 1, kind: input, shape index: {}]
  %s2 = inlined_call_operand.vmem [shape: f32[1,32], index: 2, kind: input, shape index: {}]
  %s3 = inlined_call_operand.vmem [shape: f32[16,32], index: 3, kind: input, shape index: {}]
  %s4 = inlined_call_operand.vmem [shape: f32[1,32], index: 4, kind: input, shape index: {}]
  %s5 = inlined_call_operand.vmem [shape: f32[1,32], index: 5, kind: input, shape index: {}]
  %s6 = inlined_call_operand.vmem [shape: f32[16,32], index: 6, kind: output, shape index: {}]
  %s7 = sld [smem:[#allocation0]]
  $region34: #{_lambda_.36} parent=0
    _
  %s9 = ssub.s32 1, %s7
  %s10 = scalar_select 0, %s9, %s7
  // Predicated region
  $region2: #{_lambda_.36} parent=0 // pred_check
    _
  $region3: #{_lambda_.36} parent=0 // pred_check_branch
    %12 = sbr.rel (0) target = $region5
  $region4: #{_lambda_.36} parent=0 // pred_region
    _
  $region5: #{_lambda_.36} parent=0 // pred_fallthru
    _
  // Predicated region
  $region6: #{_lambda_.36} parent=0 // pred_check
    _
  $region7: #{_lambda_.36} parent=0 // pred_check_branch
    %14 = sbr.rel (0) target = $region9
  $region8: #{_lambda_.36} parent=0 // pred_region
    _
  $region9: #{_lambda_.36} parent=0 // pred_fallthru
    _
  // Predicated region
  $region10: #{_lambda_.36} parent=0 // pred_check
    _
  $region11: #{_lambda_.36} parent=0 // pred_check_branch
    %16 = sbr.rel (0) target = $region13
  $region12: #{_lambda_.36} parent=0 // pred_region
    _
  $region13: #{_lambda_.36} parent=0 // pred_fallthru
    _
  // Predicated region
  $region14: #{_lambda_.36} parent=0 // pred_check
    _
  $region15: #{_lambda_.36} parent=0 // pred_check_branch
    %18 = sbr.rel (0) target = $region17
  $region16: #{_lambda_.36} parent=0 // pred_region
    _
  $region17: #{_lambda_.36} parent=0 // pred_fallthru
    _
  // Predicated region
  $region18: #{_lambda_.36} parent=0 // pred_check
    _
  $region19: #{_lambda_.36} parent=0 // pred_check_branch
    %20 = sbr.rel (0) target = $region21
  $region20: #{_lambda_.36} parent=0 // pred_region
    _
  $region21: #{_lambda_.36} parent=0 // pred_fallthru
    _
  // Predicated region
  $region22: #{_lambda_.36} parent=0 // pred_check
    _
  $region23: #{_lambda_.36} parent=0 // pred_check_branch
    %22 = sbr.rel (0) target = $region25
  $region24: #{_lambda_.36} parent=0 // pred_region
    _
  $region25: #{_lambda_.36} parent=0 // pred_fallthru
    _
  %v24 = vld [vmem:[%s0] sm:$0xff]
  %v25 = vld [vmem:[%s0 + $0x8] sm:$0xff]
  %v26 = vpack.c.bf16 %v25, %v24
  %v27 = vld [vmem:[%s1] sm:$0xf]
  %v28 = vld [vmem:[%s1 + $0x4] sm:$0xf]
  %v29 = vld [vmem:[%s1 + $0x8] sm:$0xf]
  %v30 = vld [vmem:[%s1 + $0xc] sm:$0xf]
  %v31 = vld [vmem:[%s1 + $0x10] sm:$0xf]
  %v32 = vld [vmem:[%s1 + $0x14] sm:$0xf]
  %v33 = vld [vmem:[%s1 + $0x18] sm:$0xf]
  %v34 = vld [vmem:[%s1 + $0x1c] sm:$0xf]
  %v35 = vld [vmem:[%s1 + $0x20] sm:$0xf]
  %v36 = vld [vmem:[%s1 + $0x24] sm:$0xf]
  %v37 = vld [vmem:[%s1 + $0x28] sm:$0xf]
  %v38 = vld [vmem:[%s1 + $0x2c] sm:$0xf]
  %v39 = vld [vmem:[%s1 + $0x30] sm:$0xf]
  %v40 = vld [vmem:[%s1 + $0x34] sm:$0xf]
  %v41 = vld [vmem:[%s1 + $0x38] sm:$0xf]
  %v42 = vld [vmem:[%s1 + $0x3c] sm:$0xf]
  %v43 = vld [vmem:[%s2] sm:$0x1]
  %v45 = vlaneseq
  %v46 = vshrl.u32 %v45, 7
  %v47 = vsub.s32 0, %v46
  %v48 = vrot.slane %v43, %v47
  %v66 = vunpack.c.l.b16 %v27
  %v67 = vunpack.c.l.b16 %v28
  %v68 = vunpack.c.l.b16 %v29
  %v69 = vunpack.c.l.b16 %v30
  %v70 = vunpack.c.l.b16 %v31
  %v71 = vunpack.c.l.b16 %v32
  %v72 = vunpack.c.l.b16 %v33
  %v73 = vunpack.c.l.b16 %v34
  %v74 = vunpack.c.l.b16 %v35
  %v75 = vunpack.c.l.b16 %v36
  %v76 = vunpack.c.l.b16 %v37
  %v77 = vunpack.c.l.b16 %v38
  %v78 = vunpack.c.l.b16 %v39
  %v79 = vunpack.c.l.b16 %v40
  %v80 = vunpack.c.l.b16 %v41
  %v81 = vunpack.c.l.b16 %v42
  %v82 = vpack.c.b16 %v67, %v66
  %v83 = vpack.c.b16 %v69, %v68
  %v84 = vpack.c.b16 %v71, %v70
  %v85 = vpack.c.b16 %v73, %v72
  %v86 = vpack.c.b16 %v75, %v74
  %v87 = vpack.c.b16 %v77, %v76
  %v88 = vpack.c.b16 %v79, %v78
  %v89 = vpack.c.b16 %v81, %v80
  %98 = vmatprep.subr.bf16.mxu0 0
  %99 = vmatpush1.bf16.msra.mxu0 %v82
  %100 = vmatprep.subr.bf16.mxu0 0
  %101 = vmatpush1.bf16.msra.mxu0 %v83
  %102 = vmatprep.subr.bf16.mxu0 0
  %103 = vmatpush1.bf16.msra.mxu0 %v84
  %104 = vmatprep.subr.bf16.mxu0 0
  %105 = vmatpush1.bf16.msra.mxu0 %v85
  %106 = vmatprep.subr.bf16.mxu0 0
  %107 = vmatpush1.bf16.msra.mxu0 %v86
  %108 = vmatprep.subr.bf16.mxu0 0
  %109 = vmatpush1.bf16.msra.mxu0 %v87
  %110 = vmatprep.subr.bf16.mxu0 0
  %111 = vmatpush1.bf16.msra.mxu0 %v88
  %112 = vmatprep.subr.bf16.mxu0 0
  %113 = vmatpush1.bf16.msra.mxu0 %v89
  %114 = vmatprep.subr.bf16.mxu0 0
  %115 = vmatpush1.bf16.msra.mxu0 0
  %116 = vmatprep.subr.bf16.mxu0 0
  %117 = vmatpush1.bf16.msra.mxu0 0
  %118 = vmatprep.subr.bf16.mxu0 0
  %119 = vmatpush1.bf16.msra.mxu0 0
  %120 = vmatprep.subr.bf16.mxu0 0
  %121 = vmatpush1.bf16.msra.mxu0 0
  %122 = vmatprep.subr.bf16.mxu0 0
  %123 = vmatpush1.bf16.msra.mxu0 0
  %124 = vmatprep.subr.bf16.mxu0 0
  %125 = vmatpush1.bf16.msra.mxu0 0
  %126 = vmatprep.subr.bf16.mxu0 0
  %127 = vmatpush1.bf16.msra.mxu0 0
  %128 = vmatprep.subr.bf16.mxu0 0
  %129 = vmatpush1.bf16.msra.mxu0 0
  %130 = vmatprep.mubr.bf16.mxu0 0
  %131 = vmatmul.mubr.bf16.gmra.mrb[0].mxu0 %v26
  %v132 = vpop.f32.mrb[0].mxu0
  %v133 = vadd.f32 %v48, %v132
  %v134 = vpop.f32.mrb[0].mxu0
  %v135 = vpop.f32.mrb[0].mxu0
  %v136 = vadd.f32 %v48, %v135
  %v137 = vpop.f32.mrb[0].mxu0
  %138 = vdwg.mxu0
  %v139 = vld [vmem:[%s3] sm:$0xff]
  %v140 = vld [vmem:[%s3 + $0x8] sm:$0xff]
  %v141 = vmul.f32 %v133, 0.5
  %v142 = vmul.f32 %v136, 0.5
  %v143 = vadd.f32 %v139, %v141
  %v144 = vadd.f32 %v140, %v142
  %vm145 = vcmask 261120
  %v146 = vsel %vm145, %v143, 0.0
  %147 = vadd.xlane.f32.xlu0 %v146
  %v148 = vpop.xlane.xlu0 %147
  %v149 = vsel %vm145, %v144, 0.0
  %150 = vadd.xlane.f32.xlu0 %v149
  %v151 = vpop.xlane.xlu0 %150
  %v152 = vrcp.pop 32.0
  %v153 = vmul.f32 %v148, %v152
  %v154 = vmul.f32 %v151, %v152
  %v155 = vsub.f32 %v143, %v153
  %v156 = vsub.f32 %v144, %v154
  %v157 = vmul.f32 %v155, %v155
  %v158 = vmul.f32 %v156, %v156
  %v159 = vsel %vm145, %v157, 0.0
  %160 = vadd.xlane.f32.xlu0 %v159
  %v161 = vpop.xlane.xlu0 %160
  %v162 = vsel %vm145, %v158, 0.0
  %163 = vadd.xlane.f32.xlu0 %v162
  %v164 = vpop.xlane.xlu0 %163
  %v165 = vmul.f32 %v161, %v152
  %v166 = vmul.f32 %v164, %v152
  %v167 = vadd.f32 %v165, 1e-05
  %v168 = vadd.f32 %v166, 1e-05
  %v169 = vrsqrt.pop %v167
  %v170 = vrsqrt.pop %v168
  %v171 = vmul.f32 %v155, %v169
  %v172 = vmul.f32 %v156, %v170
  %v173 = vld [vmem:[%s4] sm:$0x1]
  %v175 = vlaneseq
  %v176 = vshrl.u32 %v175, 7
  %v177 = vsub.s32 0, %v176
  %v178 = vrot.slane %v173, %v177
  %v180 = vmul.f32 %v171, %v178
  %v181 = vmul.f32 %v172, %v178
  %v182 = vld [vmem:[%s5] sm:$0x1]
  %v184 = vlaneseq
  %v185 = vshrl.u32 %v184, 7
  %v186 = vsub.s32 0, %v185
  %v187 = vrot.slane %v182, %v186
  %v189 = vadd.f32 %v180, %v187
  %v190 = vadd.f32 %v181, %v187
  %191 = vst.msk [vmem:[%s6] sm:$0xff] %vm145, %v189
  %192 = vst.msk [vmem:[%s6 + $0x8] sm:$0xff] %vm145, %v190
  // Predicated region
  $region26: #{_lambda_.36} parent=0 // pred_check
    _
  $region27: #{_lambda_.36} parent=0 // pred_check_branch
    %194 = sbr.rel (0) target = $region29
  $region28: #{_lambda_.36} parent=0 // pred_region
    _
  $region29: #{_lambda_.36} parent=0 // pred_fallthru
    _
  // Predicated region
  $region30: #{_lambda_.36} parent=0 // pred_check
    _
  $region31: #{_lambda_.36} parent=0 // pred_check_branch
    %196 = sbr.rel (0) target = $region33
  $region32: #{_lambda_.36} parent=0 // pred_region
    _
  $region33: #{_lambda_.36} parent=0 // pred_fallthru
    _

// kernel: _lambda_.47
$region0: #{_lambda_.47}
  #allocation0 [shape = 'u32[]', space=smem, size = 0x4, offset = 0x4, fixed_abs, tag = 'smem constant byte address 0x4 - core index']
  #allocation1 [shape = 'u32[144,128]{1,0:T(1,128)}', space=vmem, size = 0x12000, scoped, tag = 'internal scratch']
  %s0 = inlined_call_operand.vmem [shape: f32[16,32], index: 0, kind: input, shape index: {}]
  %s1 = inlined_call_operand.vmem [shape: bf16[32,16], index: 1, kind: input, shape index: {}]
  %s2 = inlined_call_operand.vmem [shape: f32[1,16], index: 2, kind: input, shape index: {}]
  %s3 = inlined_call_operand.hbm [shape: f32[16,16], index: 3, kind: output, shape index: {}]
  %s4 = sld [smem:[#allocation0]]
  $region22: #{_lambda_.47} parent=0
    _
  %s6 = ssub.s32 1, %s4
  %s7 = scalar_select 0, %s6, %s4
  $region1: #{_lambda_.47} parent=0
    #allocation2 [shape = 'u8[8192]{0}', space=vmem, size = 0x2000, scoped, tag = 'output window, operand 0, single buffered']
    #allocation3 [shape = 's32[1]{0}', space=sflag, size = 0x4, scoped, tag = 'scoped memory for _lambda_.47']
    %8 = vsyncpa [#allocation3], 0
    // Predicated region
    $region2: #{_lambda_.47} parent=1 // pred_check
      _
    $region3: #{_lambda_.47} parent=1 // pred_check_branch
      %10 = sbr.rel (0) target = $region5
    $region4: #{_lambda_.47} parent=1 // pred_region
      _
    $region5: #{_lambda_.47} parent=1 // pred_fallthru
      _
    // Predicated region
    $region6: #{_lambda_.47} parent=1 // pred_check
      _
    $region7: #{_lambda_.47} parent=1 // pred_check_branch
      %12 = sbr.rel (0) target = $region9
    $region8: #{_lambda_.47} parent=1 // pred_region
      _
    $region9: #{_lambda_.47} parent=1 // pred_fallthru
      _
    // Predicated region
    $region10: #{_lambda_.47} parent=1 // pred_check
      _
    $region11: #{_lambda_.47} parent=1 // pred_check_branch
      %14 = sbr.rel (0) target = $region13
    $region12: #{_lambda_.47} parent=1 // pred_region
      _
    $region13: #{_lambda_.47} parent=1 // pred_fallthru
      _
    %v16 = vld [vmem:[%s0] sm:$0xff]
    %v17 = vld [vmem:[%s0 + $0x8] sm:$0xff]
    %v18 = vpack.c.bf16 %v17, %v16
    %v19 = vld [vmem:[%s1] sm:$0xf]
    %v20 = vld [vmem:[%s1 + $0x4] sm:$0xf]
    %v21 = vld [vmem:[%s1 + $0x8] sm:$0xf]
    %v22 = vld [vmem:[%s1 + $0xc] sm:$0xf]
    %v23 = vld [vmem:[%s2] sm:$0x1]
    %v25 = vlaneseq
    %v26 = vshrl.u32 %v25, 7
    %v27 = vsub.s32 0, %v26
    %v28 = vrot.slane %v23, %v27
    %v34 = vunpack.c.l.b16 %v19
    %v35 = vunpack.c.l.b16 %v20
    %v36 = vunpack.c.l.b16 %v21
    %v37 = vunpack.c.l.b16 %v22
    %v38 = vpack.c.b16 %v35, %v34
    %v39 = vpack.c.b16 %v37, %v36
    %vm42 = vcmask 261120
    %v44 = vsel %vm42, %v18, 0
    %46 = vmatprep.subr.bf16.mxu0 0
    %47 = vmatpush1.bf16.msra.mxu0 %v38
    %48 = vmatprep.subr.bf16.mxu0 0
    %49 = vmatpush1.bf16.msra.mxu0 %v39
    %50 = vmatprep.subr.bf16.mxu0 0
    %51 = vmatpush1.bf16.msra.mxu0 0
    %52 = vmatprep.subr.bf16.mxu0 0
    %53 = vmatpush1.bf16.msra.mxu0 0
    %54 = vmatprep.subr.bf16.mxu0 0
    %55 = vmatpush1.bf16.msra.mxu0 0
    %56 = vmatprep.subr.bf16.mxu0 0
    %57 = vmatpush1.bf16.msra.mxu0 0
    %58 = vmatprep.subr.bf16.mxu0 0
    %59 = vmatpush1.bf16.msra.mxu0 0
    %60 = vmatprep.subr.bf16.mxu0 0
    %61 = vmatpush1.bf16.msra.mxu0 0
    %62 = vmatprep.subr.bf16.mxu0 0
    %63 = vmatpush1.bf16.msra.mxu0 0
    %64 = vmatprep.subr.bf16.mxu0 0
    %65 = vmatpush1.bf16.msra.mxu0 0
    %66 = vmatprep.subr.bf16.mxu0 0
    %67 = vmatpush1.bf16.msra.mxu0 0
    %68 = vmatprep.subr.bf16.mxu0 0
    %69 = vmatpush1.bf16.msra.mxu0 0
    %70 = vmatprep.subr.bf16.mxu0 0
    %71 = vmatpush1.bf16.msra.mxu0 0
    %72 = vmatprep.subr.bf16.mxu0 0
    %73 = vmatpush1.bf16.msra.mxu0 0
    %74 = vmatprep.subr.bf16.mxu0 0
    %75 = vmatpush1.bf16.msra.mxu0 0
    %76 = vmatprep.subr.bf16.mxu0 0
    %77 = vmatpush1.bf16.msra.mxu0 0
    %78 = vmatprep.mubr.bf16.mxu0 0
    %79 = vmatmul.mubr.bf16.gmra.mrb[0].mxu0 %v44
    %v80 = vpop.f32.mrb[0].mxu0
    %v81 = vadd.f32 %v28, %v80
    %v82 = vpop.f32.mrb[0].mxu0
    %v83 = vpop.f32.mrb[0].mxu0
    %v84 = vadd.f32 %v28, %v83
    %v85 = vpop.f32.mrb[0].mxu0
    %86 = vdwg.mxu0
    %vm87 = vcmask 130048
    %v88 = vsel %vm87, %v81, -inf
    %89 = vmax.xlane.f32.xlu0 %v88
    %v90 = vpop.xlane.xlu0 %89
    %v91 = vsel %vm87, %v84, -inf
    %92 = vmax.xlane.f32.xlu0 %v91
    %v93 = vpop.xlane.xlu0 %92
    %v94 = vsub.f32 %v81, %v90
    %v95 = vsub.f32 %v84, %v93
    %v96 = vmul.f32 %v94, 1.442695
    %v97 = vpow.pop %v96
    %v98 = vmul.f32 %v95, 1.442695
    %v99 = vpow.pop %v98
    %v100 = vsel %vm87, %v97, 0.0
    %101 = vadd.xlane.f32.xlu0 %v100
    %v102 = vpop.xlane.xlu0 %101
    %v103 = vsel %vm87, %v99, 0.0
    %104 = vadd.xlane.f32.xlu0 %v103
    %v105 = vpop.xlane.xlu0 %104
    %v106 = vlog2.pop %v102
    %v107 = vmul.f32 %v106, 0.6931472
    %v108 = vlog2.pop %v105
    %v109 = vmul.f32 %v108, 0.6931472
    %v110 = vsub.f32 %v94, %v107
    %v111 = vsub.f32 %v95, %v109
    %112 = vst.msk [vmem:[#allocation2] sm:$0xff] %vm87, %v110
    %113 = vst.msk [vmem:[#allocation2 + $0x8] sm:$0xff] %vm87, %v111
    // Predicated region
    $region14: #{_lambda_.47} parent=1 // pred_check
      _
    $region15: #{_lambda_.47} parent=1 // pred_check_branch
      %115 = sbr.rel (0) target = $region17
    $region16: #{_lambda_.47} parent=1 // pred_region
      %s117 = ssub.s32 256, 256
      %118 = vsyncadd [#allocation3], %s117
      %s119 = sshll.u32 [#allocation2], 4
      %s120 = int_to_ptr.vmem [resolvable:$true] %s119
      %125 = dma.vmem_to_hbm [thread:$0]  %s120, 256, %s3, [#allocation3], 128, 128, 8
    $region17: #{_lambda_.47} parent=1 // pred_fallthru
      _
    // Predicated region
    $region18: #{_lambda_.47} parent=1 // pred_check
      _
    $region19: #{_lambda_.47} parent=1 // pred_check_branch
      %127 = sbr.rel (0) target = $region21
    $region20: #{_lambda_.47} parent=1 // pred_region
      %128 = dma.done [#allocation3], 256
    $region21: #{_lambda_.47} parent=1 // pred_fallthru
      _
    %129 = vsyncpa [#allocation3], 1

</llo_original>
